<compile_context>
chip_gen: v7x
topology: tpu7x:2x2x1
jax: 0.10.0
libtpu: 0.0.40
codegen_flags: <defaults>
</compile_context>

<pallas_src>
import jax
import jax.numpy as jnp
from jax import lax
from jax.experimental import pallas as pl
from jax.experimental.pallas import tpu as pltpu


def _classify_rnn_kernel(x_ref, w_ih1_ref, w_hh1_ref, b1_ref,
                         w_ih2_ref, w_hh2_ref, b2_ref,
                         w_cls_ref, b_cls_ref, out_ref):
    # x_ref:     (T, B, D_in)  time-major input sequence
    # w_ih1_ref: (D_in, H1)    rnn1 input->hidden, pre-transposed
    # w_hh1_ref: (H1, H1)      rnn1 hidden->hidden, pre-transposed
    # b1_ref:    (1, H1)       rnn1 combined bias (b_ih + b_hh)
    # w_ih2_ref: (H1, H2), w_hh2_ref: (H2, H2), b2_ref: (1, H2)
    # w_cls_ref: (H2, O)       classifier weight, pre-transposed
    # b_cls_ref: (1, O)
    # out_ref:   (T, B, O)     per-step logits, time-major
    seq_len = x_ref.shape[0]
    batch = x_ref.shape[1]
    h1_dim = w_hh1_ref.shape[0]
    h2_dim = w_hh2_ref.shape[0]

    # Load weights/biases once; they stay resident across all time steps.
    w_ih1 = w_ih1_ref[...]
    w_hh1 = w_hh1_ref[...]
    b1 = b1_ref[...]
    w_ih2 = w_ih2_ref[...]
    w_hh2 = w_hh2_ref[...]
    b2 = b2_ref[...]
    w_cls = w_cls_ref[...]
    b_cls = b_cls_ref[...]

    def step(t, carry):
        h1_prev, h2_prev = carry
        x_t = x_ref[t]                                   # (B, D_in)
        h1 = jnp.tanh(
            jnp.dot(x_t, w_ih1, preferred_element_type=jnp.float32)
            + jnp.dot(h1_prev, w_hh1, preferred_element_type=jnp.float32)
            + b1)
        h2 = jnp.tanh(
            jnp.dot(h1, w_ih2, preferred_element_type=jnp.float32)
            + jnp.dot(h2_prev, w_hh2, preferred_element_type=jnp.float32)
            + b2)
        # dropout == identity at inference time.
        logits = (jnp.dot(h2, w_cls, preferred_element_type=jnp.float32)
                  + b_cls)                               # (B, O)
        out_ref[t] = logits.astype(out_ref.dtype)
        return (h1, h2)

    h1_0 = jnp.zeros((batch, h1_dim), jnp.float32)
    h2_0 = jnp.zeros((batch, h2_dim), jnp.float32)
    # Short, static trip-count -> unroll for LLO scheduler visibility.
    lax.fori_loop(0, seq_len, step, (h1_0, h2_0), unroll=True)


def classify_rnn_forward(x, params):
    """Pallas forward of ClassifyRNN.

    x: (B, T, input_size), batch_first (same as the PyTorch module).
    params: PyTorch-layout tensors
        (w_ih1 (H1,D), w_hh1 (H1,H1), b_ih1 (H1,), b_hh1 (H1,),
         w_ih2 (H2,H1), w_hh2 (H2,H2), b_ih2 (H2,), b_hh2 (H2,),
         w_cls (O,H2), b_cls (O,))
    Returns logits of shape (B*T, O) with batch-major row order,
    matching out.contiguous().view(-1, H2) -> Linear.
    """
    (w_ih1, w_hh1, b_ih1, b_hh1,
     w_ih2, w_hh2, b_ih2, b_hh2,
     w_cls, b_cls) = params
    batch, seq_len, _ = x.shape
    out_dim = w_cls.shape[0]

    # Time-major layout: kernel indexes the leading axis each step and the
    # per-step (B, D) slab stays lane-dense on the last two dims.
    x_tm = jnp.transpose(x, (1, 0, 2))

    # Pre-transpose weights and fold the two RNN biases so every in-kernel
    # matmul is a plain row-major dot (no in-kernel transposes).
    args = (
        x_tm,
        jnp.transpose(w_ih1), jnp.transpose(w_hh1), (b_ih1 + b_hh1)[None, :],
        jnp.transpose(w_ih2), jnp.transpose(w_hh2), (b_ih2 + b_hh2)[None, :],
        jnp.transpose(w_cls), b_cls[None, :],
    )

    vmem_spec = lambda: pl.BlockSpec(memory_space=pltpu.MemorySpace.VMEM)
    logits_tm = pl.pallas_call(
        _classify_rnn_kernel,
        out_shape=jax.ShapeDtypeStruct((seq_len, batch, out_dim), x.dtype),
        in_specs=[vmem_spec() for _ in range(len(args))],
        out_specs=vmem_spec(),
    )(*args)

    # Back to batch-major, then flatten (B, T, O) -> (B*T, O).
    return jnp.transpose(logits_tm, (1, 0, 2)).reshape(batch * seq_len, out_dim)


def classify_rnn_reference(x, params):
    """Pure-JAX reference mirroring the PyTorch module (dropout = identity)."""
    (w_ih1, w_hh1, b_ih1, b_hh1,
     w_ih2, w_hh2, b_ih2, b_hh2,
     w_cls, b_cls) = params
    prec = jax.lax.Precision.HIGHEST

    def run_rnn(seq, w_ih, w_hh, b_ih, b_hh):
        b, _, _ = seq.shape
        h_dim = w_hh.shape[0]

        def step(h, x_t):
            h_new = jnp.tanh(jnp.dot(x_t, w_ih.T, precision=prec)
                             + jnp.dot(h, w_hh.T, precision=prec)
                             + b_ih + b_hh)
            return h_new, h_new

        _, out_tm = lax.scan(step, jnp.zeros((b, h_dim), seq.dtype),
                             jnp.transpose(seq, (1, 0, 2)))
        return jnp.transpose(out_tm, (1, 0, 2))

    out = run_rnn(x, w_ih1, w_hh1, b_ih1, b_hh1)
    out = run_rnn(out, w_ih2, w_hh2, b_ih2, b_hh2)
    out = out.reshape(-1, out.shape[-1])
    return jnp.dot(out, w_cls.T, precision=prec) + b_cls


if __name__ == "__main__":
    key = jax.random.PRNGKey(0)

    # Small shapes consistent with the module's forward.
    batch, seq_len = 2, 8
    input_size, hidden_1, hidden_2, output_size = 16, 32, 32, 4

    keys = jax.random.split(key, 11)

    def uniform_init(k, shape, fan_in):
        bound = 1.0 / (fan_in ** 0.5)
        return jax.random.uniform(k, shape, jnp.float32, -bound, bound)

    x = jax.random.normal(keys[0], (batch, seq_len, input_size),
                          dtype=jnp.float32)
    params = (
        uniform_init(keys[1], (hidden_1, input_size), hidden_1),   # rnn1 W_ih
        uniform_init(keys[2], (hidden_1, hidden_1), hidden_1),     # rnn1 W_hh
        uniform_init(keys[3], (hidden_1,), hidden_1),              # rnn1 b_ih
        uniform_init(keys[4], (hidden_1,), hidden_1),              # rnn1 b_hh
        uniform_init(keys[5], (hidden_2, hidden_1), hidden_2),     # rnn2 W_ih
        uniform_init(keys[6], (hidden_2, hidden_2), hidden_2),     # rnn2 W_hh
        uniform_init(keys[7], (hidden_2,), hidden_2),              # rnn2 b_ih
        uniform_init(keys[8], (hidden_2,), hidden_2),              # rnn2 b_hh
        uniform_init(keys[9], (output_size, hidden_2), hidden_2),  # cls W
        uniform_init(keys[10], (output_size,), hidden_2),          # cls b
    )

    y = classify_rnn_forward(x, params)
    jax.block_until_ready(y)

    y_ref = classify_rnn_reference(x, params)
    assert y.shape == (batch * seq_len, output_size), y.shape
    max_err = float(jnp.max(jnp.abs(y - y_ref)))
    assert jnp.allclose(y, y_ref, atol=2e-3, rtol=2e-3), max_err

    print("KERNEL_OK")
</pallas_src>

<mosaic_0001>
module attributes {stable_mosaic.version = 11 : i64} {
  func.func @_classify_rnn_kernel(%arg0: memref<8x2x16xf32, #tpu.memory_space<vmem>>, %arg1: memref<16x32xf32, #tpu.memory_space<vmem>>, %arg2: memref<32x32xf32, #tpu.memory_space<vmem>>, %arg3: memref<1x32xf32, #tpu.memory_space<vmem>>, %arg4: memref<32x32xf32, #tpu.memory_space<vmem>>, %arg5: memref<32x32xf32, #tpu.memory_space<vmem>>, %arg6: memref<1x32xf32, #tpu.memory_space<vmem>>, %arg7: memref<32x4xf32, #tpu.memory_space<vmem>>, %arg8: memref<1x4xf32, #tpu.memory_space<vmem>>, %arg9: memref<8x2x4xf32, #tpu.memory_space<vmem>>) attributes {dimension_semantics = [], scalar_prefetch = 0 : i64, scratch_operands = 0 : i64, tpu.core_type = #tpu.core_type<tc>} {
    %c0 = arith.constant 0 : index
    %c0_0 = arith.constant 0 : index
    %0 = vector.load %arg1[%c0, %c0_0] : memref<16x32xf32, #tpu.memory_space<vmem>>, vector<16x32xf32>
    %c0_1 = arith.constant 0 : index
    %c0_2 = arith.constant 0 : index
    %1 = vector.load %arg2[%c0_1, %c0_2] : memref<32x32xf32, #tpu.memory_space<vmem>>, vector<32x32xf32>
    %c0_3 = arith.constant 0 : index
    %c0_4 = arith.constant 0 : index
    %2 = vector.load %arg3[%c0_3, %c0_4] : memref<1x32xf32, #tpu.memory_space<vmem>>, vector<1x32xf32>
    %c0_5 = arith.constant 0 : index
    %c0_6 = arith.constant 0 : index
    %3 = vector.load %arg4[%c0_5, %c0_6] : memref<32x32xf32, #tpu.memory_space<vmem>>, vector<32x32xf32>
    %c0_7 = arith.constant 0 : index
    %c0_8 = arith.constant 0 : index
    %4 = vector.load %arg5[%c0_7, %c0_8] : memref<32x32xf32, #tpu.memory_space<vmem>>, vector<32x32xf32>
    %c0_9 = arith.constant 0 : index
    %c0_10 = arith.constant 0 : index
    %5 = vector.load %arg6[%c0_9, %c0_10] : memref<1x32xf32, #tpu.memory_space<vmem>>, vector<1x32xf32>
    %c0_11 = arith.constant 0 : index
    %c0_12 = arith.constant 0 : index
    %6 = vector.load %arg7[%c0_11, %c0_12] : memref<32x4xf32, #tpu.memory_space<vmem>>, vector<32x4xf32>
    %c0_13 = arith.constant 0 : index
    %c0_14 = arith.constant 0 : index
    %7 = vector.load %arg8[%c0_13, %c0_14] : memref<1x4xf32, #tpu.memory_space<vmem>>, vector<1x4xf32>
    %cst = arith.constant 0.000000e+00 : f32
    %8 = vector.broadcast %cst : f32 to vector<2x32xf32>
    %cst_15 = arith.constant 0.000000e+00 : f32
    %9 = vector.broadcast %cst_15 : f32 to vector<2x32xf32>
    %c0_i32 = arith.constant 0 : i32
    %10 = arith.index_cast %c0_i32 : i32 to index
    %c0_16 = arith.constant 0 : index
    %c0_17 = arith.constant 0 : index
    %11 = vector.load %arg0[%10, %c0_16, %c0_17] : memref<8x2x16xf32, #tpu.memory_space<vmem>>, vector<1x2x16xf32>
    %12 = vector.shape_cast %11 : vector<1x2x16xf32> to vector<2x16xf32>
    %cst_18 = arith.constant dense<0.000000e+00> : vector<2x32xf32>
    %13 = tpu.matmul %12, %0, %cst_18 {dimension_numbers = #tpu.dot_dimension_numbers<[1], [0], [0], [1], [0, 0, 1, 1], [], []>} : vector<2x16xf32>, vector<16x32xf32>, vector<2x32xf32> -> vector<2x32xf32>
    %cst_19 = arith.constant dense<0.000000e+00> : vector<2x32xf32>
    %14 = tpu.matmul %8, %1, %cst_19 {dimension_numbers = #tpu.dot_dimension_numbers<[1], [0], [0], [1], [0, 0, 1, 1], [], []>} : vector<2x32xf32>, vector<32x32xf32>, vector<2x32xf32> -> vector<2x32xf32>
    %15 = arith.addf %13, %14 : vector<2x32xf32>
    %16 = vector.broadcast %2 : vector<1x32xf32> to vector<2x32xf32>
    %17 = arith.addf %15, %16 : vector<2x32xf32>
    %18 = math.tanh %17 : vector<2x32xf32>
    %cst_20 = arith.constant dense<0.000000e+00> : vector<2x32xf32>
    %19 = tpu.matmul %18, %3, %cst_20 {dimension_numbers = #tpu.dot_dimension_numbers<[1], [0], [0], [1], [0, 0, 1, 1], [], []>} : vector<2x32xf32>, vector<32x32xf32>, vector<2x32xf32> -> vector<2x32xf32>
    %cst_21 = arith.constant dense<0.000000e+00> : vector<2x32xf32>
    %20 = tpu.matmul %9, %4, %cst_21 {dimension_numbers = #tpu.dot_dimension_numbers<[1], [0], [0], [1], [0, 0, 1, 1], [], []>} : vector<2x32xf32>, vector<32x32xf32>, vector<2x32xf32> -> vector<2x32xf32>
    %21 = arith.addf %19, %20 : vector<2x32xf32>
    %22 = vector.broadcast %5 : vector<1x32xf32> to vector<2x32xf32>
    %23 = arith.addf %21, %22 : vector<2x32xf32>
    %24 = math.tanh %23 : vector<2x32xf32>
    %cst_22 = arith.constant dense<0.000000e+00> : vector<2x4xf32>
    %25 = tpu.matmul %24, %6, %cst_22 {dimension_numbers = #tpu.dot_dimension_numbers<[1], [0], [0], [1], [0, 0, 1, 1], [], []>} : vector<2x32xf32>, vector<32x4xf32>, vector<2x4xf32> -> vector<2x4xf32>
    %26 = vector.broadcast %7 : vector<1x4xf32> to vector<2x4xf32>
    %27 = arith.addf %25, %26 : vector<2x4xf32>
    %28 = arith.index_cast %c0_i32 : i32 to index
    %c0_23 = arith.constant 0 : index
    %c0_24 = arith.constant 0 : index
    %29 = vector.load %arg9[%28, %c0_23, %c0_24] : memref<8x2x4xf32, #tpu.memory_space<vmem>>, vector<1x2x4xf32>
    %30 = vector.shape_cast %29 : vector<1x2x4xf32> to vector<2x4xf32>
    %31 = vector.shape_cast %27 : vector<2x4xf32> to vector<1x2x4xf32>
    tpu.vector_store %arg9[%28, %c0_23, %c0_24], %31 {strides = array<i32>} : memref<8x2x4xf32, #tpu.memory_space<vmem>>, vector<1x2x4xf32>,
    %c1_i32 = arith.constant 1 : i32
    %32 = arith.index_cast %c1_i32 : i32 to index
    %c0_25 = arith.constant 0 : index
    %c0_26 = arith.constant 0 : index
    %33 = vector.load %arg0[%32, %c0_25, %c0_26] : memref<8x2x16xf32, #tpu.memory_space<vmem>>, vector<1x2x16xf32>
    %34 = vector.shape_cast %33 : vector<1x2x16xf32> to vector<2x16xf32>
    %cst_27 = arith.constant dense<0.000000e+00> : vector<2x32xf32>
    %35 = tpu.matmul %34, %0, %cst_27 {dimension_numbers = #tpu.dot_dimension_numbers<[1], [0], [0], [1], [0, 0, 1, 1], [], []>} : vector<2x16xf32>, vector<16x32xf32>, vector<2x32xf32> -> vector<2x32xf32>
    %cst_28 = arith.constant dense<0.000000e+00> : vector<2x32xf32>
    %36 = tpu.matmul %18, %1, %cst_28 {dimension_numbers = #tpu.dot_dimension_numbers<[1], [0], [0], [1], [0, 0, 1, 1], [], []>} : vector<2x32xf32>, vector<32x32xf32>, vector<2x32xf32> -> vector<2x32xf32>
    %37 = arith.addf %35, %36 : vector<2x32xf32>
    %38 = vector.broadcast %2 : vector<1x32xf32> to vector<2x32xf32>
    %39 = arith.addf %37, %38 : vector<2x32xf32>
    %40 = math.tanh %39 : vector<2x32xf32>
    %cst_29 = arith.constant dense<0.000000e+00> : vector<2x32xf32>
    %41 = tpu.matmul %40, %3, %cst_29 {dimension_numbers = #tpu.dot_dimension_numbers<[1], [0], [0], [1], [0, 0, 1, 1], [], []>} : vector<2x32xf32>, vector<32x32xf32>, vector<2x32xf32> -> vector<2x32xf32>
    %cst_30 = arith.constant dense<0.000000e+00> : vector<2x32xf32>
    %42 = tpu.matmul %24, %4, %cst_30 {dimension_numbers = #tpu.dot_dimension_numbers<[1], [0], [0], [1], [0, 0, 1, 1], [], []>} : vector<2x32xf32>, vector<32x32xf32>, vector<2x32xf32> -> vector<2x32xf32>
    %43 = arith.addf %41, %42 : vector<2x32xf32>
    %44 = vector.broadcast %5 : vector<1x32xf32> to vector<2x32xf32>
    %45 = arith.addf %43, %44 : vector<2x32xf32>
    %46 = math.tanh %45 : vector<2x32xf32>
    %cst_31 = arith.constant dense<0.000000e+00> : vector<2x4xf32>
    %47 = tpu.matmul %46, %6, %cst_31 {dimension_numbers = #tpu.dot_dimension_numbers<[1], [0], [0], [1], [0, 0, 1, 1], [], []>} : vector<2x32xf32>, vector<32x4xf32>, vector<2x4xf32> -> vector<2x4xf32>
    %48 = vector.broadcast %7 : vector<1x4xf32> to vector<2x4xf32>
    %49 = arith.addf %47, %48 : vector<2x4xf32>
    %50 = arith.index_cast %c1_i32 : i32 to index
    %c0_32 = arith.constant 0 : index
    %c0_33 = arith.constant 0 : index
    %51 = vector.load %arg9[%50, %c0_32, %c0_33] : memref<8x2x4xf32, #tpu.memory_space<vmem>>, vector<1x2x4xf32>
    %52 = vector.shape_cast %51 : vector<1x2x4xf32> to vector<2x4xf32>
    %53 = vector.shape_cast %49 : vector<2x4xf32> to vector<1x2x4xf32>
    tpu.vector_store %arg9[%50, %c0_32, %c0_33], %53 {strides = array<i32>} : memref<8x2x4xf32, #tpu.memory_space<vmem>>, vector<1x2x4xf32>,
    %c2_i32 = arith.constant 2 : i32
    %54 = arith.index_cast %c2_i32 : i32 to index
    %c0_34 = arith.constant 0 : index
    %c0_35 = arith.constant 0 : index
    %55 = vector.load %arg0[%54, %c0_34, %c0_35] : memref<8x2x16xf32, #tpu.memory_space<vmem>>, vector<1x2x16xf32>
    %56 = vector.shape_cast %55 : vector<1x2x16xf32> to vector<2x16xf32>
    %cst_36 = arith.constant dense<0.000000e+00> : vector<2x32xf32>
    %57 = tpu.matmul %56, %0, %cst_36 {dimension_numbers = #tpu.dot_dimension_numbers<[1], [0], [0], [1], [0, 0, 1, 1], [], []>} : vector<2x16xf32>, vector<16x32xf32>, vector<2x32xf32> -> vector<2x32xf32>
    %cst_37 = arith.constant dense<0.000000e+00> : vector<2x32xf32>
    %58 = tpu.matmul %40, %1, %cst_37 {dimension_numbers = #tpu.dot_dimension_numbers<[1], [0], [0], [1], [0, 0, 1, 1], [], []>} : vector<2x32xf32>, vector<32x32xf32>, vector<2x32xf32> -> vector<2x32xf32>
    %59 = arith.addf %57, %58 : vector<2x32xf32>
    %60 = vector.broadcast %2 : vector<1x32xf32> to vector<2x32xf32>
    %61 = arith.addf %59, %60 : vector<2x32xf32>
    %62 = math.tanh %61 : vector<2x32xf32>
    %cst_38 = arith.constant dense<0.000000e+00> : vector<2x32xf32>
    %63 = tpu.matmul %62, %3, %cst_38 {dimension_numbers = #tpu.dot_dimension_numbers<[1], [0], [0], [1], [0, 0, 1, 1], [], []>} : vector<2x32xf32>, vector<32x32xf32>, vector<2x32xf32> -> vector<2x32xf32>
    %cst_39 = arith.constant dense<0.000000e+00> : vector<2x32xf32>
    %64 = tpu.matmul %46, %4, %cst_39 {dimension_numbers = #tpu.dot_dimension_numbers<[1], [0], [0], [1], [0, 0, 1, 1], [], []>} : vector<2x32xf32>, vector<32x32xf32>, vector<2x32xf32> -> vector<2x32xf32>
    %65 = arith.addf %63, %64 : vector<2x32xf32>
    %66 = vector.broadcast %5 : vector<1x32xf32> to vector<2x32xf32>
    %67 = arith.addf %65, %66 : vector<2x32xf32>
    %68 = math.tanh %67 : vector<2x32xf32>
    %cst_40 = arith.constant dense<0.000000e+00> : vector<2x4xf32>
    %69 = tpu.matmul %68, %6, %cst_40 {dimension_numbers = #tpu.dot_dimension_numbers<[1], [0], [0], [1], [0, 0, 1, 1], [], []>} : vector<2x32xf32>, vector<32x4xf32>, vector<2x4xf32> -> vector<2x4xf32>
    %70 = vector.broadcast %7 : vector<1x4xf32> to vector<2x4xf32>
    %71 = arith.addf %69, %70 : vector<2x4xf32>
    %72 = arith.index_cast %c2_i32 : i32 to index
    %c0_41 = arith.constant 0 : index
    %c0_42 = arith.constant 0 : index
    %73 = vector.load %arg9[%72, %c0_41, %c0_42] : memref<8x2x4xf32, #tpu.memory_space<vmem>>, vector<1x2x4xf32>
    %74 = vector.shape_cast %73 : vector<1x2x4xf32> to vector<2x4xf32>
    %75 = vector.shape_cast %71 : vector<2x4xf32> to vector<1x2x4xf32>
    tpu.vector_store %arg9[%72, %c0_41, %c0_42], %75 {strides = array<i32>} : memref<8x2x4xf32, #tpu.memory_space<vmem>>, vector<1x2x4xf32>,
    %c3_i32 = arith.constant 3 : i32
    %76 = arith.index_cast %c3_i32 : i32 to index
    %c0_43 = arith.constant 0 : index
    %c0_44 = arith.constant 0 : index
    %77 = vector.load %arg0[%76, %c0_43, %c0_44] : memref<8x2x16xf32, #tpu.memory_space<vmem>>, vector<1x2x16xf32>
    %78 = vector.shape_cast %77 : vector<1x2x16xf32> to vector<2x16xf32>
    %cst_45 = arith.constant dense<0.000000e+00> : vector<2x32xf32>
    %79 = tpu.matmul %78, %0, %cst_45 {dimension_numbers = #tpu.dot_dimension_numbers<[1], [0], [0], [1], [0, 0, 1, 1], [], []>} : vector<2x16xf32>, vector<16x32xf32>, vector<2x32xf32> -> vector<2x32xf32>
    %cst_46 = arith.constant dense<0.000000e+00> : vector<2x32xf32>
    %80 = tpu.matmul %62, %1, %cst_46 {dimension_numbers = #tpu.dot_dimension_numbers<[1], [0], [0], [1], [0, 0, 1, 1], [], []>} : vector<2x32xf32>, vector<32x32xf32>, vector<2x32xf32> -> vector<2x32xf32>
    %81 = arith.addf %79, %80 : vector<2x32xf32>
    %82 = vector.broadcast %2 : vector<1x32xf32> to vector<2x32xf32>
    %83 = arith.addf %81, %82 : vector<2x32xf32>
    %84 = math.tanh %83 : vector<2x32xf32>
    %cst_47 = arith.constant dense<0.000000e+00> : vector<2x32xf32>
    %85 = tpu.matmul %84, %3, %cst_47 {dimension_numbers = #tpu.dot_dimension_numbers<[1], [0], [0], [1], [0, 0, 1, 1], [], []>} : vector<2x32xf32>, vector<32x32xf32>, vector<2x32xf32> -> vector<2x32xf32>
    %cst_48 = arith.constant dense<0.000000e+00> : vector<2x32xf32>
    %86 = tpu.matmul %68, %4, %cst_48 {dimension_numbers = #tpu.dot_dimension_numbers<[1], [0], [0], [1], [0, 0, 1, 1], [], []>} : vector<2x32xf32>, vector<32x32xf32>, vector<2x32xf32> -> vector<2x32xf32>
    %87 = arith.addf %85, %86 : vector<2x32xf32>
    %88 = vector.broadcast %5 : vector<1x32xf32> to vector<2x32xf32>
    %89 = arith.addf %87, %88 : vector<2x32xf32>
    %90 = math.tanh %89 : vector<2x32xf32>
    %cst_49 = arith.constant dense<0.000000e+00> : vector<2x4xf32>
    %91 = tpu.matmul %90, %6, %cst_49 {dimension_numbers = #tpu.dot_dimension_numbers<[1], [0], [0], [1], [0, 0, 1, 1], [], []>} : vector<2x32xf32>, vector<32x4xf32>, vector<2x4xf32> -> vector<2x4xf32>
    %92 = vector.broadcast %7 : vector<1x4xf32> to vector<2x4xf32>
    %93 = arith.addf %91, %92 : vector<2x4xf32>
    %94 = arith.index_cast %c3_i32 : i32 to index
    %c0_50 = arith.constant 0 : index
    %c0_51 = arith.constant 0 : index
    %95 = vector.load %arg9[%94, %c0_50, %c0_51] : memref<8x2x4xf32, #tpu.memory_space<vmem>>, vector<1x2x4xf32>
    %96 = vector.shape_cast %95 : vector<1x2x4xf32> to vector<2x4xf32>
    %97 = vector.shape_cast %93 : vector<2x4xf32> to vector<1x2x4xf32>
    tpu.vector_store %arg9[%94, %c0_50, %c0_51], %97 {strides = array<i32>} : memref<8x2x4xf32, #tpu.memory_space<vmem>>, vector<1x2x4xf32>,
    %c4_i32 = arith.constant 4 : i32
    %98 = arith.index_cast %c4_i32 : i32 to index
    %c0_52 = arith.constant 0 : index
    %c0_53 = arith.constant 0 : index
    %99 = vector.load %arg0[%98, %c0_52, %c0_53] : memref<8x2x16xf32, #tpu.memory_space<vmem>>, vector<1x2x16xf32>
    %100 = vector.shape_cast %99 : vector<1x2x16xf32> to vector<2x16xf32>
    %cst_54 = arith.constant dense<0.000000e+00> : vector<2x32xf32>
    %101 = tpu.matmul %100, %0, %cst_54 {dimension_numbers = #tpu.dot_dimension_numbers<[1], [0], [0], [1], [0, 0, 1, 1], [], []>} : vector<2x16xf32>, vector<16x32xf32>, vector<2x32xf32> -> vector<2x32xf32>
    %cst_55 = arith.constant dense<0.000000e+00> : vector<2x32xf32>
    %102 = tpu.matmul %84, %1, %cst_55 {dimension_numbers = #tpu.dot_dimension_numbers<[1], [0], [0], [1], [0, 0, 1, 1], [], []>} : vector<2x32xf32>, vector<32x32xf32>, vector<2x32xf32> -> vector<2x32xf32>
    %103 = arith.addf %101, %102 : vector<2x32xf32>
    %104 = vector.broadcast %2 : vector<1x32xf32> to vector<2x32xf32>
    %105 = arith.addf %103, %104 : vector<2x32xf32>
    %106 = math.tanh %105 : vector<2x32xf32>
    %cst_56 = arith.constant dense<0.000000e+00> : vector<2x32xf32>
    %107 = tpu.matmul %106, %3, %cst_56 {dimension_numbers = #tpu.dot_dimension_numbers<[1], [0], [0], [1], [0, 0, 1, 1], [], []>} : vector<2x32xf32>, vector<32x32xf32>, vector<2x32xf32> -> vector<2x32xf32>
    %cst_57 = arith.constant dense<0.000000e+00> : vector<2x32xf32>
    %108 = tpu.matmul %90, %4, %cst_57 {dimension_numbers = #tpu.dot_dimension_numbers<[1], [0], [0], [1], [0, 0, 1, 1], [], []>} : vector<2x32xf32>, vector<32x32xf32>, vector<2x32xf32> -> vector<2x32xf32>
    %109 = arith.addf %107, %108 : vector<2x32xf32>
    %110 = vector.broadcast %5 : vector<1x32xf32> to vector<2x32xf32>
    %111 = arith.addf %109, %110 : vector<2x32xf32>
    %112 = math.tanh %111 : vector<2x32xf32>
    %cst_58 = arith.constant dense<0.000000e+00> : vector<2x4xf32>
    %113 = tpu.matmul %112, %6, %cst_58 {dimension_numbers = #tpu.dot_dimension_numbers<[1], [0], [0], [1], [0, 0, 1, 1], [], []>} : vector<2x32xf32>, vector<32x4xf32>, vector<2x4xf32> -> vector<2x4xf32>
    %114 = vector.broadcast %7 : vector<1x4xf32> to vector<2x4xf32>
    %115 = arith.addf %113, %114 : vector<2x4xf32>
    %116 = arith.index_cast %c4_i32 : i32 to index
    %c0_59 = arith.constant 0 : index
    %c0_60 = arith.constant 0 : index
    %117 = vector.load %arg9[%116, %c0_59, %c0_60] : memref<8x2x4xf32, #tpu.memory_space<vmem>>, vector<1x2x4xf32>
    %118 = vector.shape_cast %117 : vector<1x2x4xf32> to vector<2x4xf32>
    %119 = vector.shape_cast %115 : vector<2x4xf32> to vector<1x2x4xf32>
    tpu.vector_store %arg9[%116, %c0_59, %c0_60], %119 {strides = array<i32>} : memref<8x2x4xf32, #tpu.memory_space<vmem>>, vector<1x2x4xf32>,
    %c5_i32 = arith.constant 5 : i32
    %120 = arith.index_cast %c5_i32 : i32 to index
    %c0_61 = arith.constant 0 : index
    %c0_62 = arith.constant 0 : index
    %121 = vector.load %arg0[%120, %c0_61, %c0_62] : memref<8x2x16xf32, #tpu.memory_space<vmem>>, vector<1x2x16xf32>
    %122 = vector.shape_cast %121 : vector<1x2x16xf32> to vector<2x16xf32>
    %cst_63 = arith.constant dense<0.000000e+00> : vector<2x32xf32>
    %123 = tpu.matmul %122, %0, %cst_63 {dimension_numbers = #tpu.dot_dimension_numbers<[1], [0], [0], [1], [0, 0, 1, 1], [], []>} : vector<2x16xf32>, vector<16x32xf32>, vector<2x32xf32> -> vector<2x32xf32>
    %cst_64 = arith.constant dense<0.000000e+00> : vector<2x32xf32>
    %124 = tpu.matmul %106, %1, %cst_64 {dimension_numbers = #tpu.dot_dimension_numbers<[1], [0], [0], [1], [0, 0, 1, 1], [], []>} : vector<2x32xf32>, vector<32x32xf32>, vector<2x32xf32> -> vector<2x32xf32>
    %125 = arith.addf %123, %124 : vector<2x32xf32>
    %126 = vector.broadcast %2 : vector<1x32xf32> to vector<2x32xf32>
    %127 = arith.addf %125, %126 : vector<2x32xf32>
    %128 = math.tanh %127 : vector<2x32xf32>
    %cst_65 = arith.constant dense<0.000000e+00> : vector<2x32xf32>
    %129 = tpu.matmul %128, %3, %cst_65 {dimension_numbers = #tpu.dot_dimension_numbers<[1], [0], [0], [1], [0, 0, 1, 1], [], []>} : vector<2x32xf32>, vector<32x32xf32>, vector<2x32xf32> -> vector<2x32xf32>
    %cst_66 = arith.constant dense<0.000000e+00> : vector<2x32xf32>
    %130 = tpu.matmul %112, %4, %cst_66 {dimension_numbers = #tpu.dot_dimension_numbers<[1], [0], [0], [1], [0, 0, 1, 1], [], []>} : vector<2x32xf32>, vector<32x32xf32>, vector<2x32xf32> -> vector<2x32xf32>
    %131 = arith.addf %129, %130 : vector<2x32xf32>
    %132 = vector.broadcast %5 : vector<1x32xf32> to vector<2x32xf32>
    %133 = arith.addf %131, %132 : vector<2x32xf32>
    %134 = math.tanh %133 : vector<2x32xf32>
    %cst_67 = arith.constant dense<0.000000e+00> : vector<2x4xf32>
    %135 = tpu.matmul %134, %6, %cst_67 {dimension_numbers = #tpu.dot_dimension_numbers<[1], [0], [0], [1], [0, 0, 1, 1], [], []>} : vector<2x32xf32>, vector<32x4xf32>, vector<2x4xf32> -> vector<2x4xf32>
    %136 = vector.broadcast %7 : vector<1x4xf32> to vector<2x4xf32>
    %137 = arith.addf %135, %136 : vector<2x4xf32>
    %138 = arith.index_cast %c5_i32 : i32 to index
    %c0_68 = arith.constant 0 : index
    %c0_69 = arith.constant 0 : index
    %139 = vector.load %arg9[%138, %c0_68, %c0_69] : memref<8x2x4xf32, #tpu.memory_space<vmem>>, vector<1x2x4xf32>
    %140 = vector.shape_cast %139 : vector<1x2x4xf32> to vector<2x4xf32>
    %141 = vector.shape_cast %137 : vector<2x4xf32> to vector<1x2x4xf32>
    tpu.vector_store %arg9[%138, %c0_68, %c0_69], %141 {strides = array<i32>} : memref<8x2x4xf32, #tpu.memory_space<vmem>>, vector<1x2x4xf32>,
    %c6_i32 = arith.constant 6 : i32
    %142 = arith.index_cast %c6_i32 : i32 to index
    %c0_70 = arith.constant 0 : index
    %c0_71 = arith.constant 0 : index
    %143 = vector.load %arg0[%142, %c0_70, %c0_71] : memref<8x2x16xf32, #tpu.memory_space<vmem>>, vector<1x2x16xf32>
    %144 = vector.shape_cast %143 : vector<1x2x16xf32> to vector<2x16xf32>
    %cst_72 = arith.constant dense<0.000000e+00> : vector<2x32xf32>
    %145 = tpu.matmul %144, %0, %cst_72 {dimension_numbers = #tpu.dot_dimension_numbers<[1], [0], [0], [1], [0, 0, 1, 1], [], []>} : vector<2x16xf32>, vector<16x32xf32>, vector<2x32xf32> -> vector<2x32xf32>
    %cst_73 = arith.constant dense<0.000000e+00> : vector<2x32xf32>
    %146 = tpu.matmul %128, %1, %cst_73 {dimension_numbers = #tpu.dot_dimension_numbers<[1], [0], [0], [1], [0, 0, 1, 1], [], []>} : vector<2x32xf32>, vector<32x32xf32>, vector<2x32xf32> -> vector<2x32xf32>
    %147 = arith.addf %145, %146 : vector<2x32xf32>
    %148 = vector.broadcast %2 : vector<1x32xf32> to vector<2x32xf32>
    %149 = arith.addf %147, %148 : vector<2x32xf32>
    %150 = math.tanh %149 : vector<2x32xf32>
    %cst_74 = arith.constant dense<0.000000e+00> : vector<2x32xf32>
    %151 = tpu.matmul %150, %3, %cst_74 {dimension_numbers = #tpu.dot_dimension_numbers<[1], [0], [0], [1], [0, 0, 1, 1], [], []>} : vector<2x32xf32>, vector<32x32xf32>, vector<2x32xf32> -> vector<2x32xf32>
    %cst_75 = arith.constant dense<0.000000e+00> : vector<2x32xf32>
    %152 = tpu.matmul %134, %4, %cst_75 {dimension_numbers = #tpu.dot_dimension_numbers<[1], [0], [0], [1], [0, 0, 1, 1], [], []>} : vector<2x32xf32>, vector<32x32xf32>, vector<2x32xf32> -> vector<2x32xf32>
    %153 = arith.addf %151, %152 : vector<2x32xf32>
    %154 = vector.broadcast %5 : vector<1x32xf32> to vector<2x32xf32>
    %155 = arith.addf %153, %154 : vector<2x32xf32>
    %156 = math.tanh %155 : vector<2x32xf32>
    %cst_76 = arith.constant dense<0.000000e+00> : vector<2x4xf32>
    %157 = tpu.matmul %156, %6, %cst_76 {dimension_numbers = #tpu.dot_dimension_numbers<[1], [0], [0], [1], [0, 0, 1, 1], [], []>} : vector<2x32xf32>, vector<32x4xf32>, vector<2x4xf32> -> vector<2x4xf32>
    %158 = vector.broadcast %7 : vector<1x4xf32> to vector<2x4xf32>
    %159 = arith.addf %157, %158 : vector<2x4xf32>
    %160 = arith.index_cast %c6_i32 : i32 to index
    %c0_77 = arith.constant 0 : index
    %c0_78 = arith.constant 0 : index
    %161 = vector.load %arg9[%160, %c0_77, %c0_78] : memref<8x2x4xf32, #tpu.memory_space<vmem>>, vector<1x2x4xf32>
    %162 = vector.shape_cast %161 : vector<1x2x4xf32> to vector<2x4xf32>
    %163 = vector.shape_cast %159 : vector<2x4xf32> to vector<1x2x4xf32>
    tpu.vector_store %arg9[%160, %c0_77, %c0_78], %163 {strides = array<i32>} : memref<8x2x4xf32, #tpu.memory_space<vmem>>, vector<1x2x4xf32>,
    %c7_i32 = arith.constant 7 : i32
    %164 = arith.index_cast %c7_i32 : i32 to index
    %c0_79 = arith.constant 0 : index
    %c0_80 = arith.constant 0 : index
    %165 = vector.load %arg0[%164, %c0_79, %c0_80] : memref<8x2x16xf32, #tpu.memory_space<vmem>>, vector<1x2x16xf32>
    %166 = vector.shape_cast %165 : vector<1x2x16xf32> to vector<2x16xf32>
    %cst_81 = arith.constant dense<0.000000e+00> : vector<2x32xf32>
    %167 = tpu.matmul %166, %0, %cst_81 {dimension_numbers = #tpu.dot_dimension_numbers<[1], [0], [0], [1], [0, 0, 1, 1], [], []>} : vector<2x16xf32>, vector<16x32xf32>, vector<2x32xf32> -> vector<2x32xf32>
    %cst_82 = arith.constant dense<0.000000e+00> : vector<2x32xf32>
    %168 = tpu.matmul %150, %1, %cst_82 {dimension_numbers = #tpu.dot_dimension_numbers<[1], [0], [0], [1], [0, 0, 1, 1], [], []>} : vector<2x32xf32>, vector<32x32xf32>, vector<2x32xf32> -> vector<2x32xf32>
    %169 = arith.addf %167, %168 : vector<2x32xf32>
    %170 = vector.broadcast %2 : vector<1x32xf32> to vector<2x32xf32>
    %171 = arith.addf %169, %170 : vector<2x32xf32>
    %172 = math.tanh %171 : vector<2x32xf32>
    %cst_83 = arith.constant dense<0.000000e+00> : vector<2x32xf32>
    %173 = tpu.matmul %172, %3, %cst_83 {dimension_numbers = #tpu.dot_dimension_numbers<[1], [0], [0], [1], [0, 0, 1, 1], [], []>} : vector<2x32xf32>, vector<32x32xf32>, vector<2x32xf32> -> vector<2x32xf32>
    %cst_84 = arith.constant dense<0.000000e+00> : vector<2x32xf32>
    %174 = tpu.matmul %156, %4, %cst_84 {dimension_numbers = #tpu.dot_dimension_numbers<[1], [0], [0], [1], [0, 0, 1, 1], [], []>} : vector<2x32xf32>, vector<32x32xf32>, vector<2x32xf32> -> vector<2x32xf32>
    %175 = arith.addf %173, %174 : vector<2x32xf32>
    %176 = vector.broadcast %5 : vector<1x32xf32> to vector<2x32xf32>
    %177 = arith.addf %175, %176 : vector<2x32xf32>
    %178 = math.tanh %177 : vector<2x32xf32>
    %cst_85 = arith.constant dense<0.000000e+00> : vector<2x4xf32>
    %179 = tpu.matmul %178, %6, %cst_85 {dimension_numbers = #tpu.dot_dimension_numbers<[1], [0], [0], [1], [0, 0, 1, 1], [], []>} : vector<2x32xf32>, vector<32x4xf32>, vector<2x4xf32> -> vector<2x4xf32>
    %180 = vector.broadcast %7 : vector<1x4xf32> to vector<2x4xf32>
    %181 = arith.addf %179, %180 : vector<2x4xf32>
    %182 = arith.index_cast %c7_i32 : i32 to index
    %c0_86 = arith.constant 0 : index
    %c0_87 = arith.constant 0 : index
    %183 = vector.load %arg9[%182, %c0_86, %c0_87] : memref<8x2x4xf32, #tpu.memory_space<vmem>>, vector<1x2x4xf32>
    %184 = vector.shape_cast %183 : vector<1x2x4xf32> to vector<2x4xf32>
    %185 = vector.shape_cast %181 : vector<2x4xf32> to vector<1x2x4xf32>
    tpu.vector_store %arg9[%182, %c0_86, %c0_87], %185 {strides = array<i32>} : memref<8x2x4xf32, #tpu.memory_space<vmem>>, vector<1x2x4xf32>,
    %c8_i32 = arith.constant 8 : i32
    return
  }
}

</mosaic_0001>

<llo_original>
// kernel: tpu_custom_call.1
$region0: #{tpu_custom_call.1}
  #allocation0 [shape = 'u32[]', space=smem, size = 0x4, offset = 0x4, fixed_abs, tag = 'smem constant byte address 0x4 - core index']
  #allocation1 [shape = 'u32[144,128]{1,0:T(1,128)}', space=vmem, size = 0x12000, scoped, tag = 'internal scratch']
  %s0 = inlined_call_operand.hbm [shape: f32[8,2,16], index: 0, kind: input, shape index: {}]
  %s1 = inlined_call_operand.hbm [shape: f32[16,32], index: 1, kind: input, shape index: {}]
  %s2 = inlined_call_operand.vmem [shape: f32[32,32], index: 2, kind: input, shape index: {}]
  %s3 = inlined_call_operand.vmem [shape: f32[1,32], index: 3, kind: input, shape index: {}]
  %s4 = inlined_call_operand.hbm [shape: f32[32,32], index: 4, kind: input, shape index: {}]
  %s5 = inlined_call_operand.hbm [shape: f32[32,32], index: 5, kind: input, shape index: {}]
  %s6 = inlined_call_operand.vmem [shape: f32[1,32], index: 6, kind: input, shape index: {}]
  %s7 = inlined_call_operand.vmem [shape: f32[32,4], index: 7, kind: input, shape index: {}]
  %s8 = inlined_call_operand.vmem [shape: f32[1,4], index: 8, kind: input, shape index: {}]
  %s9 = inlined_call_operand.vmem [shape: f32[8,2,4], index: 9, kind: output, shape index: {}]
  %s10 = sld [smem:[#allocation0]]
  $region62: #{tpu_custom_call.1} parent=0
    _
  %s12 = ssub.s32 1, %s10
  %s13 = scalar_select 0, %s12, %s10
  $region1: #{tpu_custom_call.1} parent=0
    #allocation2 [shape = 'u8[8192]{0}', space=vmem, size = 0x2000, scoped, tag = 'input window, operand 0, single buffered']
    #allocation3 [shape = 's32[1]{0}', space=sflag, size = 0x4, scoped, tag = 'scoped memory for tpu_custom_call.1']
    #allocation4 [shape = 'u8[8192]{0}', space=vmem, size = 0x2000, scoped, tag = 'input window, operand 1, single buffered']
    #allocation5 [shape = 's32[1]{0}', space=sflag, size = 0x4, scoped, tag = 'scoped memory for tpu_custom_call.1']
    #allocation6 [shape = 'u8[16384]{0}', space=vmem, size = 0x4000, scoped, tag = 'input window, operand 4, single buffered']
    #allocation7 [shape = 'u8[16384]{0}', space=vmem, size = 0x4000, scoped, tag = 'input window, operand 5, single buffered']
    #allocation8 [shape = 's32[1]{0}', space=sflag, size = 0x4, scoped, tag = 'scoped memory for tpu_custom_call.1']
    %14 = vsyncpa [#allocation3], 0
    %15 = vsyncpa [#allocation5], 0
    %16 = vsyncpa [#allocation8], 0
    // Predicated region
    $region2: #{tpu_custom_call.1} parent=1 // pred_check
      _
    $region3: #{tpu_custom_call.1} parent=1 // pred_check_branch
      %18 = sbr.rel (0) target = $region5
    $region4: #{tpu_custom_call.1} parent=1 // pred_region
      %s20 = ssub.s32 256, 256
      %21 = vsyncadd [#allocation3], %s20
      %s22 = sshll.u32 [#allocation2], 4
      %s23 = int_to_ptr.vmem [resolvable:$true] %s22
      %28 = dma.hbm_to_vmem [thread:$0]  %s0, 256, %s23, [#allocation3], 32, 32, 2
    $region5: #{tpu_custom_call.1} parent=1 // pred_fallthru
      _
    // Predicated region
    $region6: #{tpu_custom_call.1} parent=1 // pred_check
      _
    $region7: #{tpu_custom_call.1} parent=1 // pred_check_branch
      %30 = sbr.rel (0) target = $region9
    $region8: #{tpu_custom_call.1} parent=1 // pred_region
      %s32 = ssub.s32 256, 256
      %33 = vsyncadd [#allocation5], %s32
      %s34 = sshll.u32 [#allocation4], 4
      %s35 = int_to_ptr.vmem [resolvable:$true] %s34
      %40 = dma.hbm_to_vmem [thread:$0]  %s1, 256, %s35, [#allocation5], 128, 128, 8
    $region9: #{tpu_custom_call.1} parent=1 // pred_fallthru
      _
    // Predicated region
    $region10: #{tpu_custom_call.1} parent=1 // pred_check
      _
    $region11: #{tpu_custom_call.1} parent=1 // pred_check_branch
      %42 = sbr.rel (0) target = $region13
    $region12: #{tpu_custom_call.1} parent=1 // pred_region
      _
    $region13: #{tpu_custom_call.1} parent=1 // pred_fallthru
      _
    // Predicated region
    $region14: #{tpu_custom_call.1} parent=1 // pred_check
      _
    $region15: #{tpu_custom_call.1} parent=1 // pred_check_branch
      %44 = sbr.rel (0) target = $region17
    $region16: #{tpu_custom_call.1} parent=1 // pred_region
      _
    $region17: #{tpu_custom_call.1} parent=1 // pred_fallthru
      _
    // Predicated region
    $region18: #{tpu_custom_call.1} parent=1 // pred_check
      _
    $region19: #{tpu_custom_call.1} parent=1 // pred_check_branch
      %46 = sbr.rel (0) target = $region21
    $region20: #{tpu_custom_call.1} parent=1 // pred_region
      %s48 = ssub.s32 512, 512
      %49 = vsyncadd [#allocation5], %s48
      %s50 = sshll.u32 [#allocation6], 4
      %s51 = int_to_ptr.vmem [resolvable:$true] %s50
      %56 = dma.hbm_to_vmem [thread:$0]  %s4, 512, %s51, [#allocation5], 128, 128, 8
    $region21: #{tpu_custom_call.1} parent=1 // pred_fallthru
      _
    // Predicated region
    $region22: #{tpu_custom_call.1} parent=1 // pred_check
      _
    $region23: #{tpu_custom_call.1} parent=1 // pred_check_branch
      %58 = sbr.rel (0) target = $region25
    $region24: #{tpu_custom_call.1} parent=1 // pred_region
      %s60 = ssub.s32 512, 512
      %61 = vsyncadd [#allocation8], %s60
      %s62 = sshll.u32 [#allocation7], 4
      %s63 = int_to_ptr.vmem [resolvable:$true] %s62
      %68 = dma.hbm_to_vmem [thread:$0]  %s5, 512, %s63, [#allocation8], 128, 128, 8
    $region25: #{tpu_custom_call.1} parent=1 // pred_fallthru
      _
    // Predicated region
    $region26: #{tpu_custom_call.1} parent=1 // pred_check
      _
    $region27: #{tpu_custom_call.1} parent=1 // pred_check_branch
      %70 = sbr.rel (0) target = $region29
    $region28: #{tpu_custom_call.1} parent=1 // pred_region
      _
    $region29: #{tpu_custom_call.1} parent=1 // pred_fallthru
      _
    // Predicated region
    $region30: #{tpu_custom_call.1} parent=1 // pred_check
      _
    $region31: #{tpu_custom_call.1} parent=1 // pred_check_branch
      %72 = sbr.rel (0) target = $region33
    $region32: #{tpu_custom_call.1} parent=1 // pred_region
      _
    $region33: #{tpu_custom_call.1} parent=1 // pred_fallthru
      _
    // Predicated region
    $region34: #{tpu_custom_call.1} parent=1 // pred_check
      _
    $region35: #{tpu_custom_call.1} parent=1 // pred_check_branch
      %74 = sbr.rel (0) target = $region37
    $region36: #{tpu_custom_call.1} parent=1 // pred_region
      _
    $region37: #{tpu_custom_call.1} parent=1 // pred_fallthru
      _
    // Predicated region
    $region38: #{tpu_custom_call.1} parent=1 // pred_check
      _
    $region39: #{tpu_custom_call.1} parent=1 // pred_check_branch
      %76 = sbr.rel (0) target = $region41
    $region40: #{tpu_custom_call.1} parent=1 // pred_region
      %77 = dma.done [#allocation3], 256
    $region41: #{tpu_custom_call.1} parent=1 // pred_fallthru
      _
    // Predicated region
    $region42: #{tpu_custom_call.1} parent=1 // pred_check
      _
    $region43: #{tpu_custom_call.1} parent=1 // pred_check_branch
      %79 = sbr.rel (0) target = $region45
    $region44: #{tpu_custom_call.1} parent=1 // pred_region
      %80 = dma.done [#allocation5], 256
    $region45: #{tpu_custom_call.1} parent=1 // pred_fallthru
      _
    // Predicated region
    $region46: #{tpu_custom_call.1} parent=1 // pred_check
      _
    $region47: #{tpu_custom_call.1} parent=1 // pred_check_branch
      %82 = sbr.rel (0) target = $region49
    $region48: #{tpu_custom_call.1} parent=1 // pred_region
      %83 = dma.done [#allocation5], 512
    $region49: #{tpu_custom_call.1} parent=1 // pred_fallthru
      _
    // Predicated region
    $region50: #{tpu_custom_call.1} parent=1 // pred_check
      _
    $region51: #{tpu_custom_call.1} parent=1 // pred_check_branch
      %85 = sbr.rel (0) target = $region53
    $region52: #{tpu_custom_call.1} parent=1 // pred_region
      %86 = dma.done [#allocation8], 512
    $region53: #{tpu_custom_call.1} parent=1 // pred_fallthru
      _
    %v87 = vld [vmem:[#allocation4] sm:$0xff]
    %v88 = vld [vmem:[#allocation4 + $0x8] sm:$0xff]
    %v89 = vld [vmem:[%s2] sm:$0xff]
    %v90 = vld [vmem:[%s2 + $0x8] sm:$0xff]
    %v91 = vld [vmem:[%s2 + $0x10] sm:$0xff]
    %v92 = vld [vmem:[%s2 + $0x18] sm:$0xff]
    %v93 = vld [vmem:[%s3] sm:$0x1]
    %v94 = vld [vmem:[#allocation6] sm:$0xff]
    %v95 = vld [vmem:[#allocation6 + $0x8] sm:$0xff]
    %v96 = vld [vmem:[#allocation6 + $0x10] sm:$0xff]
    %v97 = vld [vmem:[#allocation6 + $0x18] sm:$0xff]
    %v98 = vld [vmem:[#allocation7] sm:$0xff]
    %v99 = vld [vmem:[#allocation7 + $0x8] sm:$0xff]
    %v100 = vld [vmem:[#allocation7 + $0x10] sm:$0xff]
    %v101 = vld [vmem:[#allocation7 + $0x18] sm:$0xff]
    %v102 = vld [vmem:[%s6] sm:$0x1]
    %v103 = vld [vmem:[%s7] sm:$0xff]
    %v104 = vld [vmem:[%s7 + $0x8] sm:$0xff]
    %v105 = vld [vmem:[%s7 + $0x10] sm:$0xff]
    %v106 = vld [vmem:[%s7 + $0x18] sm:$0xff]
    %v107 = vld [vmem:[%s8] sm:$0x1]
    %v108 = vld [vmem:[#allocation2] sm:$0x3]
    %vm109 = vcmask 261120
    %v111 = vsel %vm109, 0.0, 0
    %113 = vmatprep.subr.mxu0 0.0
    %114 = vmatpush1.msra.mxu0 %v89
    %115 = vmatprep.subr.mxu0 0.0
    %116 = vmatpush1.msra.mxu0 %v90
    %117 = vmatprep.subr.mxu0 0.0
    %118 = vmatpush1.msra.mxu0 %v91
    %119 = vmatprep.subr.mxu0 0.0
    %120 = vmatpush1.msra.mxu0 %v92
    %121 = vmatprep.subr.mxu0 0.0
    %122 = vmatpush1.msra.mxu0 0.0
    %123 = vmatprep.subr.mxu0 0.0
    %124 = vmatpush1.msra.mxu0 0.0
    %125 = vmatprep.subr.mxu0 0.0
    %126 = vmatpush1.msra.mxu0 0.0
    %127 = vmatprep.subr.mxu0 0.0
    %128 = vmatpush1.msra.mxu0 0.0
    %129 = vmatprep.subr.mxu0 0.0
    %130 = vmatpush1.msra.mxu0 0.0
    %131 = vmatprep.subr.mxu0 0.0
    %132 = vmatpush1.msra.mxu0 0.0
    %133 = vmatprep.subr.mxu0 0.0
    %134 = vmatpush1.msra.mxu0 0.0
    %135 = vmatprep.subr.mxu0 0.0
    %136 = vmatpush1.msra.mxu0 0.0
    %137 = vmatprep.subr.mxu0 0.0
    %138 = vmatpush1.msra.mxu0 0.0
    %139 = vmatprep.subr.mxu0 0.0
    %140 = vmatpush1.msra.mxu0 0.0
    %141 = vmatprep.subr.mxu0 0.0
    %142 = vmatpush1.msra.mxu0 0.0
    %143 = vmatprep.subr.mxu0 0.0
    %144 = vmatpush1.msra.mxu0 0.0
    %145 = vmatprep.subr.mxu0 0.0
    %146 = vmatpush1.msra.mxu0 0.0
    %147 = vmatprep.subr.mxu0 0.0
    %148 = vmatpush1.msra.mxu0 0.0
    %149 = vmatprep.subr.mxu0 0.0
    %150 = vmatpush1.msra.mxu0 0.0
    %151 = vmatprep.subr.mxu0 0.0
    %152 = vmatpush1.msra.mxu0 0.0
    %153 = vmatprep.subr.mxu0 0.0
    %154 = vmatpush1.msra.mxu0 0.0
    %155 = vmatprep.subr.mxu0 0.0
    %156 = vmatpush1.msra.mxu0 0.0
    %157 = vmatprep.subr.mxu0 0.0
    %158 = vmatpush1.msra.mxu0 0.0
    %159 = vmatprep.subr.mxu0 0.0
    %160 = vmatpush1.msra.mxu0 0.0
    %161 = vmatprep.subr.mxu0 0.0
    %162 = vmatpush1.msra.mxu0 0.0
    %163 = vmatprep.subr.mxu0 0.0
    %164 = vmatpush1.msra.mxu0 0.0
    %165 = vmatprep.subr.mxu0 0.0
    %166 = vmatpush1.msra.mxu0 0.0
    %167 = vmatprep.subr.mxu0 0.0
    %168 = vmatpush1.msra.mxu0 0.0
    %169 = vmatprep.subr.mxu0 0.0
    %170 = vmatpush1.msra.mxu0 0.0
    %171 = vmatprep.subr.mxu0 0.0
    %172 = vmatpush1.msra.mxu0 0.0
    %173 = vmatprep.subr.mxu0 0.0
    %174 = vmatpush1.msra.mxu0 0.0
    %175 = vmatprep.subr.mxu0 0.0
    %176 = vmatpush1.msra.mxu0 0.0
    %177 = vmatprep.mubr.f32.mxu0 0.0
    %178 = vmatmul.mubr.f32.gmra.mrb[0].mxu0 %v111
    %v179 = vpop.f32.mrb[0].mxu0
    %v180 = vadd.f32 0.0, %v179
    %v181 = vpop.f32.mrb[0].mxu0
    %182 = vdwg.mxu0
    %vm183 = vcmask 130048
    %v185 = vsel %vm183, %v108, 0
    %187 = vmatprep.subr.mxu0 0.0
    %188 = vmatpush1.msra.mxu0 %v87
    %189 = vmatprep.subr.mxu0 0.0
    %190 = vmatpush1.msra.mxu0 %v88
    %191 = vmatprep.subr.mxu0 0.0
    %192 = vmatpush1.msra.mxu0 0.0
    %193 = vmatprep.subr.mxu0 0.0
    %194 = vmatpush1.msra.mxu0 0.0
    %195 = vmatprep.subr.mxu0 0.0
    %196 = vmatpush1.msra.mxu0 0.0
    %197 = vmatprep.subr.mxu0 0.0
    %198 = vmatpush1.msra.mxu0 0.0
    %199 = vmatprep.subr.mxu0 0.0
    %200 = vmatpush1.msra.mxu0 0.0
    %201 = vmatprep.subr.mxu0 0.0
    %202 = vmatpush1.msra.mxu0 0.0
    %203 = vmatprep.subr.mxu0 0.0
    %204 = vmatpush1.msra.mxu0 0.0
    %205 = vmatprep.subr.mxu0 0.0
    %206 = vmatpush1.msra.mxu0 0.0
    %207 = vmatprep.subr.mxu0 0.0
    %208 = vmatpush1.msra.mxu0 0.0
    %209 = vmatprep.subr.mxu0 0.0
    %210 = vmatpush1.msra.mxu0 0.0
    %211 = vmatprep.subr.mxu0 0.0
    %212 = vmatpush1.msra.mxu0 0.0
    %213 = vmatprep.subr.mxu0 0.0
    %214 = vmatpush1.msra.mxu0 0.0
    %215 = vmatprep.subr.mxu0 0.0
    %216 = vmatpush1.msra.mxu0 0.0
    %217 = vmatprep.subr.mxu0 0.0
    %218 = vmatpush1.msra.mxu0 0.0
    %219 = vmatprep.subr.mxu0 0.0
    %220 = vmatpush1.msra.mxu0 0.0
    %221 = vmatprep.subr.mxu0 0.0
    %222 = vmatpush1.msra.mxu0 0.0
    %223 = vmatprep.subr.mxu0 0.0
    %224 = vmatpush1.msra.mxu0 0.0
    %225 = vmatprep.subr.mxu0 0.0
    %226 = vmatpush1.msra.mxu0 0.0
    %227 = vmatprep.subr.mxu0 0.0
    %228 = vmatpush1.msra.mxu0 0.0
    %229 = vmatprep.subr.mxu0 0.0
    %230 = vmatpush1.msra.mxu0 0.0
    %231 = vmatprep.subr.mxu0 0.0
    %232 = vmatpush1.msra.mxu0 0.0
    %233 = vmatprep.subr.mxu0 0.0
    %234 = vmatpush1.msra.mxu0 0.0
    %235 = vmatprep.subr.mxu0 0.0
    %236 = vmatpush1.msra.mxu0 0.0
    %237 = vmatprep.subr.mxu0 0.0
    %238 = vmatpush1.msra.mxu0 0.0
    %239 = vmatprep.subr.mxu0 0.0
    %240 = vmatpush1.msra.mxu0 0.0
    %241 = vmatprep.subr.mxu0 0.0
    %242 = vmatpush1.msra.mxu0 0.0
    %243 = vmatprep.subr.mxu0 0.0
    %244 = vmatpush1.msra.mxu0 0.0
    %245 = vmatprep.subr.mxu0 0.0
    %246 = vmatpush1.msra.mxu0 0.0
    %247 = vmatprep.subr.mxu0 0.0
    %248 = vmatpush1.msra.mxu0 0.0
    %249 = vmatprep.subr.mxu0 0.0
    %250 = vmatpush1.msra.mxu0 0.0
    %251 = vmatprep.mubr.f32.mxu0 0.0
    %252 = vmatmul.mubr.f32.gmra.mrb[0].mxu0 %v185
    %v253 = vpop.f32.mrb[0].mxu0
    %v254 = vadd.f32 %v180, %v253
    %v255 = vpop.f32.mrb[0].mxu0
    %256 = vdwg.mxu0
    %v258 = vlaneseq
    %v259 = vshrl.u32 %v258, 7
    %v260 = vsub.s32 0, %v259
    %v261 = vrot.slane %v93, %v260
    %v263 = vadd.f32 %v254, %v261
    %v264 = vtanh.pop %v263
    %265 = vmatprep.subr.mxu0 0.0
    %266 = vmatpush1.msra.mxu0 %v98
    %267 = vmatprep.subr.mxu0 0.0
    %268 = vmatpush1.msra.mxu0 %v99
    %269 = vmatprep.subr.mxu0 0.0
    %270 = vmatpush1.msra.mxu0 %v100
    %271 = vmatprep.subr.mxu0 0.0
    %272 = vmatpush1.msra.mxu0 %v101
    %273 = vmatprep.subr.mxu0 0.0
    %274 = vmatpush1.msra.mxu0 0.0
    %275 = vmatprep.subr.mxu0 0.0
    %276 = vmatpush1.msra.mxu0 0.0
    %277 = vmatprep.subr.mxu0 0.0
    %278 = vmatpush1.msra.mxu0 0.0
    %279 = vmatprep.subr.mxu0 0.0
    %280 = vmatpush1.msra.mxu0 0.0
    %281 = vmatprep.subr.mxu0 0.0
    %282 = vmatpush1.msra.mxu0 0.0
    %283 = vmatprep.subr.mxu0 0.0
    %284 = vmatpush1.msra.mxu0 0.0
    %285 = vmatprep.subr.mxu0 0.0
    %286 = vmatpush1.msra.mxu0 0.0
    %287 = vmatprep.subr.mxu0 0.0
    %288 = vmatpush1.msra.mxu0 0.0
    %289 = vmatprep.subr.mxu0 0.0
    %290 = vmatpush1.msra.mxu0 0.0
    %291 = vmatprep.subr.mxu0 0.0
    %292 = vmatpush1.msra.mxu0 0.0
    %293 = vmatprep.subr.mxu0 0.0
    %294 = vmatpush1.msra.mxu0 0.0
    %295 = vmatprep.subr.mxu0 0.0
    %296 = vmatpush1.msra.mxu0 0.0
    %297 = vmatprep.subr.mxu0 0.0
    %298 = vmatpush1.msra.mxu0 0.0
    %299 = vmatprep.subr.mxu0 0.0
    %300 = vmatpush1.msra.mxu0 0.0
    %301 = vmatprep.subr.mxu0 0.0
    %302 = vmatpush1.msra.mxu0 0.0
    %303 = vmatprep.subr.mxu0 0.0
    %304 = vmatpush1.msra.mxu0 0.0
    %305 = vmatprep.subr.mxu0 0.0
    %306 = vmatpush1.msra.mxu0 0.0
    %307 = vmatprep.subr.mxu0 0.0
    %308 = vmatpush1.msra.mxu0 0.0
    %309 = vmatprep.subr.mxu0 0.0
    %310 = vmatpush1.msra.mxu0 0.0
    %311 = vmatprep.subr.mxu0 0.0
    %312 = vmatpush1.msra.mxu0 0.0
    %313 = vmatprep.subr.mxu0 0.0
    %314 = vmatpush1.msra.mxu0 0.0
    %315 = vmatprep.subr.mxu0 0.0
    %316 = vmatpush1.msra.mxu0 0.0
    %317 = vmatprep.subr.mxu0 0.0
    %318 = vmatpush1.msra.mxu0 0.0
    %319 = vmatprep.subr.mxu0 0.0
    %320 = vmatpush1.msra.mxu0 0.0
    %321 = vmatprep.subr.mxu0 0.0
    %322 = vmatpush1.msra.mxu0 0.0
    %323 = vmatprep.subr.mxu0 0.0
    %324 = vmatpush1.msra.mxu0 0.0
    %325 = vmatprep.subr.mxu0 0.0
    %326 = vmatpush1.msra.mxu0 0.0
    %327 = vmatprep.subr.mxu0 0.0
    %328 = vmatpush1.msra.mxu0 0.0
    %329 = vmatprep.mubr.f32.mxu0 0.0
    %330 = vmatmul.mubr.f32.gmra.mrb[0].mxu0 %v111
    %v331 = vpop.f32.mrb[0].mxu0
    %v332 = vadd.f32 0.0, %v331
    %v333 = vpop.f32.mrb[0].mxu0
    %334 = vdwg.mxu0
    %v336 = vsel %vm109, %v264, 0
    %338 = vmatprep.subr.mxu0 0.0
    %339 = vmatpush1.msra.mxu0 %v94
    %340 = vmatprep.subr.mxu0 0.0
    %341 = vmatpush1.msra.mxu0 %v95
    %342 = vmatprep.subr.mxu0 0.0
    %343 = vmatpush1.msra.mxu0 %v96
    %344 = vmatprep.subr.mxu0 0.0
    %345 = vmatpush1.msra.mxu0 %v97
    %346 = vmatprep.subr.mxu0 0.0
    %347 = vmatpush1.msra.mxu0 0.0
    %348 = vmatprep.subr.mxu0 0.0
    %349 = vmatpush1.msra.mxu0 0.0
    %350 = vmatprep.subr.mxu0 0.0
    %351 = vmatpush1.msra.mxu0 0.0
    %352 = vmatprep.subr.mxu0 0.0
    %353 = vmatpush1.msra.mxu0 0.0
    %354 = vmatprep.subr.mxu0 0.0
    %355 = vmatpush1.msra.mxu0 0.0
    %356 = vmatprep.subr.mxu0 0.0
    %357 = vmatpush1.msra.mxu0 0.0
    %358 = vmatprep.subr.mxu0 0.0
    %359 = vmatpush1.msra.mxu0 0.0
    %360 = vmatprep.subr.mxu0 0.0
    %361 = vmatpush1.msra.mxu0 0.0
    %362 = vmatprep.subr.mxu0 0.0
    %363 = vmatpush1.msra.mxu0 0.0
    %364 = vmatprep.subr.mxu0 0.0
    %365 = vmatpush1.msra.mxu0 0.0
    %366 = vmatprep.subr.mxu0 0.0
    %367 = vmatpush1.msra.mxu0 0.0
    %368 = vmatprep.subr.mxu0 0.0
    %369 = vmatpush1.msra.mxu0 0.0
    %370 = vmatprep.subr.mxu0 0.0
    %371 = vmatpush1.msra.mxu0 0.0
    %372 = vmatprep.subr.mxu0 0.0
    %373 = vmatpush1.msra.mxu0 0.0
    %374 = vmatprep.subr.mxu0 0.0
    %375 = vmatpush1.msra.mxu0 0.0
    %376 = vmatprep.subr.mxu0 0.0
    %377 = vmatpush1.msra.mxu0 0.0
    %378 = vmatprep.subr.mxu0 0.0
    %379 = vmatpush1.msra.mxu0 0.0
    %380 = vmatprep.subr.mxu0 0.0
    %381 = vmatpush1.msra.mxu0 0.0
    %382 = vmatprep.subr.mxu0 0.0
    %383 = vmatpush1.msra.mxu0 0.0
    %384 = vmatprep.subr.mxu0 0.0
    %385 = vmatpush1.msra.mxu0 0.0
    %386 = vmatprep.subr.mxu0 0.0
    %387 = vmatpush1.msra.mxu0 0.0
    %388 = vmatprep.subr.mxu0 0.0
    %389 = vmatpush1.msra.mxu0 0.0
    %390 = vmatprep.subr.mxu0 0.0
    %391 = vmatpush1.msra.mxu0 0.0
    %392 = vmatprep.subr.mxu0 0.0
    %393 = vmatpush1.msra.mxu0 0.0
    %394 = vmatprep.subr.mxu0 0.0
    %395 = vmatpush1.msra.mxu0 0.0
    %396 = vmatprep.subr.mxu0 0.0
    %397 = vmatpush1.msra.mxu0 0.0
    %398 = vmatprep.subr.mxu0 0.0
    %399 = vmatpush1.msra.mxu0 0.0
    %400 = vmatprep.subr.mxu0 0.0
    %401 = vmatpush1.msra.mxu0 0.0
    %402 = vmatprep.mubr.f32.mxu0 0.0
    %403 = vmatmul.mubr.f32.gmra.mrb[0].mxu0 %v336
    %v404 = vpop.f32.mrb[0].mxu0
    %v405 = vadd.f32 %v332, %v404
    %v406 = vpop.f32.mrb[0].mxu0
    %407 = vdwg.mxu0
    %v409 = vlaneseq
    %v410 = vshrl.u32 %v409, 7
    %v411 = vsub.s32 0, %v410
    %v412 = vrot.slane %v102, %v411
    %v414 = vadd.f32 %v405, %v412
    %v415 = vtanh.pop %v414
    %v417 = vlaneseq
    %v418 = vshrl.u32 %v417, 7
    %v419 = vsub.s32 0, %v418
    %v420 = vrot.slane %v107, %v419
    %v423 = vsel %vm109, %v415, 0
    %425 = vmatprep.subr.mxu0 0.0
    %426 = vmatpush1.msra.mxu0 %v103
    %427 = vmatprep.subr.mxu0 0.0
    %428 = vmatpush1.msra.mxu0 %v104
    %429 = vmatprep.subr.mxu0 0.0
    %430 = vmatpush1.msra.mxu0 %v105
    %431 = vmatprep.subr.mxu0 0.0
    %432 = vmatpush1.msra.mxu0 %v106
    %433 = vmatprep.subr.mxu0 0.0
    %434 = vmatpush1.msra.mxu0 0.0
    %435 = vmatprep.subr.mxu0 0.0
    %436 = vmatpush1.msra.mxu0 0.0
    %437 = vmatprep.subr.mxu0 0.0
    %438 = vmatpush1.msra.mxu0 0.0
    %439 = vmatprep.subr.mxu0 0.0
    %440 = vmatpush1.msra.mxu0 0.0
    %441 = vmatprep.subr.mxu0 0.0
    %442 = vmatpush1.msra.mxu0 0.0
    %443 = vmatprep.subr.mxu0 0.0
    %444 = vmatpush1.msra.mxu0 0.0
    %445 = vmatprep.subr.mxu0 0.0
    %446 = vmatpush1.msra.mxu0 0.0
    %447 = vmatprep.subr.mxu0 0.0
    %448 = vmatpush1.msra.mxu0 0.0
    %449 = vmatprep.subr.mxu0 0.0
    %450 = vmatpush1.msra.mxu0 0.0
    %451 = vmatprep.subr.mxu0 0.0
    %452 = vmatpush1.msra.mxu0 0.0
    %453 = vmatprep.subr.mxu0 0.0
    %454 = vmatpush1.msra.mxu0 0.0
    %455 = vmatprep.subr.mxu0 0.0
    %456 = vmatpush1.msra.mxu0 0.0
    %457 = vmatprep.subr.mxu0 0.0
    %458 = vmatpush1.msra.mxu0 0.0
    %459 = vmatprep.subr.mxu0 0.0
    %460 = vmatpush1.msra.mxu0 0.0
    %461 = vmatprep.subr.mxu0 0.0
    %462 = vmatpush1.msra.mxu0 0.0
    %463 = vmatprep.subr.mxu0 0.0
    %464 = vmatpush1.msra.mxu0 0.0
    %465 = vmatprep.subr.mxu0 0.0
    %466 = vmatpush1.msra.mxu0 0.0
    %467 = vmatprep.subr.mxu0 0.0
    %468 = vmatpush1.msra.mxu0 0.0
    %469 = vmatprep.subr.mxu0 0.0
    %470 = vmatpush1.msra.mxu0 0.0
    %471 = vmatprep.subr.mxu0 0.0
    %472 = vmatpush1.msra.mxu0 0.0
    %473 = vmatprep.subr.mxu0 0.0
    %474 = vmatpush1.msra.mxu0 0.0
    %475 = vmatprep.subr.mxu0 0.0
    %476 = vmatpush1.msra.mxu0 0.0
    %477 = vmatprep.subr.mxu0 0.0
    %478 = vmatpush1.msra.mxu0 0.0
    %479 = vmatprep.subr.mxu0 0.0
    %480 = vmatpush1.msra.mxu0 0.0
    %481 = vmatprep.subr.mxu0 0.0
    %482 = vmatpush1.msra.mxu0 0.0
    %483 = vmatprep.subr.mxu0 0.0
    %484 = vmatpush1.msra.mxu0 0.0
    %485 = vmatprep.subr.mxu0 0.0
    %486 = vmatpush1.msra.mxu0 0.0
    %487 = vmatprep.subr.mxu0 0.0
    %488 = vmatpush1.msra.mxu0 0.0
    %489 = vmatprep.mubr.f32.mxu0 0.0
    %490 = vmatmul.mubr.f32.gmra.mrb[0].mxu0 %v423
    %v491 = vpop.f32.mrb[0].mxu0
    %v492 = vadd.f32 %v420, %v491
    %v493 = vpop.f32.mrb[0].mxu0
    %494 = vdwg.mxu0
    %vm495 = vcmask 25600
    %496 = vst.msk [vmem:[%s9] sm:$0x3] %vm495, %v492
    %s497 = scalar_lea.vmem [#allocation2], 2
    %v498 = vld [vmem:[%s497] sm:$0x3]
    %499 = vmatprep.subr.mxu0 0.0
    %500 = vmatpush1.msra.mxu0 %v89
    %501 = vmatprep.subr.mxu0 0.0
    %502 = vmatpush1.msra.mxu0 %v90
    %503 = vmatprep.subr.mxu0 0.0
    %504 = vmatpush1.msra.mxu0 %v91
    %505 = vmatprep.subr.mxu0 0.0
    %506 = vmatpush1.msra.mxu0 %v92
    %507 = vmatprep.subr.mxu0 0.0
    %508 = vmatpush1.msra.mxu0 0.0
    %509 = vmatprep.subr.mxu0 0.0
    %510 = vmatpush1.msra.mxu0 0.0
    %511 = vmatprep.subr.mxu0 0.0
    %512 = vmatpush1.msra.mxu0 0.0
    %513 = vmatprep.subr.mxu0 0.0
    %514 = vmatpush1.msra.mxu0 0.0
    %515 = vmatprep.subr.mxu0 0.0
    %516 = vmatpush1.msra.mxu0 0.0
    %517 = vmatprep.subr.mxu0 0.0
    %518 = vmatpush1.msra.mxu0 0.0
    %519 = vmatprep.subr.mxu0 0.0
    %520 = vmatpush1.msra.mxu0 0.0
    %521 = vmatprep.subr.mxu0 0.0
    %522 = vmatpush1.msra.mxu0 0.0
    %523 = vmatprep.subr.mxu0 0.0
    %524 = vmatpush1.msra.mxu0 0.0
    %525 = vmatprep.subr.mxu0 0.0
    %526 = vmatpush1.msra.mxu0 0.0
    %527 = vmatprep.subr.mxu0 0.0
    %528 = vmatpush1.msra.mxu0 0.0
    %529 = vmatprep.subr.mxu0 0.0
    %530 = vmatpush1.msra.mxu0 0.0
    %531 = vmatprep.subr.mxu0 0.0
    %532 = vmatpush1.msra.mxu0 0.0
    %533 = vmatprep.subr.mxu0 0.0
    %534 = vmatpush1.msra.mxu0 0.0
    %535 = vmatprep.subr.mxu0 0.0
    %536 = vmatpush1.msra.mxu0 0.0
    %537 = vmatprep.subr.mxu0 0.0
    %538 = vmatpush1.msra.mxu0 0.0
    %539 = vmatprep.subr.mxu0 0.0
    %540 = vmatpush1.msra.mxu0 0.0
    %541 = vmatprep.subr.mxu0 0.0
    %542 = vmatpush1.msra.mxu0 0.0
    %543 = vmatprep.subr.mxu0 0.0
    %544 = vmatpush1.msra.mxu0 0.0
    %545 = vmatprep.subr.mxu0 0.0
    %546 = vmatpush1.msra.mxu0 0.0
    %547 = vmatprep.subr.mxu0 0.0
    %548 = vmatpush1.msra.mxu0 0.0
    %549 = vmatprep.subr.mxu0 0.0
    %550 = vmatpush1.msra.mxu0 0.0
    %551 = vmatprep.subr.mxu0 0.0
    %552 = vmatpush1.msra.mxu0 0.0
    %553 = vmatprep.subr.mxu0 0.0
    %554 = vmatpush1.msra.mxu0 0.0
    %555 = vmatprep.subr.mxu0 0.0
    %556 = vmatpush1.msra.mxu0 0.0
    %557 = vmatprep.subr.mxu0 0.0
    %558 = vmatpush1.msra.mxu0 0.0
    %559 = vmatprep.subr.mxu0 0.0
    %560 = vmatpush1.msra.mxu0 0.0
    %561 = vmatprep.subr.mxu0 0.0
    %562 = vmatpush1.msra.mxu0 0.0
    %563 = vmatprep.mubr.f32.mxu0 0.0
    %564 = vmatmul.mubr.f32.gmra.mrb[0].mxu0 %v336
    %v565 = vpop.f32.mrb[0].mxu0
    %v566 = vadd.f32 0.0, %v565
    %v567 = vpop.f32.mrb[0].mxu0
    %568 = vdwg.mxu0
    %v570 = vsel %vm183, %v498, 0
    %572 = vmatprep.subr.mxu0 0.0
    %573 = vmatpush1.msra.mxu0 %v87
    %574 = vmatprep.subr.mxu0 0.0
    %575 = vmatpush1.msra.mxu0 %v88
    %576 = vmatprep.subr.mxu0 0.0
    %577 = vmatpush1.msra.mxu0 0.0
    %578 = vmatprep.subr.mxu0 0.0
    %579 = vmatpush1.msra.mxu0 0.0
    %580 = vmatprep.subr.mxu0 0.0
    %581 = vmatpush1.msra.mxu0 0.0
    %582 = vmatprep.subr.mxu0 0.0
    %583 = vmatpush1.msra.mxu0 0.0
    %584 = vmatprep.subr.mxu0 0.0
    %585 = vmatpush1.msra.mxu0 0.0
    %586 = vmatprep.subr.mxu0 0.0
    %587 = vmatpush1.msra.mxu0 0.0
    %588 = vmatprep.subr.mxu0 0.0
    %589 = vmatpush1.msra.mxu0 0.0
    %590 = vmatprep.subr.mxu0 0.0
    %591 = vmatpush1.msra.mxu0 0.0
    %592 = vmatprep.subr.mxu0 0.0
    %593 = vmatpush1.msra.mxu0 0.0
    %594 = vmatprep.subr.mxu0 0.0
    %595 = vmatpush1.msra.mxu0 0.0
    %596 = vmatprep.subr.mxu0 0.0
    %597 = vmatpush1.msra.mxu0 0.0
    %598 = vmatprep.subr.mxu0 0.0
    %599 = vmatpush1.msra.mxu0 0.0
    %600 = vmatprep.subr.mxu0 0.0
    %601 = vmatpush1.msra.mxu0 0.0
    %602 = vmatprep.subr.mxu0 0.0
    %603 = vmatpush1.msra.mxu0 0.0
    %604 = vmatprep.subr.mxu0 0.0
    %605 = vmatpush1.msra.mxu0 0.0
    %606 = vmatprep.subr.mxu0 0.0
    %607 = vmatpush1.msra.mxu0 0.0
    %608 = vmatprep.subr.mxu0 0.0
    %609 = vmatpush1.msra.mxu0 0.0
    %610 = vmatprep.subr.mxu0 0.0
    %611 = vmatpush1.msra.mxu0 0.0
    %612 = vmatprep.subr.mxu0 0.0
    %613 = vmatpush1.msra.mxu0 0.0
    %614 = vmatprep.subr.mxu0 0.0
    %615 = vmatpush1.msra.mxu0 0.0
    %616 = vmatprep.subr.mxu0 0.0
    %617 = vmatpush1.msra.mxu0 0.0
    %618 = vmatprep.subr.mxu0 0.0
    %619 = vmatpush1.msra.mxu0 0.0
    %620 = vmatprep.subr.mxu0 0.0
    %621 = vmatpush1.msra.mxu0 0.0
    %622 = vmatprep.subr.mxu0 0.0
    %623 = vmatpush1.msra.mxu0 0.0
    %624 = vmatprep.subr.mxu0 0.0
    %625 = vmatpush1.msra.mxu0 0.0
    %626 = vmatprep.subr.mxu0 0.0
    %627 = vmatpush1.msra.mxu0 0.0
    %628 = vmatprep.subr.mxu0 0.0
    %629 = vmatpush1.msra.mxu0 0.0
    %630 = vmatprep.subr.mxu0 0.0
    %631 = vmatpush1.msra.mxu0 0.0
    %632 = vmatprep.subr.mxu0 0.0
    %633 = vmatpush1.msra.mxu0 0.0
    %634 = vmatprep.subr.mxu0 0.0
    %635 = vmatpush1.msra.mxu0 0.0
    %636 = vmatprep.mubr.f32.mxu0 0.0
    %637 = vmatmul.mubr.f32.gmra.mrb[0].mxu0 %v570
    %v638 = vpop.f32.mrb[0].mxu0
    %v639 = vadd.f32 %v566, %v638
    %v640 = vpop.f32.mrb[0].mxu0
    %641 = vdwg.mxu0
    %v642 = vadd.f32 %v639, %v261
    %v643 = vtanh.pop %v642
    %644 = vmatprep.subr.mxu0 0.0
    %645 = vmatpush1.msra.mxu0 %v98
    %646 = vmatprep.subr.mxu0 0.0
    %647 = vmatpush1.msra.mxu0 %v99
    %648 = vmatprep.subr.mxu0 0.0
    %649 = vmatpush1.msra.mxu0 %v100
    %650 = vmatprep.subr.mxu0 0.0
    %651 = vmatpush1.msra.mxu0 %v101
    %652 = vmatprep.subr.mxu0 0.0
    %653 = vmatpush1.msra.mxu0 0.0
    %654 = vmatprep.subr.mxu0 0.0
    %655 = vmatpush1.msra.mxu0 0.0
    %656 = vmatprep.subr.mxu0 0.0
    %657 = vmatpush1.msra.mxu0 0.0
    %658 = vmatprep.subr.mxu0 0.0
    %659 = vmatpush1.msra.mxu0 0.0
    %660 = vmatprep.subr.mxu0 0.0
    %661 = vmatpush1.msra.mxu0 0.0
    %662 = vmatprep.subr.mxu0 0.0
    %663 = vmatpush1.msra.mxu0 0.0
    %664 = vmatprep.subr.mxu0 0.0
    %665 = vmatpush1.msra.mxu0 0.0
    %666 = vmatprep.subr.mxu0 0.0
    %667 = vmatpush1.msra.mxu0 0.0
    %668 = vmatprep.subr.mxu0 0.0
    %669 = vmatpush1.msra.mxu0 0.0
    %670 = vmatprep.subr.mxu0 0.0
    %671 = vmatpush1.msra.mxu0 0.0
    %672 = vmatprep.subr.mxu0 0.0
    %673 = vmatpush1.msra.mxu0 0.0
    %674 = vmatprep.subr.mxu0 0.0
    %675 = vmatpush1.msra.mxu0 0.0
    %676 = vmatprep.subr.mxu0 0.0
    %677 = vmatpush1.msra.mxu0 0.0
    %678 = vmatprep.subr.mxu0 0.0
    %679 = vmatpush1.msra.mxu0 0.0
    %680 = vmatprep.subr.mxu0 0.0
    %681 = vmatpush1.msra.mxu0 0.0
    %682 = vmatprep.subr.mxu0 0.0
    %683 = vmatpush1.msra.mxu0 0.0
    %684 = vmatprep.subr.mxu0 0.0
    %685 = vmatpush1.msra.mxu0 0.0
    %686 = vmatprep.subr.mxu0 0.0
    %687 = vmatpush1.msra.mxu0 0.0
    %688 = vmatprep.subr.mxu0 0.0
    %689 = vmatpush1.msra.mxu0 0.0
    %690 = vmatprep.subr.mxu0 0.0
    %691 = vmatpush1.msra.mxu0 0.0
    %692 = vmatprep.subr.mxu0 0.0
    %693 = vmatpush1.msra.mxu0 0.0
    %694 = vmatprep.subr.mxu0 0.0
    %695 = vmatpush1.msra.mxu0 0.0
    %696 = vmatprep.subr.mxu0 0.0
    %697 = vmatpush1.msra.mxu0 0.0
    %698 = vmatprep.subr.mxu0 0.0
    %699 = vmatpush1.msra.mxu0 0.0
    %700 = vmatprep.subr.mxu0 0.0
    %701 = vmatpush1.msra.mxu0 0.0
    %702 = vmatprep.subr.mxu0 0.0
    %703 = vmatpush1.msra.mxu0 0.0
    %704 = vmatprep.subr.mxu0 0.0
    %705 = vmatpush1.msra.mxu0 0.0
    %706 = vmatprep.subr.mxu0 0.0
    %707 = vmatpush1.msra.mxu0 0.0
    %708 = vmatprep.mubr.f32.mxu0 0.0
    %709 = vmatmul.mubr.f32.gmra.mrb[0].mxu0 %v423
    %v710 = vpop.f32.mrb[0].mxu0
    %v711 = vadd.f32 0.0, %v710
    %v712 = vpop.f32.mrb[0].mxu0
    %713 = vdwg.mxu0
    %v715 = vsel %vm109, %v643, 0
    %717 = vmatprep.subr.mxu0 0.0
    %718 = vmatpush1.msra.mxu0 %v94
    %719 = vmatprep.subr.mxu0 0.0
    %720 = vmatpush1.msra.mxu0 %v95
    %721 = vmatprep.subr.mxu0 0.0
    %722 = vmatpush1.msra.mxu0 %v96
    %723 = vmatprep.subr.mxu0 0.0
    %724 = vmatpush1.msra.mxu0 %v97
    %725 = vmatprep.subr.mxu0 0.0
    %726 = vmatpush1.msra.mxu0 0.0
    %727 = vmatprep.subr.mxu0 0.0
    %728 = vmatpush1.msra.mxu0 0.0
    %729 = vmatprep.subr.mxu0 0.0
    %730 = vmatpush1.msra.mxu0 0.0
    %731 = vmatprep.subr.mxu0 0.0
    %732 = vmatpush1.msra.mxu0 0.0
    %733 = vmatprep.subr.mxu0 0.0
    %734 = vmatpush1.msra.mxu0 0.0
    %735 = vmatprep.subr.mxu0 0.0
    %736 = vmatpush1.msra.mxu0 0.0
    %737 = vmatprep.subr.mxu0 0.0
    %738 = vmatpush1.msra.mxu0 0.0
    %739 = vmatprep.subr.mxu0 0.0
    %740 = vmatpush1.msra.mxu0 0.0
    %741 = vmatprep.subr.mxu0 0.0
    %742 = vmatpush1.msra.mxu0 0.0
    %743 = vmatprep.subr.mxu0 0.0
    %744 = vmatpush1.msra.mxu0 0.0
    %745 = vmatprep.subr.mxu0 0.0
    %746 = vmatpush1.msra.mxu0 0.0
    %747 = vmatprep.subr.mxu0 0.0
    %748 = vmatpush1.msra.mxu0 0.0
    %749 = vmatprep.subr.mxu0 0.0
    %750 = vmatpush1.msra.mxu0 0.0
    %751 = vmatprep.subr.mxu0 0.0
    %752 = vmatpush1.msra.mxu0 0.0
    %753 = vmatprep.subr.mxu0 0.0
    %754 = vmatpush1.msra.mxu0 0.0
    %755 = vmatprep.subr.mxu0 0.0
    %756 = vmatpush1.msra.mxu0 0.0
    %757 = vmatprep.subr.mxu0 0.0
    %758 = vmatpush1.msra.mxu0 0.0
    %759 = vmatprep.subr.mxu0 0.0
    %760 = vmatpush1.msra.mxu0 0.0
    %761 = vmatprep.subr.mxu0 0.0
    %762 = vmatpush1.msra.mxu0 0.0
    %763 = vmatprep.subr.mxu0 0.0
    %764 = vmatpush1.msra.mxu0 0.0
    %765 = vmatprep.subr.mxu0 0.0
    %766 = vmatpush1.msra.mxu0 0.0
    %767 = vmatprep.subr.mxu0 0.0
    %768 = vmatpush1.msra.mxu0 0.0
    %769 = vmatprep.subr.mxu0 0.0
    %770 = vmatpush1.msra.mxu0 0.0
    %771 = vmatprep.subr.mxu0 0.0
    %772 = vmatpush1.msra.mxu0 0.0
    %773 = vmatprep.subr.mxu0 0.0
    %774 = vmatpush1.msra.mxu0 0.0
    %775 = vmatprep.subr.mxu0 0.0
    %776 = vmatpush1.msra.mxu0 0.0
    %777 = vmatprep.subr.mxu0 0.0
    %778 = vmatpush1.msra.mxu0 0.0
    %779 = vmatprep.subr.mxu0 0.0
    %780 = vmatpush1.msra.mxu0 0.0
    %781 = vmatprep.mubr.f32.mxu0 0.0
    %782 = vmatmul.mubr.f32.gmra.mrb[0].mxu0 %v715
    %v783 = vpop.f32.mrb[0].mxu0
    %v784 = vadd.f32 %v711, %v783
    %v785 = vpop.f32.mrb[0].mxu0
    %786 = vdwg.mxu0
    %v787 = vadd.f32 %v784, %v412
    %v788 = vtanh.pop %v787
    %v790 = vsel %vm109, %v788, 0
    %792 = vmatprep.subr.mxu0 0.0
    %793 = vmatpush1.msra.mxu0 %v103
    %794 = vmatprep.subr.mxu0 0.0
    %795 = vmatpush1.msra.mxu0 %v104
    %796 = vmatprep.subr.mxu0 0.0
    %797 = vmatpush1.msra.mxu0 %v105
    %798 = vmatprep.subr.mxu0 0.0
    %799 = vmatpush1.msra.mxu0 %v106
    %800 = vmatprep.subr.mxu0 0.0
    %801 = vmatpush1.msra.mxu0 0.0
    %802 = vmatprep.subr.mxu0 0.0
    %803 = vmatpush1.msra.mxu0 0.0
    %804 = vmatprep.subr.mxu0 0.0
    %805 = vmatpush1.msra.mxu0 0.0
    %806 = vmatprep.subr.mxu0 0.0
    %807 = vmatpush1.msra.mxu0 0.0
    %808 = vmatprep.subr.mxu0 0.0
    %809 = vmatpush1.msra.mxu0 0.0
    %810 = vmatprep.subr.mxu0 0.0
    %811 = vmatpush1.msra.mxu0 0.0
    %812 = vmatprep.subr.mxu0 0.0
    %813 = vmatpush1.msra.mxu0 0.0
    %814 = vmatprep.subr.mxu0 0.0
    %815 = vmatpush1.msra.mxu0 0.0
    %816 = vmatprep.subr.mxu0 0.0
    %817 = vmatpush1.msra.mxu0 0.0
    %818 = vmatprep.subr.mxu0 0.0
    %819 = vmatpush1.msra.mxu0 0.0
    %820 = vmatprep.subr.mxu0 0.0
    %821 = vmatpush1.msra.mxu0 0.0
    %822 = vmatprep.subr.mxu0 0.0
    %823 = vmatpush1.msra.mxu0 0.0
    %824 = vmatprep.subr.mxu0 0.0
    %825 = vmatpush1.msra.mxu0 0.0
    %826 = vmatprep.subr.mxu0 0.0
    %827 = vmatpush1.msra.mxu0 0.0
    %828 = vmatprep.subr.mxu0 0.0
    %829 = vmatpush1.msra.mxu0 0.0
    %830 = vmatprep.subr.mxu0 0.0
    %831 = vmatpush1.msra.mxu0 0.0
    %832 = vmatprep.subr.mxu0 0.0
    %833 = vmatpush1.msra.mxu0 0.0
    %834 = vmatprep.subr.mxu0 0.0
    %835 = vmatpush1.msra.mxu0 0.0
    %836 = vmatprep.subr.mxu0 0.0
    %837 = vmatpush1.msra.mxu0 0.0
    %838 = vmatprep.subr.mxu0 0.0
    %839 = vmatpush1.msra.mxu0 0.0
    %840 = vmatprep.subr.mxu0 0.0
    %841 = vmatpush1.msra.mxu0 0.0
    %842 = vmatprep.subr.mxu0 0.0
    %843 = vmatpush1.msra.mxu0 0.0
    %844 = vmatprep.subr.mxu0 0.0
    %845 = vmatpush1.msra.mxu0 0.0
    %846 = vmatprep.subr.mxu0 0.0
    %847 = vmatpush1.msra.mxu0 0.0
    %848 = vmatprep.subr.mxu0 0.0
    %849 = vmatpush1.msra.mxu0 0.0
    %850 = vmatprep.subr.mxu0 0.0
    %851 = vmatpush1.msra.mxu0 0.0
    %852 = vmatprep.subr.mxu0 0.0
    %853 = vmatpush1.msra.mxu0 0.0
    %854 = vmatprep.subr.mxu0 0.0
    %855 = vmatpush1.msra.mxu0 0.0
    %856 = vmatprep.mubr.f32.mxu0 0.0
    %857 = vmatmul.mubr.f32.gmra.mrb[0].mxu0 %v790
    %v858 = vpop.f32.mrb[0].mxu0
    %v859 = vadd.f32 %v420, %v858
    %v860 = vpop.f32.mrb[0].mxu0
    %861 = vdwg.mxu0
    %s862 = scalar_lea.vmem %s9, 2
    %863 = vst.msk [vmem:[%s862] sm:$0x3] %vm495, %v859
    %s864 = scalar_lea.vmem [#allocation2], 4
    %v865 = vld [vmem:[%s864] sm:$0x3]
    %866 = vmatprep.subr.mxu0 0.0
    %867 = vmatpush1.msra.mxu0 %v89
    %868 = vmatprep.subr.mxu0 0.0
    %869 = vmatpush1.msra.mxu0 %v90
    %870 = vmatprep.subr.mxu0 0.0
    %871 = vmatpush1.msra.mxu0 %v91
    %872 = vmatprep.subr.mxu0 0.0
    %873 = vmatpush1.msra.mxu0 %v92
    %874 = vmatprep.subr.mxu0 0.0
    %875 = vmatpush1.msra.mxu0 0.0
    %876 = vmatprep.subr.mxu0 0.0
    %877 = vmatpush1.msra.mxu0 0.0
    %878 = vmatprep.subr.mxu0 0.0
    %879 = vmatpush1.msra.mxu0 0.0
    %880 = vmatprep.subr.mxu0 0.0
    %881 = vmatpush1.msra.mxu0 0.0
    %882 = vmatprep.subr.mxu0 0.0
    %883 = vmatpush1.msra.mxu0 0.0
    %884 = vmatprep.subr.mxu0 0.0
    %885 = vmatpush1.msra.mxu0 0.0
    %886 = vmatprep.subr.mxu0 0.0
    %887 = vmatpush1.msra.mxu0 0.0
    %888 = vmatprep.subr.mxu0 0.0
    %889 = vmatpush1.msra.mxu0 0.0
    %890 = vmatprep.subr.mxu0 0.0
    %891 = vmatpush1.msra.mxu0 0.0
    %892 = vmatprep.subr.mxu0 0.0
    %893 = vmatpush1.msra.mxu0 0.0
    %894 = vmatprep.subr.mxu0 0.0
    %895 = vmatpush1.msra.mxu0 0.0
    %896 = vmatprep.subr.mxu0 0.0
    %897 = vmatpush1.msra.mxu0 0.0
    %898 = vmatprep.subr.mxu0 0.0
    %899 = vmatpush1.msra.mxu0 0.0
    %900 = vmatprep.subr.mxu0 0.0
    %901 = vmatpush1.msra.mxu0 0.0
    %902 = vmatprep.subr.mxu0 0.0
    %903 = vmatpush1.msra.mxu0 0.0
    %904 = vmatprep.subr.mxu0 0.0
    %905 = vmatpush1.msra.mxu0 0.0
    %906 = vmatprep.subr.mxu0 0.0
    %907 = vmatpush1.msra.mxu0 0.0
    %908 = vmatprep.subr.mxu0 0.0
    %909 = vmatpush1.msra.mxu0 0.0
    %910 = vmatprep.subr.mxu0 0.0
    %911 = vmatpush1.msra.mxu0 0.0
    %912 = vmatprep.subr.mxu0 0.0
    %913 = vmatpush1.msra.mxu0 0.0
    %914 = vmatprep.subr.mxu0 0.0
    %915 = vmatpush1.msra.mxu0 0.0
    %916 = vmatprep.subr.mxu0 0.0
    %917 = vmatpush1.msra.mxu0 0.0
    %918 = vmatprep.subr.mxu0 0.0
    %919 = vmatpush1.msra.mxu0 0.0
    %920 = vmatprep.subr.mxu0 0.0
    %921 = vmatpush1.msra.mxu0 0.0
    %922 = vmatprep.subr.mxu0 0.0
    %923 = vmatpush1.msra.mxu0 0.0
    %924 = vmatprep.subr.mxu0 0.0
    %925 = vmatpush1.msra.mxu0 0.0
    %926 = vmatprep.subr.mxu0 0.0
    %927 = vmatpush1.msra.mxu0 0.0
    %928 = vmatprep.subr.mxu0 0.0
    %929 = vmatpush1.msra.mxu0 0.0
    %930 = vmatprep.mubr.f32.mxu0 0.0
    %931 = vmatmul.mubr.f32.gmra.mrb[0].mxu0 %v715
    %v932 = vpop.f32.mrb[0].mxu0
    %v933 = vadd.f32 0.0, %v932
    %v934 = vpop.f32.mrb[0].mxu0
    %935 = vdwg.mxu0
    %v937 = vsel %vm183, %v865, 0
    %939 = vmatprep.subr.mxu0 0.0
    %940 = vmatpush1.msra.mxu0 %v87
    %941 = vmatprep.subr.mxu0 0.0
    %942 = vmatpush1.msra.mxu0 %v88
    %943 = vmatprep.subr.mxu0 0.0
    %944 = vmatpush1.msra.mxu0 0.0
    %945 = vmatprep.subr.mxu0 0.0
    %946 = vmatpush1.msra.mxu0 0.0
    %947 = vmatprep.subr.mxu0 0.0
    %948 = vmatpush1.msra.mxu0 0.0
    %949 = vmatprep.subr.mxu0 0.0
    %950 = vmatpush1.msra.mxu0 0.0
    %951 = vmatprep.subr.mxu0 0.0
    %952 = vmatpush1.msra.mxu0 0.0
    %953 = vmatprep.subr.mxu0 0.0
    %954 = vmatpush1.msra.mxu0 0.0
    %955 = vmatprep.subr.mxu0 0.0
    %956 = vmatpush1.msra.mxu0 0.0
    %957 = vmatprep.subr.mxu0 0.0
    %958 = vmatpush1.msra.mxu0 0.0
    %959 = vmatprep.subr.mxu0 0.0
    %960 = vmatpush1.msra.mxu0 0.0
    %961 = vmatprep.subr.mxu0 0.0
    %962 = vmatpush1.msra.mxu0 0.0
    %963 = vmatprep.subr.mxu0 0.0
    %964 = vmatpush1.msra.mxu0 0.0
    %965 = vmatprep.subr.mxu0 0.0
    %966 = vmatpush1.msra.mxu0 0.0
    %967 = vmatprep.subr.mxu0 0.0
    %968 = vmatpush1.msra.mxu0 0.0
    %969 = vmatprep.subr.mxu0 0.0
    %970 = vmatpush1.msra.mxu0 0.0
    %971 = vmatprep.subr.mxu0 0.0
    %972 = vmatpush1.msra.mxu0 0.0
    %973 = vmatprep.subr.mxu0 0.0
    %974 = vmatpush1.msra.mxu0 0.0
    %975 = vmatprep.subr.mxu0 0.0
    %976 = vmatpush1.msra.mxu0 0.0
    %977 = vmatprep.subr.mxu0 0.0
    %978 = vmatpush1.msra.mxu0 0.0
    %979 = vmatprep.subr.mxu0 0.0
    %980 = vmatpush1.msra.mxu0 0.0
    %981 = vmatprep.subr.mxu0 0.0
    %982 = vmatpush1.msra.mxu0 0.0
    %983 = vmatprep.subr.mxu0 0.0
    %984 = vmatpush1.msra.mxu0 0.0
    %985 = vmatprep.subr.mxu0 0.0
    %986 = vmatpush1.msra.mxu0 0.0
    %987 = vmatprep.subr.mxu0 0.0
    %988 = vmatpush1.msra.mxu0 0.0
    %989 = vmatprep.subr.mxu0 0.0
    %990 = vmatpush1.msra.mxu0 0.0
    %991 = vmatprep.subr.mxu0 0.0
    %992 = vmatpush1.msra.mxu0 0.0
    %993 = vmatprep.subr.mxu0 0.0
    %994 = vmatpush1.msra.mxu0 0.0
    %995 = vmatprep.subr.mxu0 0.0
    %996 = vmatpush1.msra.mxu0 0.0
    %997 = vmatprep.subr.mxu0 0.0
    %998 = vmatpush1.msra.mxu0 0.0
    %999 = vmatprep.subr.mxu0 0.0
    %1000 = vmatpush1.msra.mxu0 0.0
    %1001 = vmatprep.subr.mxu0 0.0
    %1002 = vmatpush1.msra.mxu0 0.0
    %1003 = vmatprep.mubr.f32.mxu0 0.0
    %1004 = vmatmul.mubr.f32.gmra.mrb[0].mxu0 %v937
    %v1005 = vpop.f32.mrb[0].mxu0
    %v1006 = vadd.f32 %v933, %v1005
    %v1007 = vpop.f32.mrb[0].mxu0
    %1008 = vdwg.mxu0
    %v1009 = vadd.f32 %v1006, %v261
    %v1010 = vtanh.pop %v1009
    %1011 = vmatprep.subr.mxu0 0.0
    %1012 = vmatpush1.msra.mxu0 %v98
    %1013 = vmatprep.subr.mxu0 0.0
    %1014 = vmatpush1.msra.mxu0 %v99
    %1015 = vmatprep.subr.mxu0 0.0
    %1016 = vmatpush1.msra.mxu0 %v100
    %1017 = vmatprep.subr.mxu0 0.0
    %1018 = vmatpush1.msra.mxu0 %v101
    %1019 = vmatprep.subr.mxu0 0.0
    %1020 = vmatpush1.msra.mxu0 0.0
    %1021 = vmatprep.subr.mxu0 0.0
    %1022 = vmatpush1.msra.mxu0 0.0
    %1023 = vmatprep.subr.mxu0 0.0
    %1024 = vmatpush1.msra.mxu0 0.0
    %1025 = vmatprep.subr.mxu0 0.0
    %1026 = vmatpush1.msra.mxu0 0.0
    %1027 = vmatprep.subr.mxu0 0.0
    %1028 = vmatpush1.msra.mxu0 0.0
    %1029 = vmatprep.subr.mxu0 0.0
    %1030 = vmatpush1.msra.mxu0 0.0
    %1031 = vmatprep.subr.mxu0 0.0
    %1032 = vmatpush1.msra.mxu0 0.0
    %1033 = vmatprep.subr.mxu0 0.0
    %1034 = vmatpush1.msra.mxu0 0.0
    %1035 = vmatprep.subr.mxu0 0.0
    %1036 = vmatpush1.msra.mxu0 0.0
    %1037 = vmatprep.subr.mxu0 0.0
    %1038 = vmatpush1.msra.mxu0 0.0
    %1039 = vmatprep.subr.mxu0 0.0
    %1040 = vmatpush1.msra.mxu0 0.0
    %1041 = vmatprep.subr.mxu0 0.0
    %1042 = vmatpush1.msra.mxu0 0.0
    %1043 = vmatprep.subr.mxu0 0.0
    %1044 = vmatpush1.msra.mxu0 0.0
    %1045 = vmatprep.subr.mxu0 0.0
    %1046 = vmatpush1.msra.mxu0 0.0
    %1047 = vmatprep.subr.mxu0 0.0
    %1048 = vmatpush1.msra.mxu0 0.0
    %1049 = vmatprep.subr.mxu0 0.0
    %1050 = vmatpush1.msra.mxu0 0.0
    %1051 = vmatprep.subr.mxu0 0.0
    %1052 = vmatpush1.msra.mxu0 0.0
    %1053 = vmatprep.subr.mxu0 0.0
    %1054 = vmatpush1.msra.mxu0 0.0
    %1055 = vmatprep.subr.mxu0 0.0
    %1056 = vmatpush1.msra.mxu0 0.0
    %1057 = vmatprep.subr.mxu0 0.0
    %1058 = vmatpush1.msra.mxu0 0.0
    %1059 = vmatprep.subr.mxu0 0.0
    %1060 = vmatpush1.msra.mxu0 0.0
    %1061 = vmatprep.subr.mxu0 0.0
    %1062 = vmatpush1.msra.mxu0 0.0
    %1063 = vmatprep.subr.mxu0 0.0
    %1064 = vmatpush1.msra.mxu0 0.0
    %1065 = vmatprep.subr.mxu0 0.0
    %1066 = vmatpush1.msra.mxu0 0.0
    %1067 = vmatprep.subr.mxu0 0.0
    %1068 = vmatpush1.msra.mxu0 0.0
    %1069 = vmatprep.subr.mxu0 0.0
    %1070 = vmatpush1.msra.mxu0 0.0
    %1071 = vmatprep.subr.mxu0 0.0
    %1072 = vmatpush1.msra.mxu0 0.0
    %1073 = vmatprep.subr.mxu0 0.0
    %1074 = vmatpush1.msra.mxu0 0.0
    %1075 = vmatprep.mubr.f32.mxu0 0.0
    %1076 = vmatmul.mubr.f32.gmra.mrb[0].mxu0 %v790
    %v1077 = vpop.f32.mrb[0].mxu0
    %v1078 = vadd.f32 0.0, %v1077
    %v1079 = vpop.f32.mrb[0].mxu0
    %1080 = vdwg.mxu0
    %v1082 = vsel %vm109, %v1010, 0
    %1084 = vmatprep.subr.mxu0 0.0
    %1085 = vmatpush1.msra.mxu0 %v94
    %1086 = vmatprep.subr.mxu0 0.0
    %1087 = vmatpush1.msra.mxu0 %v95
    %1088 = vmatprep.subr.mxu0 0.0
    %1089 = vmatpush1.msra.mxu0 %v96
    %1090 = vmatprep.subr.mxu0 0.0
    %1091 = vmatpush1.msra.mxu0 %v97
    %1092 = vmatprep.subr.mxu0 0.0
    %1093 = vmatpush1.msra.mxu0 0.0
    %1094 = vmatprep.subr.mxu0 0.0
    %1095 = vmatpush1.msra.mxu0 0.0
    %1096 = vmatprep.subr.mxu0 0.0
    %1097 = vmatpush1.msra.mxu0 0.0
    %1098 = vmatprep.subr.mxu0 0.0
    %1099 = vmatpush1.msra.mxu0 0.0
    %1100 = vmatprep.subr.mxu0 0.0
    %1101 = vmatpush1.msra.mxu0 0.0
    %1102 = vmatprep.subr.mxu0 0.0
    %1103 = vmatpush1.msra.mxu0 0.0
    %1104 = vmatprep.subr.mxu0 0.0
    %1105 = vmatpush1.msra.mxu0 0.0
    %1106 = vmatprep.subr.mxu0 0.0
    %1107 = vmatpush1.msra.mxu0 0.0
    %1108 = vmatprep.subr.mxu0 0.0
    %1109 = vmatpush1.msra.mxu0 0.0
    %1110 = vmatprep.subr.mxu0 0.0
    %1111 = vmatpush1.msra.mxu0 0.0
    %1112 = vmatprep.subr.mxu0 0.0
    %1113 = vmatpush1.msra.mxu0 0.0
    %1114 = vmatprep.subr.mxu0 0.0
    %1115 = vmatpush1.msra.mxu0 0.0
    %1116 = vmatprep.subr.mxu0 0.0
    %1117 = vmatpush1.msra.mxu0 0.0
    %1118 = vmatprep.subr.mxu0 0.0
    %1119 = vmatpush1.msra.mxu0 0.0
    %1120 = vmatprep.subr.mxu0 0.0
    %1121 = vmatpush1.msra.mxu0 0.0
    %1122 = vmatprep.subr.mxu0 0.0
    %1123 = vmatpush1.msra.mxu0 0.0
    %1124 = vmatprep.subr.mxu0 0.0
    %1125 = vmatpush1.msra.mxu0 0.0
    %1126 = vmatprep.subr.mxu0 0.0
    %1127 = vmatpush1.msra.mxu0 0.0
    %1128 = vmatprep.subr.mxu0 0.0
    %1129 = vmatpush1.msra.mxu0 0.0
    %1130 = vmatprep.subr.mxu0 0.0
    %1131 = vmatpush1.msra.mxu0 0.0
    %1132 = vmatprep.subr.mxu0 0.0
    %1133 = vmatpush1.msra.mxu0 0.0
    %1134 = vmatprep.subr.mxu0 0.0
    %1135 = vmatpush1.msra.mxu0 0.0
    %1136 = vmatprep.subr.mxu0 0.0
    %1137 = vmatpush1.msra.mxu0 0.0
    %1138 = vmatprep.subr.mxu0 0.0
    %1139 = vmatpush1.msra.mxu0 0.0
    %1140 = vmatprep.subr.mxu0 0.0
    %1141 = vmatpush1.msra.mxu0 0.0
    %1142 = vmatprep.subr.mxu0 0.0
    %1143 = vmatpush1.msra.mxu0 0.0
    %1144 = vmatprep.subr.mxu0 0.0
    %1145 = vmatpush1.msra.mxu0 0.0
    %1146 = vmatprep.subr.mxu0 0.0
    %1147 = vmatpush1.msra.mxu0 0.0
    %1148 = vmatprep.mubr.f32.mxu0 0.0
    %1149 = vmatmul.mubr.f32.gmra.mrb[0].mxu0 %v1082
    %v1150 = vpop.f32.mrb[0].mxu0
    %v1151 = vadd.f32 %v1078, %v1150
    %v1152 = vpop.f32.mrb[0].mxu0
    %1153 = vdwg.mxu0
    %v1154 = vadd.f32 %v1151, %v412
    %v1155 = vtanh.pop %v1154
    %v1157 = vsel %vm109, %v1155, 0
    %1159 = vmatprep.subr.mxu0 0.0
    %1160 = vmatpush1.msra.mxu0 %v103
    %1161 = vmatprep.subr.mxu0 0.0
    %1162 = vmatpush1.msra.mxu0 %v104
    %1163 = vmatprep.subr.mxu0 0.0
    %1164 = vmatpush1.msra.mxu0 %v105
    %1165 = vmatprep.subr.mxu0 0.0
    %1166 = vmatpush1.msra.mxu0 %v106
    %1167 = vmatprep.subr.mxu0 0.0
    %1168 = vmatpush1.msra.mxu0 0.0
    %1169 = vmatprep.subr.mxu0 0.0
    %1170 = vmatpush1.msra.mxu0 0.0
    %1171 = vmatprep.subr.mxu0 0.0
    %1172 = vmatpush1.msra.mxu0 0.0
    %1173 = vmatprep.subr.mxu0 0.0
    %1174 = vmatpush1.msra.mxu0 0.0
    %1175 = vmatprep.subr.mxu0 0.0
    %1176 = vmatpush1.msra.mxu0 0.0
    %1177 = vmatprep.subr.mxu0 0.0
    %1178 = vmatpush1.msra.mxu0 0.0
    %1179 = vmatprep.subr.mxu0 0.0
    %1180 = vmatpush1.msra.mxu0 0.0
    %1181 = vmatprep.subr.mxu0 0.0
    %1182 = vmatpush1.msra.mxu0 0.0
    %1183 = vmatprep.subr.mxu0 0.0
    %1184 = vmatpush1.msra.mxu0 0.0
    %1185 = vmatprep.subr.mxu0 0.0
    %1186 = vmatpush1.msra.mxu0 0.0
    %1187 = vmatprep.subr.mxu0 0.0
    %1188 = vmatpush1.msra.mxu0 0.0
    %1189 = vmatprep.subr.mxu0 0.0
    %1190 = vmatpush1.msra.mxu0 0.0
    %1191 = vmatprep.subr.mxu0 0.0
    %1192 = vmatpush1.msra.mxu0 0.0
    %1193 = vmatprep.subr.mxu0 0.0
    %1194 = vmatpush1.msra.mxu0 0.0
    %1195 = vmatprep.subr.mxu0 0.0
    %1196 = vmatpush1.msra.mxu0 0.0
    %1197 = vmatprep.subr.mxu0 0.0
    %1198 = vmatpush1.msra.mxu0 0.0
    %1199 = vmatprep.subr.mxu0 0.0
    %1200 = vmatpush1.msra.mxu0 0.0
    %1201 = vmatprep.subr.mxu0 0.0
    %1202 = vmatpush1.msra.mxu0 0.0
    %1203 = vmatprep.subr.mxu0 0.0
    %1204 = vmatpush1.msra.mxu0 0.0
    %1205 = vmatprep.subr.mxu0 0.0
    %1206 = vmatpush1.msra.mxu0 0.0
    %1207 = vmatprep.subr.mxu0 0.0
    %1208 = vmatpush1.msra.mxu0 0.0
    %1209 = vmatprep.subr.mxu0 0.0
    %1210 = vmatpush1.msra.mxu0 0.0
    %1211 = vmatprep.subr.mxu0 0.0
    %1212 = vmatpush1.msra.mxu0 0.0
    %1213 = vmatprep.subr.mxu0 0.0
    %1214 = vmatpush1.msra.mxu0 0.0
    %1215 = vmatprep.subr.mxu0 0.0
    %1216 = vmatpush1.msra.mxu0 0.0
    %1217 = vmatprep.subr.mxu0 0.0
    %1218 = vmatpush1.msra.mxu0 0.0
    %1219 = vmatprep.subr.mxu0 0.0
    %1220 = vmatpush1.msra.mxu0 0.0
    %1221 = vmatprep.subr.mxu0 0.0
    %1222 = vmatpush1.msra.mxu0 0.0
    %1223 = vmatprep.mubr.f32.mxu0 0.0
    %1224 = vmatmul.mubr.f32.gmra.mrb[0].mxu0 %v1157
    %v1225 = vpop.f32.mrb[0].mxu0
    %v1226 = vadd.f32 %v420, %v1225
    %v1227 = vpop.f32.mrb[0].mxu0
    %1228 = vdwg.mxu0
    %s1229 = scalar_lea.vmem %s9, 4
    %1230 = vst.msk [vmem:[%s1229] sm:$0x3] %vm495, %v1226
    %s1231 = scalar_lea.vmem [#allocation2], 6
    %v1232 = vld [vmem:[%s1231] sm:$0x3]
    %1233 = vmatprep.subr.mxu0 0.0
    %1234 = vmatpush1.msra.mxu0 %v89
    %1235 = vmatprep.subr.mxu0 0.0
    %1236 = vmatpush1.msra.mxu0 %v90
    %1237 = vmatprep.subr.mxu0 0.0
    %1238 = vmatpush1.msra.mxu0 %v91
    %1239 = vmatprep.subr.mxu0 0.0
    %1240 = vmatpush1.msra.mxu0 %v92
    %1241 = vmatprep.subr.mxu0 0.0
    %1242 = vmatpush1.msra.mxu0 0.0
    %1243 = vmatprep.subr.mxu0 0.0
    %1244 = vmatpush1.msra.mxu0 0.0
    %1245 = vmatprep.subr.mxu0 0.0
    %1246 = vmatpush1.msra.mxu0 0.0
    %1247 = vmatprep.subr.mxu0 0.0
    %1248 = vmatpush1.msra.mxu0 0.0
    %1249 = vmatprep.subr.mxu0 0.0
    %1250 = vmatpush1.msra.mxu0 0.0
    %1251 = vmatprep.subr.mxu0 0.0
    %1252 = vmatpush1.msra.mxu0 0.0
    %1253 = vmatprep.subr.mxu0 0.0
    %1254 = vmatpush1.msra.mxu0 0.0
    %1255 = vmatprep.subr.mxu0 0.0
    %1256 = vmatpush1.msra.mxu0 0.0
    %1257 = vmatprep.subr.mxu0 0.0
    %1258 = vmatpush1.msra.mxu0 0.0
    %1259 = vmatprep.subr.mxu0 0.0
    %1260 = vmatpush1.msra.mxu0 0.0
    %1261 = vmatprep.subr.mxu0 0.0
    %1262 = vmatpush1.msra.mxu0 0.0
    %1263 = vmatprep.subr.mxu0 0.0
    %1264 = vmatpush1.msra.mxu0 0.0
    %1265 = vmatprep.subr.mxu0 0.0
    %1266 = vmatpush1.msra.mxu0 0.0
    %1267 = vmatprep.subr.mxu0 0.0
    %1268 = vmatpush1.msra.mxu0 0.0
    %1269 = vmatprep.subr.mxu0 0.0
    %1270 = vmatpush1.msra.mxu0 0.0
    %1271 = vmatprep.subr.mxu0 0.0
    %1272 = vmatpush1.msra.mxu0 0.0
    %1273 = vmatprep.subr.mxu0 0.0
    %1274 = vmatpush1.msra.mxu0 0.0
    %1275 = vmatprep.subr.mxu0 0.0
    %1276 = vmatpush1.msra.mxu0 0.0
    %1277 = vmatprep.subr.mxu0 0.0
    %1278 = vmatpush1.msra.mxu0 0.0
    %1279 = vmatprep.subr.mxu0 0.0
    %1280 = vmatpush1.msra.mxu0 0.0
    %1281 = vmatprep.subr.mxu0 0.0
    %1282 = vmatpush1.msra.mxu0 0.0
    %1283 = vmatprep.subr.mxu0 0.0
    %1284 = vmatpush1.msra.mxu0 0.0
    %1285 = vmatprep.subr.mxu0 0.0
    %1286 = vmatpush1.msra.mxu0 0.0
    %1287 = vmatprep.subr.mxu0 0.0
    %1288 = vmatpush1.msra.mxu0 0.0
    %1289 = vmatprep.subr.mxu0 0.0
    %1290 = vmatpush1.msra.mxu0 0.0
    %1291 = vmatprep.subr.mxu0 0.0
    %1292 = vmatpush1.msra.mxu0 0.0
    %1293 = vmatprep.subr.mxu0 0.0
    %1294 = vmatpush1.msra.mxu0 0.0
    %1295 = vmatprep.subr.mxu0 0.0
    %1296 = vmatpush1.msra.mxu0 0.0
    %1297 = vmatprep.mubr.f32.mxu0 0.0
    %1298 = vmatmul.mubr.f32.gmra.mrb[0].mxu0 %v1082
    %v1299 = vpop.f32.mrb[0].mxu0
    %v1300 = vadd.f32 0.0, %v1299
    %v1301 = vpop.f32.mrb[0].mxu0
    %1302 = vdwg.mxu0
    %v1304 = vsel %vm183, %v1232, 0
    %1306 = vmatprep.subr.mxu0 0.0
    %1307 = vmatpush1.msra.mxu0 %v87
    %1308 = vmatprep.subr.mxu0 0.0
    %1309 = vmatpush1.msra.mxu0 %v88
    %1310 = vmatprep.subr.mxu0 0.0
    %1311 = vmatpush1.msra.mxu0 0.0
    %1312 = vmatprep.subr.mxu0 0.0
    %1313 = vmatpush1.msra.mxu0 0.0
    %1314 = vmatprep.subr.mxu0 0.0
    %1315 = vmatpush1.msra.mxu0 0.0
    %1316 = vmatprep.subr.mxu0 0.0
    %1317 = vmatpush1.msra.mxu0 0.0
    %1318 = vmatprep.subr.mxu0 0.0
    %1319 = vmatpush1.msra.mxu0 0.0
    %1320 = vmatprep.subr.mxu0 0.0
    %1321 = vmatpush1.msra.mxu0 0.0
    %1322 = vmatprep.subr.mxu0 0.0
    %1323 = vmatpush1.msra.mxu0 0.0
    %1324 = vmatprep.subr.mxu0 0.0
    %1325 = vmatpush1.msra.mxu0 0.0
    %1326 = vmatprep.subr.mxu0 0.0
    %1327 = vmatpush1.msra.mxu0 0.0
    %1328 = vmatprep.subr.mxu0 0.0
    %1329 = vmatpush1.msra.mxu0 0.0
    %1330 = vmatprep.subr.mxu0 0.0
    %1331 = vmatpush1.msra.mxu0 0.0
    %1332 = vmatprep.subr.mxu0 0.0
    %1333 = vmatpush1.msra.mxu0 0.0
    %1334 = vmatprep.subr.mxu0 0.0
    %1335 = vmatpush1.msra.mxu0 0.0
    %1336 = vmatprep.subr.mxu0 0.0
    %1337 = vmatpush1.msra.mxu0 0.0
    %1338 = vmatprep.subr.mxu0 0.0
    %1339 = vmatpush1.msra.mxu0 0.0
    %1340 = vmatprep.subr.mxu0 0.0
    %1341 = vmatpush1.msra.mxu0 0.0
    %1342 = vmatprep.subr.mxu0 0.0
    %1343 = vmatpush1.msra.mxu0 0.0
    %1344 = vmatprep.subr.mxu0 0.0
    %1345 = vmatpush1.msra.mxu0 0.0
    %1346 = vmatprep.subr.mxu0 0.0
    %1347 = vmatpush1.msra.mxu0 0.0
    %1348 = vmatprep.subr.mxu0 0.0
    %1349 = vmatpush1.msra.mxu0 0.0
    %1350 = vmatprep.subr.mxu0 0.0
    %1351 = vmatpush1.msra.mxu0 0.0
    %1352 = vmatprep.subr.mxu0 0.0
    %1353 = vmatpush1.msra.mxu0 0.0
    %1354 = vmatprep.subr.mxu0 0.0
    %1355 = vmatpush1.msra.mxu0 0.0
    %1356 = vmatprep.subr.mxu0 0.0
    %1357 = vmatpush1.msra.mxu0 0.0
    %1358 = vmatprep.subr.mxu0 0.0
    %1359 = vmatpush1.msra.mxu0 0.0
    %1360 = vmatprep.subr.mxu0 0.0
    %1361 = vmatpush1.msra.mxu0 0.0
    %1362 = vmatprep.subr.mxu0 0.0
    %1363 = vmatpush1.msra.mxu0 0.0
    %1364 = vmatprep.subr.mxu0 0.0
    %1365 = vmatpush1.msra.mxu0 0.0
    %1366 = vmatprep.subr.mxu0 0.0
    %1367 = vmatpush1.msra.mxu0 0.0
    %1368 = vmatprep.subr.mxu0 0.0
    %1369 = vmatpush1.msra.mxu0 0.0
    %1370 = vmatprep.mubr.f32.mxu0 0.0
    %1371 = vmatmul.mubr.f32.gmra.mrb[0].mxu0 %v1304
    %v1372 = vpop.f32.mrb[0].mxu0
    %v1373 = vadd.f32 %v1300, %v1372
    %v1374 = vpop.f32.mrb[0].mxu0
    %1375 = vdwg.mxu0
    %v1376 = vadd.f32 %v1373, %v261
    %v1377 = vtanh.pop %v1376
    %1378 = vmatprep.subr.mxu0 0.0
    %1379 = vmatpush1.msra.mxu0 %v98
    %1380 = vmatprep.subr.mxu0 0.0
    %1381 = vmatpush1.msra.mxu0 %v99
    %1382 = vmatprep.subr.mxu0 0.0
    %1383 = vmatpush1.msra.mxu0 %v100
    %1384 = vmatprep.subr.mxu0 0.0
    %1385 = vmatpush1.msra.mxu0 %v101
    %1386 = vmatprep.subr.mxu0 0.0
    %1387 = vmatpush1.msra.mxu0 0.0
    %1388 = vmatprep.subr.mxu0 0.0
    %1389 = vmatpush1.msra.mxu0 0.0
    %1390 = vmatprep.subr.mxu0 0.0
    %1391 = vmatpush1.msra.mxu0 0.0
    %1392 = vmatprep.subr.mxu0 0.0
    %1393 = vmatpush1.msra.mxu0 0.0
    %1394 = vmatprep.subr.mxu0 0.0
    %1395 = vmatpush1.msra.mxu0 0.0
    %1396 = vmatprep.subr.mxu0 0.0
    %1397 = vmatpush1.msra.mxu0 0.0
    %1398 = vmatprep.subr.mxu0 0.0
    %1399 = vmatpush1.msra.mxu0 0.0
    %1400 = vmatprep.subr.mxu0 0.0
    %1401 = vmatpush1.msra.mxu0 0.0
    %1402 = vmatprep.subr.mxu0 0.0
    %1403 = vmatpush1.msra.mxu0 0.0
    %1404 = vmatprep.subr.mxu0 0.0
    %1405 = vmatpush1.msra.mxu0 0.0
    %1406 = vmatprep.subr.mxu0 0.0
    %1407 = vmatpush1.msra.mxu0 0.0
    %1408 = vmatprep.subr.mxu0 0.0
    %1409 = vmatpush1.msra.mxu0 0.0
    %1410 = vmatprep.subr.mxu0 0.0
    %1411 = vmatpush1.msra.mxu0 0.0
    %1412 = vmatprep.subr.mxu0 0.0
    %1413 = vmatpush1.msra.mxu0 0.0
    %1414 = vmatprep.subr.mxu0 0.0
    %1415 = vmatpush1.msra.mxu0 0.0
    %1416 = vmatprep.subr.mxu0 0.0
    %1417 = vmatpush1.msra.mxu0 0.0
    %1418 = vmatprep.subr.mxu0 0.0
    %1419 = vmatpush1.msra.mxu0 0.0
    %1420 = vmatprep.subr.mxu0 0.0
    %1421 = vmatpush1.msra.mxu0 0.0
    %1422 = vmatprep.subr.mxu0 0.0
    %1423 = vmatpush1.msra.mxu0 0.0
    %1424 = vmatprep.subr.mxu0 0.0
    %1425 = vmatpush1.msra.mxu0 0.0
    %1426 = vmatprep.subr.mxu0 0.0
    %1427 = vmatpush1.msra.mxu0 0.0
    %1428 = vmatprep.subr.mxu0 0.0
    %1429 = vmatpush1.msra.mxu0 0.0
    %1430 = vmatprep.subr.mxu0 0.0
    %1431 = vmatpush1.msra.mxu0 0.0
    %1432 = vmatprep.subr.mxu0 0.0
    %1433 = vmatpush1.msra.mxu0 0.0
    %1434 = vmatprep.subr.mxu0 0.0
    %1435 = vmatpush1.msra.mxu0 0.0
    %1436 = vmatprep.subr.mxu0 0.0
    %1437 = vmatpush1.msra.mxu0 0.0
    %1438 = vmatprep.subr.mxu0 0.0
    %1439 = vmatpush1.msra.mxu0 0.0
    %1440 = vmatprep.subr.mxu0 0.0
    %1441 = vmatpush1.msra.mxu0 0.0
    %1442 = vmatprep.mubr.f32.mxu0 0.0
    %1443 = vmatmul.mubr.f32.gmra.mrb[0].mxu0 %v1157
    %v1444 = vpop.f32.mrb[0].mxu0
    %v1445 = vadd.f32 0.0, %v1444
    %v1446 = vpop.f32.mrb[0].mxu0
    %1447 = vdwg.mxu0
    %v1449 = vsel %vm109, %v1377, 0
    %1451 = vmatprep.subr.mxu0 0.0
    %1452 = vmatpush1.msra.mxu0 %v94
    %1453 = vmatprep.subr.mxu0 0.0
    %1454 = vmatpush1.msra.mxu0 %v95
    %1455 = vmatprep.subr.mxu0 0.0
    %1456 = vmatpush1.msra.mxu0 %v96
    %1457 = vmatprep.subr.mxu0 0.0
    %1458 = vmatpush1.msra.mxu0 %v97
    %1459 = vmatprep.subr.mxu0 0.0
    %1460 = vmatpush1.msra.mxu0 0.0
    %1461 = vmatprep.subr.mxu0 0.0
    %1462 = vmatpush1.msra.mxu0 0.0
    %1463 = vmatprep.subr.mxu0 0.0
    %1464 = vmatpush1.msra.mxu0 0.0
    %1465 = vmatprep.subr.mxu0 0.0
    %1466 = vmatpush1.msra.mxu0 0.0
    %1467 = vmatprep.subr.mxu0 0.0
    %1468 = vmatpush1.msra.mxu0 0.0
    %1469 = vmatprep.subr.mxu0 0.0
    %1470 = vmatpush1.msra.mxu0 0.0
    %1471 = vmatprep.subr.mxu0 0.0
    %1472 = vmatpush1.msra.mxu0 0.0
    %1473 = vmatprep.subr.mxu0 0.0
    %1474 = vmatpush1.msra.mxu0 0.0
    %1475 = vmatprep.subr.mxu0 0.0
    %1476 = vmatpush1.msra.mxu0 0.0
    %1477 = vmatprep.subr.mxu0 0.0
    %1478 = vmatpush1.msra.mxu0 0.0
    %1479 = vmatprep.subr.mxu0 0.0
    %1480 = vmatpush1.msra.mxu0 0.0
    %1481 = vmatprep.subr.mxu0 0.0
    %1482 = vmatpush1.msra.mxu0 0.0
    %1483 = vmatprep.subr.mxu0 0.0
    %1484 = vmatpush1.msra.mxu0 0.0
    %1485 = vmatprep.subr.mxu0 0.0
    %1486 = vmatpush1.msra.mxu0 0.0
    %1487 = vmatprep.subr.mxu0 0.0
    %1488 = vmatpush1.msra.mxu0 0.0
    %1489 = vmatprep.subr.mxu0 0.0
    %1490 = vmatpush1.msra.mxu0 0.0
    %1491 = vmatprep.subr.mxu0 0.0
    %1492 = vmatpush1.msra.mxu0 0.0
    %1493 = vmatprep.subr.mxu0 0.0
    %1494 = vmatpush1.msra.mxu0 0.0
    %1495 = vmatprep.subr.mxu0 0.0
    %1496 = vmatpush1.msra.mxu0 0.0
    %1497 = vmatprep.subr.mxu0 0.0
    %1498 = vmatpush1.msra.mxu0 0.0
    %1499 = vmatprep.subr.mxu0 0.0
    %1500 = vmatpush1.msra.mxu0 0.0
    %1501 = vmatprep.subr.mxu0 0.0
    %1502 = vmatpush1.msra.mxu0 0.0
    %1503 = vmatprep.subr.mxu0 0.0
    %1504 = vmatpush1.msra.mxu0 0.0
    %1505 = vmatprep.subr.mxu0 0.0
    %1506 = vmatpush1.msra.mxu0 0.0
    %1507 = vmatprep.subr.mxu0 0.0
    %1508 = vmatpush1.msra.mxu0 0.0
    %1509 = vmatprep.subr.mxu0 0.0
    %1510 = vmatpush1.msra.mxu0 0.0
    %1511 = vmatprep.subr.mxu0 0.0
    %1512 = vmatpush1.msra.mxu0 0.0
    %1513 = vmatprep.subr.mxu0 0.0
    %1514 = vmatpush1.msra.mxu0 0.0
    %1515 = vmatprep.mubr.f32.mxu0 0.0
    %1516 = vmatmul.mubr.f32.gmra.mrb[0].mxu0 %v1449
    %v1517 = vpop.f32.mrb[0].mxu0
    %v1518 = vadd.f32 %v1445, %v1517
    %v1519 = vpop.f32.mrb[0].mxu0
    %1520 = vdwg.mxu0
    %v1521 = vadd.f32 %v1518, %v412
    %v1522 = vtanh.pop %v1521
    %v1524 = vsel %vm109, %v1522, 0
    %1526 = vmatprep.subr.mxu0 0.0
    %1527 = vmatpush1.msra.mxu0 %v103
    %1528 = vmatprep.subr.mxu0 0.0
    %1529 = vmatpush1.msra.mxu0 %v104
    %1530 = vmatprep.subr.mxu0 0.0
    %1531 = vmatpush1.msra.mxu0 %v105
    %1532 = vmatprep.subr.mxu0 0.0
    %1533 = vmatpush1.msra.mxu0 %v106
    %1534 = vmatprep.subr.mxu0 0.0
    %1535 = vmatpush1.msra.mxu0 0.0
    %1536 = vmatprep.subr.mxu0 0.0
    %1537 = vmatpush1.msra.mxu0 0.0
    %1538 = vmatprep.subr.mxu0 0.0
    %1539 = vmatpush1.msra.mxu0 0.0
    %1540 = vmatprep.subr.mxu0 0.0
    %1541 = vmatpush1.msra.mxu0 0.0
    %1542 = vmatprep.subr.mxu0 0.0
    %1543 = vmatpush1.msra.mxu0 0.0
    %1544 = vmatprep.subr.mxu0 0.0
    %1545 = vmatpush1.msra.mxu0 0.0
    %1546 = vmatprep.subr.mxu0 0.0
    %1547 = vmatpush1.msra.mxu0 0.0
    %1548 = vmatprep.subr.mxu0 0.0
    %1549 = vmatpush1.msra.mxu0 0.0
    %1550 = vmatprep.subr.mxu0 0.0
    %1551 = vmatpush1.msra.mxu0 0.0
    %1552 = vmatprep.subr.mxu0 0.0
    %1553 = vmatpush1.msra.mxu0 0.0
    %1554 = vmatprep.subr.mxu0 0.0
    %1555 = vmatpush1.msra.mxu0 0.0
    %1556 = vmatprep.subr.mxu0 0.0
    %1557 = vmatpush1.msra.mxu0 0.0
    %1558 = vmatprep.subr.mxu0 0.0
    %1559 = vmatpush1.msra.mxu0 0.0
    %1560 = vmatprep.subr.mxu0 0.0
    %1561 = vmatpush1.msra.mxu0 0.0
    %1562 = vmatprep.subr.mxu0 0.0
    %1563 = vmatpush1.msra.mxu0 0.0
    %1564 = vmatprep.subr.mxu0 0.0
    %1565 = vmatpush1.msra.mxu0 0.0
    %1566 = vmatprep.subr.mxu0 0.0
    %1567 = vmatpush1.msra.mxu0 0.0
    %1568 = vmatprep.subr.mxu0 0.0
    %1569 = vmatpush1.msra.mxu0 0.0
    %1570 = vmatprep.subr.mxu0 0.0
    %1571 = vmatpush1.msra.mxu0 0.0
    %1572 = vmatprep.subr.mxu0 0.0
    %1573 = vmatpush1.msra.mxu0 0.0
    %1574 = vmatprep.subr.mxu0 0.0
    %1575 = vmatpush1.msra.mxu0 0.0
    %1576 = vmatprep.subr.mxu0 0.0
    %1577 = vmatpush1.msra.mxu0 0.0
    %1578 = vmatprep.subr.mxu0 0.0
    %1579 = vmatpush1.msra.mxu0 0.0
    %1580 = vmatprep.subr.mxu0 0.0
    %1581 = vmatpush1.msra.mxu0 0.0
    %1582 = vmatprep.subr.mxu0 0.0
    %1583 = vmatpush1.msra.mxu0 0.0
    %1584 = vmatprep.subr.mxu0 0.0
    %1585 = vmatpush1.msra.mxu0 0.0
    %1586 = vmatprep.subr.mxu0 0.0
    %1587 = vmatpush1.msra.mxu0 0.0
    %1588 = vmatprep.subr.mxu0 0.0
    %1589 = vmatpush1.msra.mxu0 0.0
    %1590 = vmatprep.mubr.f32.mxu0 0.0
    %1591 = vmatmul.mubr.f32.gmra.mrb[0].mxu0 %v1524
    %v1592 = vpop.f32.mrb[0].mxu0
    %v1593 = vadd.f32 %v420, %v1592
    %v1594 = vpop.f32.mrb[0].mxu0
    %1595 = vdwg.mxu0
    %s1596 = scalar_lea.vmem %s9, 6
    %1597 = vst.msk [vmem:[%s1596] sm:$0x3] %vm495, %v1593
    %s1598 = scalar_lea.vmem [#allocation2], 8
    %v1599 = vld [vmem:[%s1598] sm:$0x3]
    %1600 = vmatprep.subr.mxu0 0.0
    %1601 = vmatpush1.msra.mxu0 %v89
    %1602 = vmatprep.subr.mxu0 0.0
    %1603 = vmatpush1.msra.mxu0 %v90
    %1604 = vmatprep.subr.mxu0 0.0
    %1605 = vmatpush1.msra.mxu0 %v91
    %1606 = vmatprep.subr.mxu0 0.0
    %1607 = vmatpush1.msra.mxu0 %v92
    %1608 = vmatprep.subr.mxu0 0.0
    %1609 = vmatpush1.msra.mxu0 0.0
    %1610 = vmatprep.subr.mxu0 0.0
    %1611 = vmatpush1.msra.mxu0 0.0
    %1612 = vmatprep.subr.mxu0 0.0
    %1613 = vmatpush1.msra.mxu0 0.0
    %1614 = vmatprep.subr.mxu0 0.0
    %1615 = vmatpush1.msra.mxu0 0.0
    %1616 = vmatprep.subr.mxu0 0.0
    %1617 = vmatpush1.msra.mxu0 0.0
    %1618 = vmatprep.subr.mxu0 0.0
    %1619 = vmatpush1.msra.mxu0 0.0
    %1620 = vmatprep.subr.mxu0 0.0
    %1621 = vmatpush1.msra.mxu0 0.0
    %1622 = vmatprep.subr.mxu0 0.0
    %1623 = vmatpush1.msra.mxu0 0.0
    %1624 = vmatprep.subr.mxu0 0.0
    %1625 = vmatpush1.msra.mxu0 0.0
    %1626 = vmatprep.subr.mxu0 0.0
    %1627 = vmatpush1.msra.mxu0 0.0
    %1628 = vmatprep.subr.mxu0 0.0
    %1629 = vmatpush1.msra.mxu0 0.0
    %1630 = vmatprep.subr.mxu0 0.0
    %1631 = vmatpush1.msra.mxu0 0.0
    %1632 = vmatprep.subr.mxu0 0.0
    %1633 = vmatpush1.msra.mxu0 0.0
    %1634 = vmatprep.subr.mxu0 0.0
    %1635 = vmatpush1.msra.mxu0 0.0
    %1636 = vmatprep.subr.mxu0 0.0
    %1637 = vmatpush1.msra.mxu0 0.0
    %1638 = vmatprep.subr.mxu0 0.0
    %1639 = vmatpush1.msra.mxu0 0.0
    %1640 = vmatprep.subr.mxu0 0.0
    %1641 = vmatpush1.msra.mxu0 0.0
    %1642 = vmatprep.subr.mxu0 0.0
    %1643 = vmatpush1.msra.mxu0 0.0
    %1644 = vmatprep.subr.mxu0 0.0
    %1645 = vmatpush1.msra.mxu0 0.0
    %1646 = vmatprep.subr.mxu0 0.0
    %1647 = vmatpush1.msra.mxu0 0.0
    %1648 = vmatprep.subr.mxu0 0.0
    %1649 = vmatpush1.msra.mxu0 0.0
    %1650 = vmatprep.subr.mxu0 0.0
    %1651 = vmatpush1.msra.mxu0 0.0
    %1652 = vmatprep.subr.mxu0 0.0
    %1653 = vmatpush1.msra.mxu0 0.0
    %1654 = vmatprep.subr.mxu0 0.0
    %1655 = vmatpush1.msra.mxu0 0.0
    %1656 = vmatprep.subr.mxu0 0.0
    %1657 = vmatpush1.msra.mxu0 0.0
    %1658 = vmatprep.subr.mxu0 0.0
    %1659 = vmatpush1.msra.mxu0 0.0
    %1660 = vmatprep.subr.mxu0 0.0
    %1661 = vmatpush1.msra.mxu0 0.0
    %1662 = vmatprep.subr.mxu0 0.0
    %1663 = vmatpush1.msra.mxu0 0.0
    %1664 = vmatprep.mubr.f32.mxu0 0.0
    %1665 = vmatmul.mubr.f32.gmra.mrb[0].mxu0 %v1449
    %v1666 = vpop.f32.mrb[0].mxu0
    %v1667 = vadd.f32 0.0, %v1666
    %v1668 = vpop.f32.mrb[0].mxu0
    %1669 = vdwg.mxu0
    %v1671 = vsel %vm183, %v1599, 0
    %1673 = vmatprep.subr.mxu0 0.0
    %1674 = vmatpush1.msra.mxu0 %v87
    %1675 = vmatprep.subr.mxu0 0.0
    %1676 = vmatpush1.msra.mxu0 %v88
    %1677 = vmatprep.subr.mxu0 0.0
    %1678 = vmatpush1.msra.mxu0 0.0
    %1679 = vmatprep.subr.mxu0 0.0
    %1680 = vmatpush1.msra.mxu0 0.0
    %1681 = vmatprep.subr.mxu0 0.0
    %1682 = vmatpush1.msra.mxu0 0.0
    %1683 = vmatprep.subr.mxu0 0.0
    %1684 = vmatpush1.msra.mxu0 0.0
    %1685 = vmatprep.subr.mxu0 0.0
    %1686 = vmatpush1.msra.mxu0 0.0
    %1687 = vmatprep.subr.mxu0 0.0
    %1688 = vmatpush1.msra.mxu0 0.0
    %1689 = vmatprep.subr.mxu0 0.0
    %1690 = vmatpush1.msra.mxu0 0.0
    %1691 = vmatprep.subr.mxu0 0.0
    %1692 = vmatpush1.msra.mxu0 0.0
    %1693 = vmatprep.subr.mxu0 0.0
    %1694 = vmatpush1.msra.mxu0 0.0
    %1695 = vmatprep.subr.mxu0 0.0
    %1696 = vmatpush1.msra.mxu0 0.0
    %1697 = vmatprep.subr.mxu0 0.0
    %1698 = vmatpush1.msra.mxu0 0.0
    %1699 = vmatprep.subr.mxu0 0.0
    %1700 = vmatpush1.msra.mxu0 0.0
    %1701 = vmatprep.subr.mxu0 0.0
    %1702 = vmatpush1.msra.mxu0 0.0
    %1703 = vmatprep.subr.mxu0 0.0
    %1704 = vmatpush1.msra.mxu0 0.0
    %1705 = vmatprep.subr.mxu0 0.0
    %1706 = vmatpush1.msra.mxu0 0.0
    %1707 = vmatprep.subr.mxu0 0.0
    %1708 = vmatpush1.msra.mxu0 0.0
    %1709 = vmatprep.subr.mxu0 0.0
    %1710 = vmatpush1.msra.mxu0 0.0
    %1711 = vmatprep.subr.mxu0 0.0
    %1712 = vmatpush1.msra.mxu0 0.0
    %1713 = vmatprep.subr.mxu0 0.0
    %1714 = vmatpush1.msra.mxu0 0.0
    %1715 = vmatprep.subr.mxu0 0.0
    %1716 = vmatpush1.msra.mxu0 0.0
    %1717 = vmatprep.subr.mxu0 0.0
    %1718 = vmatpush1.msra.mxu0 0.0
    %1719 = vmatprep.subr.mxu0 0.0
    %1720 = vmatpush1.msra.mxu0 0.0
    %1721 = vmatprep.subr.mxu0 0.0
    %1722 = vmatpush1.msra.mxu0 0.0
    %1723 = vmatprep.subr.mxu0 0.0
    %1724 = vmatpush1.msra.mxu0 0.0
    %1725 = vmatprep.subr.mxu0 0.0
    %1726 = vmatpush1.msra.mxu0 0.0
    %1727 = vmatprep.subr.mxu0 0.0
    %1728 = vmatpush1.msra.mxu0 0.0
    %1729 = vmatprep.subr.mxu0 0.0
    %1730 = vmatpush1.msra.mxu0 0.0
    %1731 = vmatprep.subr.mxu0 0.0
    %1732 = vmatpush1.msra.mxu0 0.0
    %1733 = vmatprep.subr.mxu0 0.0
    %1734 = vmatpush1.msra.mxu0 0.0
    %1735 = vmatprep.subr.mxu0 0.0
    %1736 = vmatpush1.msra.mxu0 0.0
    %1737 = vmatprep.mubr.f32.mxu0 0.0
    %1738 = vmatmul.mubr.f32.gmra.mrb[0].mxu0 %v1671
    %v1739 = vpop.f32.mrb[0].mxu0
    %v1740 = vadd.f32 %v1667, %v1739
    %v1741 = vpop.f32.mrb[0].mxu0
    %1742 = vdwg.mxu0
    %v1743 = vadd.f32 %v1740, %v261
    %v1744 = vtanh.pop %v1743
    %1745 = vmatprep.subr.mxu0 0.0
    %1746 = vmatpush1.msra.mxu0 %v98
    %1747 = vmatprep.subr.mxu0 0.0
    %1748 = vmatpush1.msra.mxu0 %v99
    %1749 = vmatprep.subr.mxu0 0.0
    %1750 = vmatpush1.msra.mxu0 %v100
    %1751 = vmatprep.subr.mxu0 0.0
    %1752 = vmatpush1.msra.mxu0 %v101
    %1753 = vmatprep.subr.mxu0 0.0
    %1754 = vmatpush1.msra.mxu0 0.0
    %1755 = vmatprep.subr.mxu0 0.0
    %1756 = vmatpush1.msra.mxu0 0.0
    %1757 = vmatprep.subr.mxu0 0.0
    %1758 = vmatpush1.msra.mxu0 0.0
    %1759 = vmatprep.subr.mxu0 0.0
    %1760 = vmatpush1.msra.mxu0 0.0
    %1761 = vmatprep.subr.mxu0 0.0
    %1762 = vmatpush1.msra.mxu0 0.0
    %1763 = vmatprep.subr.mxu0 0.0
    %1764 = vmatpush1.msra.mxu0 0.0
    %1765 = vmatprep.subr.mxu0 0.0
    %1766 = vmatpush1.msra.mxu0 0.0
    %1767 = vmatprep.subr.mxu0 0.0
    %1768 = vmatpush1.msra.mxu0 0.0
    %1769 = vmatprep.subr.mxu0 0.0
    %1770 = vmatpush1.msra.mxu0 0.0
    %1771 = vmatprep.subr.mxu0 0.0
    %1772 = vmatpush1.msra.mxu0 0.0
    %1773 = vmatprep.subr.mxu0 0.0
    %1774 = vmatpush1.msra.mxu0 0.0
    %1775 = vmatprep.subr.mxu0 0.0
    %1776 = vmatpush1.msra.mxu0 0.0
    %1777 = vmatprep.subr.mxu0 0.0
    %1778 = vmatpush1.msra.mxu0 0.0
    %1779 = vmatprep.subr.mxu0 0.0
    %1780 = vmatpush1.msra.mxu0 0.0
    %1781 = vmatprep.subr.mxu0 0.0
    %1782 = vmatpush1.msra.mxu0 0.0
    %1783 = vmatprep.subr.mxu0 0.0
    %1784 = vmatpush1.msra.mxu0 0.0
    %1785 = vmatprep.subr.mxu0 0.0
    %1786 = vmatpush1.msra.mxu0 0.0
    %1787 = vmatprep.subr.mxu0 0.0
    %1788 = vmatpush1.msra.mxu0 0.0
    %1789 = vmatprep.subr.mxu0 0.0
    %1790 = vmatpush1.msra.mxu0 0.0
    %1791 = vmatprep.subr.mxu0 0.0
    %1792 = vmatpush1.msra.mxu0 0.0
    %1793 = vmatprep.subr.mxu0 0.0
    %1794 = vmatpush1.msra.mxu0 0.0
    %1795 = vmatprep.subr.mxu0 0.0
    %1796 = vmatpush1.msra.mxu0 0.0
    %1797 = vmatprep.subr.mxu0 0.0
    %1798 = vmatpush1.msra.mxu0 0.0
    %1799 = vmatprep.subr.mxu0 0.0
    %1800 = vmatpush1.msra.mxu0 0.0
    %1801 = vmatprep.subr.mxu0 0.0
    %1802 = vmatpush1.msra.mxu0 0.0
    %1803 = vmatprep.subr.mxu0 0.0
    %1804 = vmatpush1.msra.mxu0 0.0
    %1805 = vmatprep.subr.mxu0 0.0
    %1806 = vmatpush1.msra.mxu0 0.0
    %1807 = vmatprep.subr.mxu0 0.0
    %1808 = vmatpush1.msra.mxu0 0.0
    %1809 = vmatprep.mubr.f32.mxu0 0.0
    %1810 = vmatmul.mubr.f32.gmra.mrb[0].mxu0 %v1524
    %v1811 = vpop.f32.mrb[0].mxu0
    %v1812 = vadd.f32 0.0, %v1811
    %v1813 = vpop.f32.mrb[0].mxu0
    %1814 = vdwg.mxu0
    %v1816 = vsel %vm109, %v1744, 0
    %1818 = vmatprep.subr.mxu0 0.0
    %1819 = vmatpush1.msra.mxu0 %v94
    %1820 = vmatprep.subr.mxu0 0.0
    %1821 = vmatpush1.msra.mxu0 %v95
    %1822 = vmatprep.subr.mxu0 0.0
    %1823 = vmatpush1.msra.mxu0 %v96
    %1824 = vmatprep.subr.mxu0 0.0
    %1825 = vmatpush1.msra.mxu0 %v97
    %1826 = vmatprep.subr.mxu0 0.0
    %1827 = vmatpush1.msra.mxu0 0.0
    %1828 = vmatprep.subr.mxu0 0.0
    %1829 = vmatpush1.msra.mxu0 0.0
    %1830 = vmatprep.subr.mxu0 0.0
    %1831 = vmatpush1.msra.mxu0 0.0
    %1832 = vmatprep.subr.mxu0 0.0
    %1833 = vmatpush1.msra.mxu0 0.0
    %1834 = vmatprep.subr.mxu0 0.0
    %1835 = vmatpush1.msra.mxu0 0.0
    %1836 = vmatprep.subr.mxu0 0.0
    %1837 = vmatpush1.msra.mxu0 0.0
    %1838 = vmatprep.subr.mxu0 0.0
    %1839 = vmatpush1.msra.mxu0 0.0
    %1840 = vmatprep.subr.mxu0 0.0
    %1841 = vmatpush1.msra.mxu0 0.0
    %1842 = vmatprep.subr.mxu0 0.0
    %1843 = vmatpush1.msra.mxu0 0.0
    %1844 = vmatprep.subr.mxu0 0.0
    %1845 = vmatpush1.msra.mxu0 0.0
    %1846 = vmatprep.subr.mxu0 0.0
    %1847 = vmatpush1.msra.mxu0 0.0
    %1848 = vmatprep.subr.mxu0 0.0
    %1849 = vmatpush1.msra.mxu0 0.0
    %1850 = vmatprep.subr.mxu0 0.0
    %1851 = vmatpush1.msra.mxu0 0.0
    %1852 = vmatprep.subr.mxu0 0.0
    %1853 = vmatpush1.msra.mxu0 0.0
    %1854 = vmatprep.subr.mxu0 0.0
    %1855 = vmatpush1.msra.mxu0 0.0
    %1856 = vmatprep.subr.mxu0 0.0
    %1857 = vmatpush1.msra.mxu0 0.0
    %1858 = vmatprep.subr.mxu0 0.0
    %1859 = vmatpush1.msra.mxu0 0.0
    %1860 = vmatprep.subr.mxu0 0.0
    %1861 = vmatpush1.msra.mxu0 0.0
    %1862 = vmatprep.subr.mxu0 0.0
    %1863 = vmatpush1.msra.mxu0 0.0
    %1864 = vmatprep.subr.mxu0 0.0
    %1865 = vmatpush1.msra.mxu0 0.0
    %1866 = vmatprep.subr.mxu0 0.0
    %1867 = vmatpush1.msra.mxu0 0.0
    %1868 = vmatprep.subr.mxu0 0.0
    %1869 = vmatpush1.msra.mxu0 0.0
    %1870 = vmatprep.subr.mxu0 0.0
    %1871 = vmatpush1.msra.mxu0 0.0
    %1872 = vmatprep.subr.mxu0 0.0
    %1873 = vmatpush1.msra.mxu0 0.0
    %1874 = vmatprep.subr.mxu0 0.0
    %1875 = vmatpush1.msra.mxu0 0.0
    %1876 = vmatprep.subr.mxu0 0.0
    %1877 = vmatpush1.msra.mxu0 0.0
    %1878 = vmatprep.subr.mxu0 0.0
    %1879 = vmatpush1.msra.mxu0 0.0
    %1880 = vmatprep.subr.mxu0 0.0
    %1881 = vmatpush1.msra.mxu0 0.0
    %1882 = vmatprep.mubr.f32.mxu0 0.0
    %1883 = vmatmul.mubr.f32.gmra.mrb[0].mxu0 %v1816
    %v1884 = vpop.f32.mrb[0].mxu0
    %v1885 = vadd.f32 %v1812, %v1884
    %v1886 = vpop.f32.mrb[0].mxu0
    %1887 = vdwg.mxu0
    %v1888 = vadd.f32 %v1885, %v412
    %v1889 = vtanh.pop %v1888
    %v1891 = vsel %vm109, %v1889, 0
    %1893 = vmatprep.subr.mxu0 0.0
    %1894 = vmatpush1.msra.mxu0 %v103
    %1895 = vmatprep.subr.mxu0 0.0
    %1896 = vmatpush1.msra.mxu0 %v104
    %1897 = vmatprep.subr.mxu0 0.0
    %1898 = vmatpush1.msra.mxu0 %v105
    %1899 = vmatprep.subr.mxu0 0.0
    %1900 = vmatpush1.msra.mxu0 %v106
    %1901 = vmatprep.subr.mxu0 0.0
    %1902 = vmatpush1.msra.mxu0 0.0
    %1903 = vmatprep.subr.mxu0 0.0
    %1904 = vmatpush1.msra.mxu0 0.0
    %1905 = vmatprep.subr.mxu0 0.0
    %1906 = vmatpush1.msra.mxu0 0.0
    %1907 = vmatprep.subr.mxu0 0.0
    %1908 = vmatpush1.msra.mxu0 0.0
    %1909 = vmatprep.subr.mxu0 0.0
    %1910 = vmatpush1.msra.mxu0 0.0
    %1911 = vmatprep.subr.mxu0 0.0
    %1912 = vmatpush1.msra.mxu0 0.0
    %1913 = vmatprep.subr.mxu0 0.0
    %1914 = vmatpush1.msra.mxu0 0.0
    %1915 = vmatprep.subr.mxu0 0.0
    %1916 = vmatpush1.msra.mxu0 0.0
    %1917 = vmatprep.subr.mxu0 0.0
    %1918 = vmatpush1.msra.mxu0 0.0
    %1919 = vmatprep.subr.mxu0 0.0
    %1920 = vmatpush1.msra.mxu0 0.0
    %1921 = vmatprep.subr.mxu0 0.0
    %1922 = vmatpush1.msra.mxu0 0.0
    %1923 = vmatprep.subr.mxu0 0.0
    %1924 = vmatpush1.msra.mxu0 0.0
    %1925 = vmatprep.subr.mxu0 0.0
    %1926 = vmatpush1.msra.mxu0 0.0
    %1927 = vmatprep.subr.mxu0 0.0
    %1928 = vmatpush1.msra.mxu0 0.0
    %1929 = vmatprep.subr.mxu0 0.0
    %1930 = vmatpush1.msra.mxu0 0.0
    %1931 = vmatprep.subr.mxu0 0.0
    %1932 = vmatpush1.msra.mxu0 0.0
    %1933 = vmatprep.subr.mxu0 0.0
    %1934 = vmatpush1.msra.mxu0 0.0
    %1935 = vmatprep.subr.mxu0 0.0
    %1936 = vmatpush1.msra.mxu0 0.0
    %1937 = vmatprep.subr.mxu0 0.0
    %1938 = vmatpush1.msra.mxu0 0.0
    %1939 = vmatprep.subr.mxu0 0.0
    %1940 = vmatpush1.msra.mxu0 0.0
    %1941 = vmatprep.subr.mxu0 0.0
    %1942 = vmatpush1.msra.mxu0 0.0
    %1943 = vmatprep.subr.mxu0 0.0
    %1944 = vmatpush1.msra.mxu0 0.0
    %1945 = vmatprep.subr.mxu0 0.0
    %1946 = vmatpush1.msra.mxu0 0.0
    %1947 = vmatprep.subr.mxu0 0.0
    %1948 = vmatpush1.msra.mxu0 0.0
    %1949 = vmatprep.subr.mxu0 0.0
    %1950 = vmatpush1.msra.mxu0 0.0
    %1951 = vmatprep.subr.mxu0 0.0
    %1952 = vmatpush1.msra.mxu0 0.0
    %1953 = vmatprep.subr.mxu0 0.0
    %1954 = vmatpush1.msra.mxu0 0.0
    %1955 = vmatprep.subr.mxu0 0.0
    %1956 = vmatpush1.msra.mxu0 0.0
    %1957 = vmatprep.mubr.f32.mxu0 0.0
    %1958 = vmatmul.mubr.f32.gmra.mrb[0].mxu0 %v1891
    %v1959 = vpop.f32.mrb[0].mxu0
    %v1960 = vadd.f32 %v420, %v1959
    %v1961 = vpop.f32.mrb[0].mxu0
    %1962 = vdwg.mxu0
    %s1963 = scalar_lea.vmem %s9, 8
    %1964 = vst.msk [vmem:[%s1963] sm:$0x3] %vm495, %v1960
    %s1965 = scalar_lea.vmem [#allocation2], 10
    %v1966 = vld [vmem:[%s1965] sm:$0x3]
    %1967 = vmatprep.subr.mxu0 0.0
    %1968 = vmatpush1.msra.mxu0 %v89
    %1969 = vmatprep.subr.mxu0 0.0
    %1970 = vmatpush1.msra.mxu0 %v90
    %1971 = vmatprep.subr.mxu0 0.0
    %1972 = vmatpush1.msra.mxu0 %v91
    %1973 = vmatprep.subr.mxu0 0.0
    %1974 = vmatpush1.msra.mxu0 %v92
    %1975 = vmatprep.subr.mxu0 0.0
    %1976 = vmatpush1.msra.mxu0 0.0
    %1977 = vmatprep.subr.mxu0 0.0
    %1978 = vmatpush1.msra.mxu0 0.0
    %1979 = vmatprep.subr.mxu0 0.0
    %1980 = vmatpush1.msra.mxu0 0.0
    %1981 = vmatprep.subr.mxu0 0.0
    %1982 = vmatpush1.msra.mxu0 0.0
    %1983 = vmatprep.subr.mxu0 0.0
    %1984 = vmatpush1.msra.mxu0 0.0
    %1985 = vmatprep.subr.mxu0 0.0
    %1986 = vmatpush1.msra.mxu0 0.0
    %1987 = vmatprep.subr.mxu0 0.0
    %1988 = vmatpush1.msra.mxu0 0.0
    %1989 = vmatprep.subr.mxu0 0.0
    %1990 = vmatpush1.msra.mxu0 0.0
    %1991 = vmatprep.subr.mxu0 0.0
    %1992 = vmatpush1.msra.mxu0 0.0
    %1993 = vmatprep.subr.mxu0 0.0
    %1994 = vmatpush1.msra.mxu0 0.0
    %1995 = vmatprep.subr.mxu0 0.0
    %1996 = vmatpush1.msra.mxu0 0.0
    %1997 = vmatprep.subr.mxu0 0.0
    %1998 = vmatpush1.msra.mxu0 0.0
    %1999 = vmatprep.subr.mxu0 0.0
    %2000 = vmatpush1.msra.mxu0 0.0
    %2001 = vmatprep.subr.mxu0 0.0
    %2002 = vmatpush1.msra.mxu0 0.0
    %2003 = vmatprep.subr.mxu0 0.0
    %2004 = vmatpush1.msra.mxu0 0.0
    %2005 = vmatprep.subr.mxu0 0.0
    %2006 = vmatpush1.msra.mxu0 0.0
    %2007 = vmatprep.subr.mxu0 0.0
    %2008 = vmatpush1.msra.mxu0 0.0
    %2009 = vmatprep.subr.mxu0 0.0
    %2010 = vmatpush1.msra.mxu0 0.0
    %2011 = vmatprep.subr.mxu0 0.0
    %2012 = vmatpush1.msra.mxu0 0.0
    %2013 = vmatprep.subr.mxu0 0.0
    %2014 = vmatpush1.msra.mxu0 0.0
    %2015 = vmatprep.subr.mxu0 0.0
    %2016 = vmatpush1.msra.mxu0 0.0
    %2017 = vmatprep.subr.mxu0 0.0
    %2018 = vmatpush1.msra.mxu0 0.0
    %2019 = vmatprep.subr.mxu0 0.0
    %2020 = vmatpush1.msra.mxu0 0.0
    %2021 = vmatprep.subr.mxu0 0.0
    %2022 = vmatpush1.msra.mxu0 0.0
    %2023 = vmatprep.subr.mxu0 0.0
    %2024 = vmatpush1.msra.mxu0 0.0
    %2025 = vmatprep.subr.mxu0 0.0
    %2026 = vmatpush1.msra.mxu0 0.0
    %2027 = vmatprep.subr.mxu0 0.0
    %2028 = vmatpush1.msra.mxu0 0.0
    %2029 = vmatprep.subr.mxu0 0.0
    %2030 = vmatpush1.msra.mxu0 0.0
    %2031 = vmatprep.mubr.f32.mxu0 0.0
    %2032 = vmatmul.mubr.f32.gmra.mrb[0].mxu0 %v1816
    %v2033 = vpop.f32.mrb[0].mxu0
    %v2034 = vadd.f32 0.0, %v2033
    %v2035 = vpop.f32.mrb[0].mxu0
    %2036 = vdwg.mxu0
    %v2038 = vsel %vm183, %v1966, 0
    %2040 = vmatprep.subr.mxu0 0.0
    %2041 = vmatpush1.msra.mxu0 %v87
    %2042 = vmatprep.subr.mxu0 0.0
    %2043 = vmatpush1.msra.mxu0 %v88
    %2044 = vmatprep.subr.mxu0 0.0
    %2045 = vmatpush1.msra.mxu0 0.0
    %2046 = vmatprep.subr.mxu0 0.0
    %2047 = vmatpush1.msra.mxu0 0.0
    %2048 = vmatprep.subr.mxu0 0.0
    %2049 = vmatpush1.msra.mxu0 0.0
    %2050 = vmatprep.subr.mxu0 0.0
    %2051 = vmatpush1.msra.mxu0 0.0
    %2052 = vmatprep.subr.mxu0 0.0
    %2053 = vmatpush1.msra.mxu0 0.0
    %2054 = vmatprep.subr.mxu0 0.0
    %2055 = vmatpush1.msra.mxu0 0.0
    %2056 = vmatprep.subr.mxu0 0.0
    %2057 = vmatpush1.msra.mxu0 0.0
    %2058 = vmatprep.subr.mxu0 0.0
    %2059 = vmatpush1.msra.mxu0 0.0
    %2060 = vmatprep.subr.mxu0 0.0
    %2061 = vmatpush1.msra.mxu0 0.0
    %2062 = vmatprep.subr.mxu0 0.0
    %2063 = vmatpush1.msra.mxu0 0.0
    %2064 = vmatprep.subr.mxu0 0.0
    %2065 = vmatpush1.msra.mxu0 0.0
    %2066 = vmatprep.subr.mxu0 0.0
    %2067 = vmatpush1.msra.mxu0 0.0
    %2068 = vmatprep.subr.mxu0 0.0
    %2069 = vmatpush1.msra.mxu0 0.0
    %2070 = vmatprep.subr.mxu0 0.0
    %2071 = vmatpush1.msra.mxu0 0.0
    %2072 = vmatprep.subr.mxu0 0.0
    %2073 = vmatpush1.msra.mxu0 0.0
    %2074 = vmatprep.subr.mxu0 0.0
    %2075 = vmatpush1.msra.mxu0 0.0
    %2076 = vmatprep.subr.mxu0 0.0
    %2077 = vmatpush1.msra.mxu0 0.0
    %2078 = vmatprep.subr.mxu0 0.0
    %2079 = vmatpush1.msra.mxu0 0.0
    %2080 = vmatprep.subr.mxu0 0.0
    %2081 = vmatpush1.msra.mxu0 0.0
    %2082 = vmatprep.subr.mxu0 0.0
    %2083 = vmatpush1.msra.mxu0 0.0
    %2084 = vmatprep.subr.mxu0 0.0
    %2085 = vmatpush1.msra.mxu0 0.0
    %2086 = vmatprep.subr.mxu0 0.0
    %2087 = vmatpush1.msra.mxu0 0.0
    %2088 = vmatprep.subr.mxu0 0.0
    %2089 = vmatpush1.msra.mxu0 0.0
    %2090 = vmatprep.subr.mxu0 0.0
    %2091 = vmatpush1.msra.mxu0 0.0
    %2092 = vmatprep.subr.mxu0 0.0
    %2093 = vmatpush1.msra.mxu0 0.0
    %2094 = vmatprep.subr.mxu0 0.0
    %2095 = vmatpush1.msra.mxu0 0.0
    %2096 = vmatprep.subr.mxu0 0.0
    %2097 = vmatpush1.msra.mxu0 0.0
    %2098 = vmatprep.subr.mxu0 0.0
    %2099 = vmatpush1.msra.mxu0 0.0
    %2100 = vmatprep.subr.mxu0 0.0
    %2101 = vmatpush1.msra.mxu0 0.0
    %2102 = vmatprep.subr.mxu0 0.0
    %2103 = vmatpush1.msra.mxu0 0.0
    %2104 = vmatprep.mubr.f32.mxu0 0.0
    %2105 = vmatmul.mubr.f32.gmra.mrb[0].mxu0 %v2038
    %v2106 = vpop.f32.mrb[0].mxu0
    %v2107 = vadd.f32 %v2034, %v2106
    %v2108 = vpop.f32.mrb[0].mxu0
    %2109 = vdwg.mxu0
    %v2110 = vadd.f32 %v2107, %v261
    %v2111 = vtanh.pop %v2110
    %2112 = vmatprep.subr.mxu0 0.0
    %2113 = vmatpush1.msra.mxu0 %v98
    %2114 = vmatprep.subr.mxu0 0.0
    %2115 = vmatpush1.msra.mxu0 %v99
    %2116 = vmatprep.subr.mxu0 0.0
    %2117 = vmatpush1.msra.mxu0 %v100
    %2118 = vmatprep.subr.mxu0 0.0
    %2119 = vmatpush1.msra.mxu0 %v101
    %2120 = vmatprep.subr.mxu0 0.0
    %2121 = vmatpush1.msra.mxu0 0.0
    %2122 = vmatprep.subr.mxu0 0.0
    %2123 = vmatpush1.msra.mxu0 0.0
    %2124 = vmatprep.subr.mxu0 0.0
    %2125 = vmatpush1.msra.mxu0 0.0
    %2126 = vmatprep.subr.mxu0 0.0
    %2127 = vmatpush1.msra.mxu0 0.0
    %2128 = vmatprep.subr.mxu0 0.0
    %2129 = vmatpush1.msra.mxu0 0.0
    %2130 = vmatprep.subr.mxu0 0.0
    %2131 = vmatpush1.msra.mxu0 0.0
    %2132 = vmatprep.subr.mxu0 0.0
    %2133 = vmatpush1.msra.mxu0 0.0
    %2134 = vmatprep.subr.mxu0 0.0
    %2135 = vmatpush1.msra.mxu0 0.0
    %2136 = vmatprep.subr.mxu0 0.0
    %2137 = vmatpush1.msra.mxu0 0.0
    %2138 = vmatprep.subr.mxu0 0.0
    %2139 = vmatpush1.msra.mxu0 0.0
    %2140 = vmatprep.subr.mxu0 0.0
    %2141 = vmatpush1.msra.mxu0 0.0
    %2142 = vmatprep.subr.mxu0 0.0
    %2143 = vmatpush1.msra.mxu0 0.0
    %2144 = vmatprep.subr.mxu0 0.0
    %2145 = vmatpush1.msra.mxu0 0.0
    %2146 = vmatprep.subr.mxu0 0.0
    %2147 = vmatpush1.msra.mxu0 0.0
    %2148 = vmatprep.subr.mxu0 0.0
    %2149 = vmatpush1.msra.mxu0 0.0
    %2150 = vmatprep.subr.mxu0 0.0
    %2151 = vmatpush1.msra.mxu0 0.0
    %2152 = vmatprep.subr.mxu0 0.0
    %2153 = vmatpush1.msra.mxu0 0.0
    %2154 = vmatprep.subr.mxu0 0.0
    %2155 = vmatpush1.msra.mxu0 0.0
    %2156 = vmatprep.subr.mxu0 0.0
    %2157 = vmatpush1.msra.mxu0 0.0
    %2158 = vmatprep.subr.mxu0 0.0
    %2159 = vmatpush1.msra.mxu0 0.0
    %2160 = vmatprep.subr.mxu0 0.0
    %2161 = vmatpush1.msra.mxu0 0.0
    %2162 = vmatprep.subr.mxu0 0.0
    %2163 = vmatpush1.msra.mxu0 0.0
    %2164 = vmatprep.subr.mxu0 0.0
    %2165 = vmatpush1.msra.mxu0 0.0
    %2166 = vmatprep.subr.mxu0 0.0
    %2167 = vmatpush1.msra.mxu0 0.0
    %2168 = vmatprep.subr.mxu0 0.0
    %2169 = vmatpush1.msra.mxu0 0.0
    %2170 = vmatprep.subr.mxu0 0.0
    %2171 = vmatpush1.msra.mxu0 0.0
    %2172 = vmatprep.subr.mxu0 0.0
    %2173 = vmatpush1.msra.mxu0 0.0
    %2174 = vmatprep.subr.mxu0 0.0
    %2175 = vmatpush1.msra.mxu0 0.0
    %2176 = vmatprep.mubr.f32.mxu0 0.0
    %2177 = vmatmul.mubr.f32.gmra.mrb[0].mxu0 %v1891
    %v2178 = vpop.f32.mrb[0].mxu0
    %v2179 = vadd.f32 0.0, %v2178
    %v2180 = vpop.f32.mrb[0].mxu0
    %2181 = vdwg.mxu0
    %v2183 = vsel %vm109, %v2111, 0
    %2185 = vmatprep.subr.mxu0 0.0
    %2186 = vmatpush1.msra.mxu0 %v94
    %2187 = vmatprep.subr.mxu0 0.0
    %2188 = vmatpush1.msra.mxu0 %v95
    %2189 = vmatprep.subr.mxu0 0.0
    %2190 = vmatpush1.msra.mxu0 %v96
    %2191 = vmatprep.subr.mxu0 0.0
    %2192 = vmatpush1.msra.mxu0 %v97
    %2193 = vmatprep.subr.mxu0 0.0
    %2194 = vmatpush1.msra.mxu0 0.0
    %2195 = vmatprep.subr.mxu0 0.0
    %2196 = vmatpush1.msra.mxu0 0.0
    %2197 = vmatprep.subr.mxu0 0.0
    %2198 = vmatpush1.msra.mxu0 0.0
    %2199 = vmatprep.subr.mxu0 0.0
    %2200 = vmatpush1.msra.mxu0 0.0
    %2201 = vmatprep.subr.mxu0 0.0
    %2202 = vmatpush1.msra.mxu0 0.0
    %2203 = vmatprep.subr.mxu0 0.0
    %2204 = vmatpush1.msra.mxu0 0.0
    %2205 = vmatprep.subr.mxu0 0.0
    %2206 = vmatpush1.msra.mxu0 0.0
    %2207 = vmatprep.subr.mxu0 0.0
    %2208 = vmatpush1.msra.mxu0 0.0
    %2209 = vmatprep.subr.mxu0 0.0
    %2210 = vmatpush1.msra.mxu0 0.0
    %2211 = vmatprep.subr.mxu0 0.0
    %2212 = vmatpush1.msra.mxu0 0.0
    %2213 = vmatprep.subr.mxu0 0.0
    %2214 = vmatpush1.msra.mxu0 0.0
    %2215 = vmatprep.subr.mxu0 0.0
    %2216 = vmatpush1.msra.mxu0 0.0
    %2217 = vmatprep.subr.mxu0 0.0
    %2218 = vmatpush1.msra.mxu0 0.0
    %2219 = vmatprep.subr.mxu0 0.0
    %2220 = vmatpush1.msra.mxu0 0.0
    %2221 = vmatprep.subr.mxu0 0.0
    %2222 = vmatpush1.msra.mxu0 0.0
    %2223 = vmatprep.subr.mxu0 0.0
    %2224 = vmatpush1.msra.mxu0 0.0
    %2225 = vmatprep.subr.mxu0 0.0
    %2226 = vmatpush1.msra.mxu0 0.0
    %2227 = vmatprep.subr.mxu0 0.0
    %2228 = vmatpush1.msra.mxu0 0.0
    %2229 = vmatprep.subr.mxu0 0.0
    %2230 = vmatpush1.msra.mxu0 0.0
    %2231 = vmatprep.subr.mxu0 0.0
    %2232 = vmatpush1.msra.mxu0 0.0
    %2233 = vmatprep.subr.mxu0 0.0
    %2234 = vmatpush1.msra.mxu0 0.0
    %2235 = vmatprep.subr.mxu0 0.0
    %2236 = vmatpush1.msra.mxu0 0.0
    %2237 = vmatprep.subr.mxu0 0.0
    %2238 = vmatpush1.msra.mxu0 0.0
    %2239 = vmatprep.subr.mxu0 0.0
    %2240 = vmatpush1.msra.mxu0 0.0
    %2241 = vmatprep.subr.mxu0 0.0
    %2242 = vmatpush1.msra.mxu0 0.0
    %2243 = vmatprep.subr.mxu0 0.0
    %2244 = vmatpush1.msra.mxu0 0.0
    %2245 = vmatprep.subr.mxu0 0.0
    %2246 = vmatpush1.msra.mxu0 0.0
    %2247 = vmatprep.subr.mxu0 0.0
    %2248 = vmatpush1.msra.mxu0 0.0
    %2249 = vmatprep.mubr.f32.mxu0 0.0
    %2250 = vmatmul.mubr.f32.gmra.mrb[0].mxu0 %v2183
    %v2251 = vpop.f32.mrb[0].mxu0
    %v2252 = vadd.f32 %v2179, %v2251
    %v2253 = vpop.f32.mrb[0].mxu0
    %2254 = vdwg.mxu0
    %v2255 = vadd.f32 %v2252, %v412
    %v2256 = vtanh.pop %v2255
    %v2258 = vsel %vm109, %v2256, 0
    %2260 = vmatprep.subr.mxu0 0.0
    %2261 = vmatpush1.msra.mxu0 %v103
    %2262 = vmatprep.subr.mxu0 0.0
    %2263 = vmatpush1.msra.mxu0 %v104
    %2264 = vmatprep.subr.mxu0 0.0
    %2265 = vmatpush1.msra.mxu0 %v105
    %2266 = vmatprep.subr.mxu0 0.0
    %2267 = vmatpush1.msra.mxu0 %v106
    %2268 = vmatprep.subr.mxu0 0.0
    %2269 = vmatpush1.msra.mxu0 0.0
    %2270 = vmatprep.subr.mxu0 0.0
    %2271 = vmatpush1.msra.mxu0 0.0
    %2272 = vmatprep.subr.mxu0 0.0
    %2273 = vmatpush1.msra.mxu0 0.0
    %2274 = vmatprep.subr.mxu0 0.0
    %2275 = vmatpush1.msra.mxu0 0.0
    %2276 = vmatprep.subr.mxu0 0.0
    %2277 = vmatpush1.msra.mxu0 0.0
    %2278 = vmatprep.subr.mxu0 0.0
    %2279 = vmatpush1.msra.mxu0 0.0
    %2280 = vmatprep.subr.mxu0 0.0
    %2281 = vmatpush1.msra.mxu0 0.0
    %2282 = vmatprep.subr.mxu0 0.0
    %2283 = vmatpush1.msra.mxu0 0.0
    %2284 = vmatprep.subr.mxu0 0.0
    %2285 = vmatpush1.msra.mxu0 0.0
    %2286 = vmatprep.subr.mxu0 0.0
    %2287 = vmatpush1.msra.mxu0 0.0
    %2288 = vmatprep.subr.mxu0 0.0
    %2289 = vmatpush1.msra.mxu0 0.0
    %2290 = vmatprep.subr.mxu0 0.0
    %2291 = vmatpush1.msra.mxu0 0.0
    %2292 = vmatprep.subr.mxu0 0.0
    %2293 = vmatpush1.msra.mxu0 0.0
    %2294 = vmatprep.subr.mxu0 0.0
    %2295 = vmatpush1.msra.mxu0 0.0
    %2296 = vmatprep.subr.mxu0 0.0
    %2297 = vmatpush1.msra.mxu0 0.0
    %2298 = vmatprep.subr.mxu0 0.0
    %2299 = vmatpush1.msra.mxu0 0.0
    %2300 = vmatprep.subr.mxu0 0.0
    %2301 = vmatpush1.msra.mxu0 0.0
    %2302 = vmatprep.subr.mxu0 0.0
    %2303 = vmatpush1.msra.mxu0 0.0
    %2304 = vmatprep.subr.mxu0 0.0
    %2305 = vmatpush1.msra.mxu0 0.0
    %2306 = vmatprep.subr.mxu0 0.0
    %2307 = vmatpush1.msra.mxu0 0.0
    %2308 = vmatprep.subr.mxu0 0.0
    %2309 = vmatpush1.msra.mxu0 0.0
    %2310 = vmatprep.subr.mxu0 0.0
    %2311 = vmatpush1.msra.mxu0 0.0
    %2312 = vmatprep.subr.mxu0 0.0
    %2313 = vmatpush1.msra.mxu0 0.0
    %2314 = vmatprep.subr.mxu0 0.0
    %2315 = vmatpush1.msra.mxu0 0.0
    %2316 = vmatprep.subr.mxu0 0.0
    %2317 = vmatpush1.msra.mxu0 0.0
    %2318 = vmatprep.subr.mxu0 0.0
    %2319 = vmatpush1.msra.mxu0 0.0
    %2320 = vmatprep.subr.mxu0 0.0
    %2321 = vmatpush1.msra.mxu0 0.0
    %2322 = vmatprep.subr.mxu0 0.0
    %2323 = vmatpush1.msra.mxu0 0.0
    %2324 = vmatprep.mubr.f32.mxu0 0.0
    %2325 = vmatmul.mubr.f32.gmra.mrb[0].mxu0 %v2258
    %v2326 = vpop.f32.mrb[0].mxu0
    %v2327 = vadd.f32 %v420, %v2326
    %v2328 = vpop.f32.mrb[0].mxu0
    %2329 = vdwg.mxu0
    %s2330 = scalar_lea.vmem %s9, 10
    %2331 = vst.msk [vmem:[%s2330] sm:$0x3] %vm495, %v2327
    %s2332 = scalar_lea.vmem [#allocation2], 12
    %v2333 = vld [vmem:[%s2332] sm:$0x3]
    %2334 = vmatprep.subr.mxu0 0.0
    %2335 = vmatpush1.msra.mxu0 %v89
    %2336 = vmatprep.subr.mxu0 0.0
    %2337 = vmatpush1.msra.mxu0 %v90
    %2338 = vmatprep.subr.mxu0 0.0
    %2339 = vmatpush1.msra.mxu0 %v91
    %2340 = vmatprep.subr.mxu0 0.0
    %2341 = vmatpush1.msra.mxu0 %v92
    %2342 = vmatprep.subr.mxu0 0.0
    %2343 = vmatpush1.msra.mxu0 0.0
    %2344 = vmatprep.subr.mxu0 0.0
    %2345 = vmatpush1.msra.mxu0 0.0
    %2346 = vmatprep.subr.mxu0 0.0
    %2347 = vmatpush1.msra.mxu0 0.0
    %2348 = vmatprep.subr.mxu0 0.0
    %2349 = vmatpush1.msra.mxu0 0.0
    %2350 = vmatprep.subr.mxu0 0.0
    %2351 = vmatpush1.msra.mxu0 0.0
    %2352 = vmatprep.subr.mxu0 0.0
    %2353 = vmatpush1.msra.mxu0 0.0
    %2354 = vmatprep.subr.mxu0 0.0
    %2355 = vmatpush1.msra.mxu0 0.0
    %2356 = vmatprep.subr.mxu0 0.0
    %2357 = vmatpush1.msra.mxu0 0.0
    %2358 = vmatprep.subr.mxu0 0.0
    %2359 = vmatpush1.msra.mxu0 0.0
    %2360 = vmatprep.subr.mxu0 0.0
    %2361 = vmatpush1.msra.mxu0 0.0
    %2362 = vmatprep.subr.mxu0 0.0
    %2363 = vmatpush1.msra.mxu0 0.0
    %2364 = vmatprep.subr.mxu0 0.0
    %2365 = vmatpush1.msra.mxu0 0.0
    %2366 = vmatprep.subr.mxu0 0.0
    %2367 = vmatpush1.msra.mxu0 0.0
    %2368 = vmatprep.subr.mxu0 0.0
    %2369 = vmatpush1.msra.mxu0 0.0
    %2370 = vmatprep.subr.mxu0 0.0
    %2371 = vmatpush1.msra.mxu0 0.0
    %2372 = vmatprep.subr.mxu0 0.0
    %2373 = vmatpush1.msra.mxu0 0.0
    %2374 = vmatprep.subr.mxu0 0.0
    %2375 = vmatpush1.msra.mxu0 0.0
    %2376 = vmatprep.subr.mxu0 0.0
    %2377 = vmatpush1.msra.mxu0 0.0
    %2378 = vmatprep.subr.mxu0 0.0
    %2379 = vmatpush1.msra.mxu0 0.0
    %2380 = vmatprep.subr.mxu0 0.0
    %2381 = vmatpush1.msra.mxu0 0.0
    %2382 = vmatprep.subr.mxu0 0.0
    %2383 = vmatpush1.msra.mxu0 0.0
    %2384 = vmatprep.subr.mxu0 0.0
    %2385 = vmatpush1.msra.mxu0 0.0
    %2386 = vmatprep.subr.mxu0 0.0
    %2387 = vmatpush1.msra.mxu0 0.0
    %2388 = vmatprep.subr.mxu0 0.0
    %2389 = vmatpush1.msra.mxu0 0.0
    %2390 = vmatprep.subr.mxu0 0.0
    %2391 = vmatpush1.msra.mxu0 0.0
    %2392 = vmatprep.subr.mxu0 0.0
    %2393 = vmatpush1.msra.mxu0 0.0
    %2394 = vmatprep.subr.mxu0 0.0
    %2395 = vmatpush1.msra.mxu0 0.0
    %2396 = vmatprep.subr.mxu0 0.0
    %2397 = vmatpush1.msra.mxu0 0.0
    %2398 = vmatprep.mubr.f32.mxu0 0.0
    %2399 = vmatmul.mubr.f32.gmra.mrb[0].mxu0 %v2183
    %v2400 = vpop.f32.mrb[0].mxu0
    %v2401 = vadd.f32 0.0, %v2400
    %v2402 = vpop.f32.mrb[0].mxu0
    %2403 = vdwg.mxu0
    %v2405 = vsel %vm183, %v2333, 0
    %2407 = vmatprep.subr.mxu0 0.0
    %2408 = vmatpush1.msra.mxu0 %v87
    %2409 = vmatprep.subr.mxu0 0.0
    %2410 = vmatpush1.msra.mxu0 %v88
    %2411 = vmatprep.subr.mxu0 0.0
    %2412 = vmatpush1.msra.mxu0 0.0
    %2413 = vmatprep.subr.mxu0 0.0
    %2414 = vmatpush1.msra.mxu0 0.0
    %2415 = vmatprep.subr.mxu0 0.0
    %2416 = vmatpush1.msra.mxu0 0.0
    %2417 = vmatprep.subr.mxu0 0.0
    %2418 = vmatpush1.msra.mxu0 0.0
    %2419 = vmatprep.subr.mxu0 0.0
    %2420 = vmatpush1.msra.mxu0 0.0
    %2421 = vmatprep.subr.mxu0 0.0
    %2422 = vmatpush1.msra.mxu0 0.0
    %2423 = vmatprep.subr.mxu0 0.0
    %2424 = vmatpush1.msra.mxu0 0.0
    %2425 = vmatprep.subr.mxu0 0.0
    %2426 = vmatpush1.msra.mxu0 0.0
    %2427 = vmatprep.subr.mxu0 0.0
    %2428 = vmatpush1.msra.mxu0 0.0
    %2429 = vmatprep.subr.mxu0 0.0
    %2430 = vmatpush1.msra.mxu0 0.0
    %2431 = vmatprep.subr.mxu0 0.0
    %2432 = vmatpush1.msra.mxu0 0.0
    %2433 = vmatprep.subr.mxu0 0.0
    %2434 = vmatpush1.msra.mxu0 0.0
    %2435 = vmatprep.subr.mxu0 0.0
    %2436 = vmatpush1.msra.mxu0 0.0
    %2437 = vmatprep.subr.mxu0 0.0
    %2438 = vmatpush1.msra.mxu0 0.0
    %2439 = vmatprep.subr.mxu0 0.0
    %2440 = vmatpush1.msra.mxu0 0.0
    %2441 = vmatprep.subr.mxu0 0.0
    %2442 = vmatpush1.msra.mxu0 0.0
    %2443 = vmatprep.subr.mxu0 0.0
    %2444 = vmatpush1.msra.mxu0 0.0
    %2445 = vmatprep.subr.mxu0 0.0
    %2446 = vmatpush1.msra.mxu0 0.0
    %2447 = vmatprep.subr.mxu0 0.0
    %2448 = vmatpush1.msra.mxu0 0.0
    %2449 = vmatprep.subr.mxu0 0.0
    %2450 = vmatpush1.msra.mxu0 0.0
    %2451 = vmatprep.subr.mxu0 0.0
    %2452 = vmatpush1.msra.mxu0 0.0
    %2453 = vmatprep.subr.mxu0 0.0
    %2454 = vmatpush1.msra.mxu0 0.0
    %2455 = vmatprep.subr.mxu0 0.0
    %2456 = vmatpush1.msra.mxu0 0.0
    %2457 = vmatprep.subr.mxu0 0.0
    %2458 = vmatpush1.msra.mxu0 0.0
    %2459 = vmatprep.subr.mxu0 0.0
    %2460 = vmatpush1.msra.mxu0 0.0
    %2461 = vmatprep.subr.mxu0 0.0
    %2462 = vmatpush1.msra.mxu0 0.0
    %2463 = vmatprep.subr.mxu0 0.0
    %2464 = vmatpush1.msra.mxu0 0.0
    %2465 = vmatprep.subr.mxu0 0.0
    %2466 = vmatpush1.msra.mxu0 0.0
    %2467 = vmatprep.subr.mxu0 0.0
    %2468 = vmatpush1.msra.mxu0 0.0
    %2469 = vmatprep.subr.mxu0 0.0
    %2470 = vmatpush1.msra.mxu0 0.0
    %2471 = vmatprep.mubr.f32.mxu0 0.0
    %2472 = vmatmul.mubr.f32.gmra.mrb[0].mxu0 %v2405
    %v2473 = vpop.f32.mrb[0].mxu0
    %v2474 = vadd.f32 %v2401, %v2473
    %v2475 = vpop.f32.mrb[0].mxu0
    %2476 = vdwg.mxu0
    %v2477 = vadd.f32 %v2474, %v261
    %v2478 = vtanh.pop %v2477
    %2479 = vmatprep.subr.mxu0 0.0
    %2480 = vmatpush1.msra.mxu0 %v98
    %2481 = vmatprep.subr.mxu0 0.0
    %2482 = vmatpush1.msra.mxu0 %v99
    %2483 = vmatprep.subr.mxu0 0.0
    %2484 = vmatpush1.msra.mxu0 %v100
    %2485 = vmatprep.subr.mxu0 0.0
    %2486 = vmatpush1.msra.mxu0 %v101
    %2487 = vmatprep.subr.mxu0 0.0
    %2488 = vmatpush1.msra.mxu0 0.0
    %2489 = vmatprep.subr.mxu0 0.0
    %2490 = vmatpush1.msra.mxu0 0.0
    %2491 = vmatprep.subr.mxu0 0.0
    %2492 = vmatpush1.msra.mxu0 0.0
    %2493 = vmatprep.subr.mxu0 0.0
    %2494 = vmatpush1.msra.mxu0 0.0
    %2495 = vmatprep.subr.mxu0 0.0
    %2496 = vmatpush1.msra.mxu0 0.0
    %2497 = vmatprep.subr.mxu0 0.0
    %2498 = vmatpush1.msra.mxu0 0.0
    %2499 = vmatprep.subr.mxu0 0.0
    %2500 = vmatpush1.msra.mxu0 0.0
    %2501 = vmatprep.subr.mxu0 0.0
    %2502 = vmatpush1.msra.mxu0 0.0
    %2503 = vmatprep.subr.mxu0 0.0
    %2504 = vmatpush1.msra.mxu0 0.0
    %2505 = vmatprep.subr.mxu0 0.0
    %2506 = vmatpush1.msra.mxu0 0.0
    %2507 = vmatprep.subr.mxu0 0.0
    %2508 = vmatpush1.msra.mxu0 0.0
    %2509 = vmatprep.subr.mxu0 0.0
    %2510 = vmatpush1.msra.mxu0 0.0
    %2511 = vmatprep.subr.mxu0 0.0
    %2512 = vmatpush1.msra.mxu0 0.0
    %2513 = vmatprep.subr.mxu0 0.0
    %2514 = vmatpush1.msra.mxu0 0.0
    %2515 = vmatprep.subr.mxu0 0.0
    %2516 = vmatpush1.msra.mxu0 0.0
    %2517 = vmatprep.subr.mxu0 0.0
    %2518 = vmatpush1.msra.mxu0 0.0
    %2519 = vmatprep.subr.mxu0 0.0
    %2520 = vmatpush1.msra.mxu0 0.0
    %2521 = vmatprep.subr.mxu0 0.0
    %2522 = vmatpush1.msra.mxu0 0.0
    %2523 = vmatprep.subr.mxu0 0.0
    %2524 = vmatpush1.msra.mxu0 0.0
    %2525 = vmatprep.subr.mxu0 0.0
    %2526 = vmatpush1.msra.mxu0 0.0
    %2527 = vmatprep.subr.mxu0 0.0
    %2528 = vmatpush1.msra.mxu0 0.0
    %2529 = vmatprep.subr.mxu0 0.0
    %2530 = vmatpush1.msra.mxu0 0.0
    %2531 = vmatprep.subr.mxu0 0.0
    %2532 = vmatpush1.msra.mxu0 0.0
    %2533 = vmatprep.subr.mxu0 0.0
    %2534 = vmatpush1.msra.mxu0 0.0
    %2535 = vmatprep.subr.mxu0 0.0
    %2536 = vmatpush1.msra.mxu0 0.0
    %2537 = vmatprep.subr.mxu0 0.0
    %2538 = vmatpush1.msra.mxu0 0.0
    %2539 = vmatprep.subr.mxu0 0.0
    %2540 = vmatpush1.msra.mxu0 0.0
    %2541 = vmatprep.subr.mxu0 0.0
    %2542 = vmatpush1.msra.mxu0 0.0
    %2543 = vmatprep.mubr.f32.mxu0 0.0
    %2544 = vmatmul.mubr.f32.gmra.mrb[0].mxu0 %v2258
    %v2545 = vpop.f32.mrb[0].mxu0
    %v2546 = vadd.f32 0.0, %v2545
    %v2547 = vpop.f32.mrb[0].mxu0
    %2548 = vdwg.mxu0
    %v2550 = vsel %vm109, %v2478, 0
    %2552 = vmatprep.subr.mxu0 0.0
    %2553 = vmatpush1.msra.mxu0 %v94
    %2554 = vmatprep.subr.mxu0 0.0
    %2555 = vmatpush1.msra.mxu0 %v95
    %2556 = vmatprep.subr.mxu0 0.0
    %2557 = vmatpush1.msra.mxu0 %v96
    %2558 = vmatprep.subr.mxu0 0.0
    %2559 = vmatpush1.msra.mxu0 %v97
    %2560 = vmatprep.subr.mxu0 0.0
    %2561 = vmatpush1.msra.mxu0 0.0
    %2562 = vmatprep.subr.mxu0 0.0
    %2563 = vmatpush1.msra.mxu0 0.0
    %2564 = vmatprep.subr.mxu0 0.0
    %2565 = vmatpush1.msra.mxu0 0.0
    %2566 = vmatprep.subr.mxu0 0.0
    %2567 = vmatpush1.msra.mxu0 0.0
    %2568 = vmatprep.subr.mxu0 0.0
    %2569 = vmatpush1.msra.mxu0 0.0
    %2570 = vmatprep.subr.mxu0 0.0
    %2571 = vmatpush1.msra.mxu0 0.0
    %2572 = vmatprep.subr.mxu0 0.0
    %2573 = vmatpush1.msra.mxu0 0.0
    %2574 = vmatprep.subr.mxu0 0.0
    %2575 = vmatpush1.msra.mxu0 0.0
    %2576 = vmatprep.subr.mxu0 0.0
    %2577 = vmatpush1.msra.mxu0 0.0
    %2578 = vmatprep.subr.mxu0 0.0
    %2579 = vmatpush1.msra.mxu0 0.0
    %2580 = vmatprep.subr.mxu0 0.0
    %2581 = vmatpush1.msra.mxu0 0.0
    %2582 = vmatprep.subr.mxu0 0.0
    %2583 = vmatpush1.msra.mxu0 0.0
    %2584 = vmatprep.subr.mxu0 0.0
    %2585 = vmatpush1.msra.mxu0 0.0
    %2586 = vmatprep.subr.mxu0 0.0
    %2587 = vmatpush1.msra.mxu0 0.0
    %2588 = vmatprep.subr.mxu0 0.0
    %2589 = vmatpush1.msra.mxu0 0.0
    %2590 = vmatprep.subr.mxu0 0.0
    %2591 = vmatpush1.msra.mxu0 0.0
    %2592 = vmatprep.subr.mxu0 0.0
    %2593 = vmatpush1.msra.mxu0 0.0
    %2594 = vmatprep.subr.mxu0 0.0
    %2595 = vmatpush1.msra.mxu0 0.0
    %2596 = vmatprep.subr.mxu0 0.0
    %2597 = vmatpush1.msra.mxu0 0.0
    %2598 = vmatprep.subr.mxu0 0.0
    %2599 = vmatpush1.msra.mxu0 0.0
    %2600 = vmatprep.subr.mxu0 0.0
    %2601 = vmatpush1.msra.mxu0 0.0
    %2602 = vmatprep.subr.mxu0 0.0
    %2603 = vmatpush1.msra.mxu0 0.0
    %2604 = vmatprep.subr.mxu0 0.0
    %2605 = vmatpush1.msra.mxu0 0.0
    %2606 = vmatprep.subr.mxu0 0.0
    %2607 = vmatpush1.msra.mxu0 0.0
    %2608 = vmatprep.subr.mxu0 0.0
    %2609 = vmatpush1.msra.mxu0 0.0
    %2610 = vmatprep.subr.mxu0 0.0
    %2611 = vmatpush1.msra.mxu0 0.0
    %2612 = vmatprep.subr.mxu0 0.0
    %2613 = vmatpush1.msra.mxu0 0.0
    %2614 = vmatprep.subr.mxu0 0.0
    %2615 = vmatpush1.msra.mxu0 0.0
    %2616 = vmatprep.mubr.f32.mxu0 0.0
    %2617 = vmatmul.mubr.f32.gmra.mrb[0].mxu0 %v2550
    %v2618 = vpop.f32.mrb[0].mxu0
    %v2619 = vadd.f32 %v2546, %v2618
    %v2620 = vpop.f32.mrb[0].mxu0
    %2621 = vdwg.mxu0
    %v2622 = vadd.f32 %v2619, %v412
    %v2623 = vtanh.pop %v2622
    %v2625 = vsel %vm109, %v2623, 0
    %2627 = vmatprep.subr.mxu0 0.0
    %2628 = vmatpush1.msra.mxu0 %v103
    %2629 = vmatprep.subr.mxu0 0.0
    %2630 = vmatpush1.msra.mxu0 %v104
    %2631 = vmatprep.subr.mxu0 0.0
    %2632 = vmatpush1.msra.mxu0 %v105
    %2633 = vmatprep.subr.mxu0 0.0
    %2634 = vmatpush1.msra.mxu0 %v106
    %2635 = vmatprep.subr.mxu0 0.0
    %2636 = vmatpush1.msra.mxu0 0.0
    %2637 = vmatprep.subr.mxu0 0.0
    %2638 = vmatpush1.msra.mxu0 0.0
    %2639 = vmatprep.subr.mxu0 0.0
    %2640 = vmatpush1.msra.mxu0 0.0
    %2641 = vmatprep.subr.mxu0 0.0
    %2642 = vmatpush1.msra.mxu0 0.0
    %2643 = vmatprep.subr.mxu0 0.0
    %2644 = vmatpush1.msra.mxu0 0.0
    %2645 = vmatprep.subr.mxu0 0.0
    %2646 = vmatpush1.msra.mxu0 0.0
    %2647 = vmatprep.subr.mxu0 0.0
    %2648 = vmatpush1.msra.mxu0 0.0
    %2649 = vmatprep.subr.mxu0 0.0
    %2650 = vmatpush1.msra.mxu0 0.0
    %2651 = vmatprep.subr.mxu0 0.0
    %2652 = vmatpush1.msra.mxu0 0.0
    %2653 = vmatprep.subr.mxu0 0.0
    %2654 = vmatpush1.msra.mxu0 0.0
    %2655 = vmatprep.subr.mxu0 0.0
    %2656 = vmatpush1.msra.mxu0 0.0
    %2657 = vmatprep.subr.mxu0 0.0
    %2658 = vmatpush1.msra.mxu0 0.0
    %2659 = vmatprep.subr.mxu0 0.0
    %2660 = vmatpush1.msra.mxu0 0.0
    %2661 = vmatprep.subr.mxu0 0.0
    %2662 = vmatpush1.msra.mxu0 0.0
    %2663 = vmatprep.subr.mxu0 0.0
    %2664 = vmatpush1.msra.mxu0 0.0
    %2665 = vmatprep.subr.mxu0 0.0
    %2666 = vmatpush1.msra.mxu0 0.0
    %2667 = vmatprep.subr.mxu0 0.0
    %2668 = vmatpush1.msra.mxu0 0.0
    %2669 = vmatprep.subr.mxu0 0.0
    %2670 = vmatpush1.msra.mxu0 0.0
    %2671 = vmatprep.subr.mxu0 0.0
    %2672 = vmatpush1.msra.mxu0 0.0
    %2673 = vmatprep.subr.mxu0 0.0
    %2674 = vmatpush1.msra.mxu0 0.0
    %2675 = vmatprep.subr.mxu0 0.0
    %2676 = vmatpush1.msra.mxu0 0.0
    %2677 = vmatprep.subr.mxu0 0.0
    %2678 = vmatpush1.msra.mxu0 0.0
    %2679 = vmatprep.subr.mxu0 0.0
    %2680 = vmatpush1.msra.mxu0 0.0
    %2681 = vmatprep.subr.mxu0 0.0
    %2682 = vmatpush1.msra.mxu0 0.0
    %2683 = vmatprep.subr.mxu0 0.0
    %2684 = vmatpush1.msra.mxu0 0.0
    %2685 = vmatprep.subr.mxu0 0.0
    %2686 = vmatpush1.msra.mxu0 0.0
    %2687 = vmatprep.subr.mxu0 0.0
    %2688 = vmatpush1.msra.mxu0 0.0
    %2689 = vmatprep.subr.mxu0 0.0
    %2690 = vmatpush1.msra.mxu0 0.0
    %2691 = vmatprep.mubr.f32.mxu0 0.0
    %2692 = vmatmul.mubr.f32.gmra.mrb[0].mxu0 %v2625
    %v2693 = vpop.f32.mrb[0].mxu0
    %v2694 = vadd.f32 %v420, %v2693
    %v2695 = vpop.f32.mrb[0].mxu0
    %2696 = vdwg.mxu0
    %s2697 = scalar_lea.vmem %s9, 12
    %2698 = vst.msk [vmem:[%s2697] sm:$0x3] %vm495, %v2694
    %s2699 = scalar_lea.vmem [#allocation2], 14
    %v2700 = vld [vmem:[%s2699] sm:$0x3]
    %2701 = vmatprep.subr.mxu0 0.0
    %2702 = vmatpush1.msra.mxu0 %v89
    %2703 = vmatprep.subr.mxu0 0.0
    %2704 = vmatpush1.msra.mxu0 %v90
    %2705 = vmatprep.subr.mxu0 0.0
    %2706 = vmatpush1.msra.mxu0 %v91
    %2707 = vmatprep.subr.mxu0 0.0
    %2708 = vmatpush1.msra.mxu0 %v92
    %2709 = vmatprep.subr.mxu0 0.0
    %2710 = vmatpush1.msra.mxu0 0.0
    %2711 = vmatprep.subr.mxu0 0.0
    %2712 = vmatpush1.msra.mxu0 0.0
    %2713 = vmatprep.subr.mxu0 0.0
    %2714 = vmatpush1.msra.mxu0 0.0
    %2715 = vmatprep.subr.mxu0 0.0
    %2716 = vmatpush1.msra.mxu0 0.0
    %2717 = vmatprep.subr.mxu0 0.0
    %2718 = vmatpush1.msra.mxu0 0.0
    %2719 = vmatprep.subr.mxu0 0.0
    %2720 = vmatpush1.msra.mxu0 0.0
    %2721 = vmatprep.subr.mxu0 0.0
    %2722 = vmatpush1.msra.mxu0 0.0
    %2723 = vmatprep.subr.mxu0 0.0
    %2724 = vmatpush1.msra.mxu0 0.0
    %2725 = vmatprep.subr.mxu0 0.0
    %2726 = vmatpush1.msra.mxu0 0.0
    %2727 = vmatprep.subr.mxu0 0.0
    %2728 = vmatpush1.msra.mxu0 0.0
    %2729 = vmatprep.subr.mxu0 0.0
    %2730 = vmatpush1.msra.mxu0 0.0
    %2731 = vmatprep.subr.mxu0 0.0
    %2732 = vmatpush1.msra.mxu0 0.0
    %2733 = vmatprep.subr.mxu0 0.0
    %2734 = vmatpush1.msra.mxu0 0.0
    %2735 = vmatprep.subr.mxu0 0.0
    %2736 = vmatpush1.msra.mxu0 0.0
    %2737 = vmatprep.subr.mxu0 0.0
    %2738 = vmatpush1.msra.mxu0 0.0
    %2739 = vmatprep.subr.mxu0 0.0
    %2740 = vmatpush1.msra.mxu0 0.0
    %2741 = vmatprep.subr.mxu0 0.0
    %2742 = vmatpush1.msra.mxu0 0.0
    %2743 = vmatprep.subr.mxu0 0.0
    %2744 = vmatpush1.msra.mxu0 0.0
    %2745 = vmatprep.subr.mxu0 0.0
    %2746 = vmatpush1.msra.mxu0 0.0
    %2747 = vmatprep.subr.mxu0 0.0
    %2748 = vmatpush1.msra.mxu0 0.0
    %2749 = vmatprep.subr.mxu0 0.0
    %2750 = vmatpush1.msra.mxu0 0.0
    %2751 = vmatprep.subr.mxu0 0.0
    %2752 = vmatpush1.msra.mxu0 0.0
    %2753 = vmatprep.subr.mxu0 0.0
    %2754 = vmatpush1.msra.mxu0 0.0
    %2755 = vmatprep.subr.mxu0 0.0
    %2756 = vmatpush1.msra.mxu0 0.0
    %2757 = vmatprep.subr.mxu0 0.0
    %2758 = vmatpush1.msra.mxu0 0.0
    %2759 = vmatprep.subr.mxu0 0.0
    %2760 = vmatpush1.msra.mxu0 0.0
    %2761 = vmatprep.subr.mxu0 0.0
    %2762 = vmatpush1.msra.mxu0 0.0
    %2763 = vmatprep.subr.mxu0 0.0
    %2764 = vmatpush1.msra.mxu0 0.0
    %2765 = vmatprep.mubr.f32.mxu0 0.0
    %2766 = vmatmul.mubr.f32.gmra.mrb[0].mxu0 %v2550
    %v2767 = vpop.f32.mrb[0].mxu0
    %v2768 = vadd.f32 0.0, %v2767
    %v2769 = vpop.f32.mrb[0].mxu0
    %2770 = vdwg.mxu0
    %v2772 = vsel %vm183, %v2700, 0
    %2774 = vmatprep.subr.mxu0 0.0
    %2775 = vmatpush1.msra.mxu0 %v87
    %2776 = vmatprep.subr.mxu0 0.0
    %2777 = vmatpush1.msra.mxu0 %v88
    %2778 = vmatprep.subr.mxu0 0.0
    %2779 = vmatpush1.msra.mxu0 0.0
    %2780 = vmatprep.subr.mxu0 0.0
    %2781 = vmatpush1.msra.mxu0 0.0
    %2782 = vmatprep.subr.mxu0 0.0
    %2783 = vmatpush1.msra.mxu0 0.0
    %2784 = vmatprep.subr.mxu0 0.0
    %2785 = vmatpush1.msra.mxu0 0.0
    %2786 = vmatprep.subr.mxu0 0.0
    %2787 = vmatpush1.msra.mxu0 0.0
    %2788 = vmatprep.subr.mxu0 0.0
    %2789 = vmatpush1.msra.mxu0 0.0
    %2790 = vmatprep.subr.mxu0 0.0
    %2791 = vmatpush1.msra.mxu0 0.0
    %2792 = vmatprep.subr.mxu0 0.0
    %2793 = vmatpush1.msra.mxu0 0.0
    %2794 = vmatprep.subr.mxu0 0.0
    %2795 = vmatpush1.msra.mxu0 0.0
    %2796 = vmatprep.subr.mxu0 0.0
    %2797 = vmatpush1.msra.mxu0 0.0
    %2798 = vmatprep.subr.mxu0 0.0
    %2799 = vmatpush1.msra.mxu0 0.0
    %2800 = vmatprep.subr.mxu0 0.0
    %2801 = vmatpush1.msra.mxu0 0.0
    %2802 = vmatprep.subr.mxu0 0.0
    %2803 = vmatpush1.msra.mxu0 0.0
    %2804 = vmatprep.subr.mxu0 0.0
    %2805 = vmatpush1.msra.mxu0 0.0
    %2806 = vmatprep.subr.mxu0 0.0
    %2807 = vmatpush1.msra.mxu0 0.0
    %2808 = vmatprep.subr.mxu0 0.0
    %2809 = vmatpush1.msra.mxu0 0.0
    %2810 = vmatprep.subr.mxu0 0.0
    %2811 = vmatpush1.msra.mxu0 0.0
    %2812 = vmatprep.subr.mxu0 0.0
    %2813 = vmatpush1.msra.mxu0 0.0
    %2814 = vmatprep.subr.mxu0 0.0
    %2815 = vmatpush1.msra.mxu0 0.0
    %2816 = vmatprep.subr.mxu0 0.0
    %2817 = vmatpush1.msra.mxu0 0.0
    %2818 = vmatprep.subr.mxu0 0.0
    %2819 = vmatpush1.msra.mxu0 0.0
    %2820 = vmatprep.subr.mxu0 0.0
    %2821 = vmatpush1.msra.mxu0 0.0
    %2822 = vmatprep.subr.mxu0 0.0
    %2823 = vmatpush1.msra.mxu0 0.0
    %2824 = vmatprep.subr.mxu0 0.0
    %2825 = vmatpush1.msra.mxu0 0.0
    %2826 = vmatprep.subr.mxu0 0.0
    %2827 = vmatpush1.msra.mxu0 0.0
    %2828 = vmatprep.subr.mxu0 0.0
    %2829 = vmatpush1.msra.mxu0 0.0
    %2830 = vmatprep.subr.mxu0 0.0
    %2831 = vmatpush1.msra.mxu0 0.0
    %2832 = vmatprep.subr.mxu0 0.0
    %2833 = vmatpush1.msra.mxu0 0.0
    %2834 = vmatprep.subr.mxu0 0.0
    %2835 = vmatpush1.msra.mxu0 0.0
    %2836 = vmatprep.subr.mxu0 0.0
    %2837 = vmatpush1.msra.mxu0 0.0
    %2838 = vmatprep.mubr.f32.mxu0 0.0
    %2839 = vmatmul.mubr.f32.gmra.mrb[0].mxu0 %v2772
    %v2840 = vpop.f32.mrb[0].mxu0
    %v2841 = vadd.f32 %v2768, %v2840
    %v2842 = vpop.f32.mrb[0].mxu0
    %2843 = vdwg.mxu0
    %v2844 = vadd.f32 %v2841, %v261
    %v2845 = vtanh.pop %v2844
    %2846 = vmatprep.subr.mxu0 0.0
    %2847 = vmatpush1.msra.mxu0 %v98
    %2848 = vmatprep.subr.mxu0 0.0
    %2849 = vmatpush1.msra.mxu0 %v99
    %2850 = vmatprep.subr.mxu0 0.0
    %2851 = vmatpush1.msra.mxu0 %v100
    %2852 = vmatprep.subr.mxu0 0.0
    %2853 = vmatpush1.msra.mxu0 %v101
    %2854 = vmatprep.subr.mxu0 0.0
    %2855 = vmatpush1.msra.mxu0 0.0
    %2856 = vmatprep.subr.mxu0 0.0
    %2857 = vmatpush1.msra.mxu0 0.0
    %2858 = vmatprep.subr.mxu0 0.0
    %2859 = vmatpush1.msra.mxu0 0.0
    %2860 = vmatprep.subr.mxu0 0.0
    %2861 = vmatpush1.msra.mxu0 0.0
    %2862 = vmatprep.subr.mxu0 0.0
    %2863 = vmatpush1.msra.mxu0 0.0
    %2864 = vmatprep.subr.mxu0 0.0
    %2865 = vmatpush1.msra.mxu0 0.0
    %2866 = vmatprep.subr.mxu0 0.0
    %2867 = vmatpush1.msra.mxu0 0.0
    %2868 = vmatprep.subr.mxu0 0.0
    %2869 = vmatpush1.msra.mxu0 0.0
    %2870 = vmatprep.subr.mxu0 0.0
    %2871 = vmatpush1.msra.mxu0 0.0
    %2872 = vmatprep.subr.mxu0 0.0
    %2873 = vmatpush1.msra.mxu0 0.0
    %2874 = vmatprep.subr.mxu0 0.0
    %2875 = vmatpush1.msra.mxu0 0.0
    %2876 = vmatprep.subr.mxu0 0.0
    %2877 = vmatpush1.msra.mxu0 0.0
    %2878 = vmatprep.subr.mxu0 0.0
    %2879 = vmatpush1.msra.mxu0 0.0
    %2880 = vmatprep.subr.mxu0 0.0
    %2881 = vmatpush1.msra.mxu0 0.0
    %2882 = vmatprep.subr.mxu0 0.0
    %2883 = vmatpush1.msra.mxu0 0.0
    %2884 = vmatprep.subr.mxu0 0.0
    %2885 = vmatpush1.msra.mxu0 0.0
    %2886 = vmatprep.subr.mxu0 0.0
    %2887 = vmatpush1.msra.mxu0 0.0
    %2888 = vmatprep.subr.mxu0 0.0
    %2889 = vmatpush1.msra.mxu0 0.0
    %2890 = vmatprep.subr.mxu0 0.0
    %2891 = vmatpush1.msra.mxu0 0.0
    %2892 = vmatprep.subr.mxu0 0.0
    %2893 = vmatpush1.msra.mxu0 0.0
    %2894 = vmatprep.subr.mxu0 0.0
    %2895 = vmatpush1.msra.mxu0 0.0
    %2896 = vmatprep.subr.mxu0 0.0
    %2897 = vmatpush1.msra.mxu0 0.0
    %2898 = vmatprep.subr.mxu0 0.0
    %2899 = vmatpush1.msra.mxu0 0.0
    %2900 = vmatprep.subr.mxu0 0.0
    %2901 = vmatpush1.msra.mxu0 0.0
    %2902 = vmatprep.subr.mxu0 0.0
    %2903 = vmatpush1.msra.mxu0 0.0
    %2904 = vmatprep.subr.mxu0 0.0
    %2905 = vmatpush1.msra.mxu0 0.0
    %2906 = vmatprep.subr.mxu0 0.0
    %2907 = vmatpush1.msra.mxu0 0.0
    %2908 = vmatprep.subr.mxu0 0.0
    %2909 = vmatpush1.msra.mxu0 0.0
    %2910 = vmatprep.mubr.f32.mxu0 0.0
    %2911 = vmatmul.mubr.f32.gmra.mrb[0].mxu0 %v2625
    %v2912 = vpop.f32.mrb[0].mxu0
    %v2913 = vadd.f32 0.0, %v2912
    %v2914 = vpop.f32.mrb[0].mxu0
    %2915 = vdwg.mxu0
    %v2917 = vsel %vm109, %v2845, 0
    %2919 = vmatprep.subr.mxu0 0.0
    %2920 = vmatpush1.msra.mxu0 %v94
    %2921 = vmatprep.subr.mxu0 0.0
    %2922 = vmatpush1.msra.mxu0 %v95
    %2923 = vmatprep.subr.mxu0 0.0
    %2924 = vmatpush1.msra.mxu0 %v96
    %2925 = vmatprep.subr.mxu0 0.0
    %2926 = vmatpush1.msra.mxu0 %v97
    %2927 = vmatprep.subr.mxu0 0.0
    %2928 = vmatpush1.msra.mxu0 0.0
    %2929 = vmatprep.subr.mxu0 0.0
    %2930 = vmatpush1.msra.mxu0 0.0
    %2931 = vmatprep.subr.mxu0 0.0
    %2932 = vmatpush1.msra.mxu0 0.0
    %2933 = vmatprep.subr.mxu0 0.0
    %2934 = vmatpush1.msra.mxu0 0.0
    %2935 = vmatprep.subr.mxu0 0.0
    %2936 = vmatpush1.msra.mxu0 0.0
    %2937 = vmatprep.subr.mxu0 0.0
    %2938 = vmatpush1.msra.mxu0 0.0
    %2939 = vmatprep.subr.mxu0 0.0
    %2940 = vmatpush1.msra.mxu0 0.0
    %2941 = vmatprep.subr.mxu0 0.0
    %2942 = vmatpush1.msra.mxu0 0.0
    %2943 = vmatprep.subr.mxu0 0.0
    %2944 = vmatpush1.msra.mxu0 0.0
    %2945 = vmatprep.subr.mxu0 0.0
    %2946 = vmatpush1.msra.mxu0 0.0
    %2947 = vmatprep.subr.mxu0 0.0
    %2948 = vmatpush1.msra.mxu0 0.0
    %2949 = vmatprep.subr.mxu0 0.0
    %2950 = vmatpush1.msra.mxu0 0.0
    %2951 = vmatprep.subr.mxu0 0.0
    %2952 = vmatpush1.msra.mxu0 0.0
    %2953 = vmatprep.subr.mxu0 0.0
    %2954 = vmatpush1.msra.mxu0 0.0
    %2955 = vmatprep.subr.mxu0 0.0
    %2956 = vmatpush1.msra.mxu0 0.0
    %2957 = vmatprep.subr.mxu0 0.0
    %2958 = vmatpush1.msra.mxu0 0.0
    %2959 = vmatprep.subr.mxu0 0.0
    %2960 = vmatpush1.msra.mxu0 0.0
    %2961 = vmatprep.subr.mxu0 0.0
    %2962 = vmatpush1.msra.mxu0 0.0
    %2963 = vmatprep.subr.mxu0 0.0
    %2964 = vmatpush1.msra.mxu0 0.0
    %2965 = vmatprep.subr.mxu0 0.0
    %2966 = vmatpush1.msra.mxu0 0.0
    %2967 = vmatprep.subr.mxu0 0.0
    %2968 = vmatpush1.msra.mxu0 0.0
    %2969 = vmatprep.subr.mxu0 0.0
    %2970 = vmatpush1.msra.mxu0 0.0
    %2971 = vmatprep.subr.mxu0 0.0
    %2972 = vmatpush1.msra.mxu0 0.0
    %2973 = vmatprep.subr.mxu0 0.0
    %2974 = vmatpush1.msra.mxu0 0.0
    %2975 = vmatprep.subr.mxu0 0.0
    %2976 = vmatpush1.msra.mxu0 0.0
    %2977 = vmatprep.subr.mxu0 0.0
    %2978 = vmatpush1.msra.mxu0 0.0
    %2979 = vmatprep.subr.mxu0 0.0
    %2980 = vmatpush1.msra.mxu0 0.0
    %2981 = vmatprep.subr.mxu0 0.0
    %2982 = vmatpush1.msra.mxu0 0.0
    %2983 = vmatprep.mubr.f32.mxu0 0.0
    %2984 = vmatmul.mubr.f32.gmra.mrb[0].mxu0 %v2917
    %v2985 = vpop.f32.mrb[0].mxu0
    %v2986 = vadd.f32 %v2913, %v2985
    %v2987 = vpop.f32.mrb[0].mxu0
    %2988 = vdwg.mxu0
    %v2989 = vadd.f32 %v2986, %v412
    %v2990 = vtanh.pop %v2989
    %v2992 = vsel %vm109, %v2990, 0
    %2994 = vmatprep.subr.mxu0 0.0
    %2995 = vmatpush1.msra.mxu0 %v103
    %2996 = vmatprep.subr.mxu0 0.0
    %2997 = vmatpush1.msra.mxu0 %v104
    %2998 = vmatprep.subr.mxu0 0.0
    %2999 = vmatpush1.msra.mxu0 %v105
    %3000 = vmatprep.subr.mxu0 0.0
    %3001 = vmatpush1.msra.mxu0 %v106
    %3002 = vmatprep.subr.mxu0 0.0
    %3003 = vmatpush1.msra.mxu0 0.0
    %3004 = vmatprep.subr.mxu0 0.0
    %3005 = vmatpush1.msra.mxu0 0.0
    %3006 = vmatprep.subr.mxu0 0.0
    %3007 = vmatpush1.msra.mxu0 0.0
    %3008 = vmatprep.subr.mxu0 0.0
    %3009 = vmatpush1.msra.mxu0 0.0
    %3010 = vmatprep.subr.mxu0 0.0
    %3011 = vmatpush1.msra.mxu0 0.0
    %3012 = vmatprep.subr.mxu0 0.0
    %3013 = vmatpush1.msra.mxu0 0.0
    %3014 = vmatprep.subr.mxu0 0.0
    %3015 = vmatpush1.msra.mxu0 0.0
    %3016 = vmatprep.subr.mxu0 0.0
    %3017 = vmatpush1.msra.mxu0 0.0
    %3018 = vmatprep.subr.mxu0 0.0
    %3019 = vmatpush1.msra.mxu0 0.0
    %3020 = vmatprep.subr.mxu0 0.0
    %3021 = vmatpush1.msra.mxu0 0.0
    %3022 = vmatprep.subr.mxu0 0.0
    %3023 = vmatpush1.msra.mxu0 0.0
    %3024 = vmatprep.subr.mxu0 0.0
    %3025 = vmatpush1.msra.mxu0 0.0
    %3026 = vmatprep.subr.mxu0 0.0
    %3027 = vmatpush1.msra.mxu0 0.0
    %3028 = vmatprep.subr.mxu0 0.0
    %3029 = vmatpush1.msra.mxu0 0.0
    %3030 = vmatprep.subr.mxu0 0.0
    %3031 = vmatpush1.msra.mxu0 0.0
    %3032 = vmatprep.subr.mxu0 0.0
    %3033 = vmatpush1.msra.mxu0 0.0
    %3034 = vmatprep.subr.mxu0 0.0
    %3035 = vmatpush1.msra.mxu0 0.0
    %3036 = vmatprep.subr.mxu0 0.0
    %3037 = vmatpush1.msra.mxu0 0.0
    %3038 = vmatprep.subr.mxu0 0.0
    %3039 = vmatpush1.msra.mxu0 0.0
    %3040 = vmatprep.subr.mxu0 0.0
    %3041 = vmatpush1.msra.mxu0 0.0
    %3042 = vmatprep.subr.mxu0 0.0
    %3043 = vmatpush1.msra.mxu0 0.0
    %3044 = vmatprep.subr.mxu0 0.0
    %3045 = vmatpush1.msra.mxu0 0.0
    %3046 = vmatprep.subr.mxu0 0.0
    %3047 = vmatpush1.msra.mxu0 0.0
    %3048 = vmatprep.subr.mxu0 0.0
    %3049 = vmatpush1.msra.mxu0 0.0
    %3050 = vmatprep.subr.mxu0 0.0
    %3051 = vmatpush1.msra.mxu0 0.0
    %3052 = vmatprep.subr.mxu0 0.0
    %3053 = vmatpush1.msra.mxu0 0.0
    %3054 = vmatprep.subr.mxu0 0.0
    %3055 = vmatpush1.msra.mxu0 0.0
    %3056 = vmatprep.subr.mxu0 0.0
    %3057 = vmatpush1.msra.mxu0 0.0
    %3058 = vmatprep.mubr.f32.mxu0 0.0
    %3059 = vmatmul.mubr.f32.gmra.mrb[0].mxu0 %v2992
    %v3060 = vpop.f32.mrb[0].mxu0
    %v3061 = vadd.f32 %v420, %v3060
    %v3062 = vpop.f32.mrb[0].mxu0
    %3063 = vdwg.mxu0
    %s3064 = scalar_lea.vmem %s9, 14
    %3065 = vst.msk [vmem:[%s3064] sm:$0x3] %vm495, %v3061
    // Predicated region
    $region54: #{tpu_custom_call.1} parent=1 // pred_check
      _
    $region55: #{tpu_custom_call.1} parent=1 // pred_check_branch
      %3067 = sbr.rel (0) target = $region57
    $region56: #{tpu_custom_call.1} parent=1 // pred_region
      _
    $region57: #{tpu_custom_call.1} parent=1 // pred_fallthru
      _
    // Predicated region
    $region58: #{tpu_custom_call.1} parent=1 // pred_check
      _
    $region59: #{tpu_custom_call.1} parent=1 // pred_check_branch
      %3069 = sbr.rel (0) target = $region61
    $region60: #{tpu_custom_call.1} parent=1 // pred_region
      _
    $region61: #{tpu_custom_call.1} parent=1 // pred_fallthru
      _
    %3070 = vsyncpa [#allocation3], 1
    %3071 = vsyncpa [#allocation5], 1
    %3072 = vsyncpa [#allocation8], 1

</llo_original>
